<compile_context>
chip_gen: v5e
topology: v5e:2x2
jax: 0.10.0
libtpu: 0.0.40
codegen_flags: <defaults>
</compile_context>

<pallas_src>
import math

import jax
import jax.numpy as jnp
from jax import lax
from jax.experimental import pallas as pl
from jax.experimental.pallas import tpu as pltpu


def _round_up(a, b):
    return (a + b - 1) // b * b


def _gelu_exact(x):
    # nn.GELU() default in PyTorch is the exact erf-based GELU.
    return 0.5 * x * (1.0 + lax.erf(x * (1.0 / math.sqrt(2.0))))


# ---------------------------------------------------------------------------
# Kernel 1: MLP + log_softmax head + row-normalized hidden features
# ---------------------------------------------------------------------------
def mlp_kernel(x_ref, w1_ref, b1_ref, gamma_ref, beta_ref,
               w2_ref, b2_ref, w3_ref, b3_ref,
               logp_ref, hn_ref):
    x = x_ref[...]

    # Linear(F->H) + GELU
    h = jnp.dot(x, w1_ref[...], preferred_element_type=jnp.float32) + b1_ref[...]
    h = _gelu_exact(h)

    # LayerNorm(hidden, eps=1e-6)
    mu = jnp.mean(h, axis=-1, keepdims=True)
    var = jnp.mean((h - mu) ** 2, axis=-1, keepdims=True)
    h = (h - mu) * lax.rsqrt(var + 1e-6)
    h = h * gamma_ref[...] + beta_ref[...]

    # Dropout: identity (deterministic forward).
    # TODO(synk): training-mode stochastic dropout would need pltpu.prng_* masking.

    # Linear(H->H)
    h = jnp.dot(h, w2_ref[...], preferred_element_type=jnp.float32) + b2_ref[...]

    # last_layer + log_softmax over lane-padded classes.  Padded class columns
    # carry bias -1e30 (and zero weight columns) so exp() underflows to 0 and
    # they never affect max/sum; they are sliced off in the wrapper.
    logits = jnp.dot(h, w3_ref[...], preferred_element_type=jnp.float32) + b3_ref[...]
    m = jnp.max(logits, axis=-1, keepdims=True)
    z = logits - m
    lse = jnp.log(jnp.sum(jnp.exp(z), axis=-1, keepdims=True))
    logp_ref[...] = z - lse

    # Row-normalized features: fold 1/||h|| into h so x_dis is just the
    # off-diagonal of h_n @ h_n^T.  (No epsilon: a zero-norm row gives a
    # non-finite result, same as the PyTorch reference.)
    inv_nrm = lax.rsqrt(jnp.sum(h * h, axis=-1, keepdims=True))
    hn_ref[...] = (h * inv_nrm).astype(hn_ref.dtype)


# ---------------------------------------------------------------------------
# Kernel 2: tiled cosine-similarity gram with zeroed diagonal
# ---------------------------------------------------------------------------
def xdis_kernel(hn_row_ref, hn_col_ref, out_ref):
    i = pl.program_id(0)
    j = pl.program_id(1)
    # Contract the last dims of both operands (A @ B^T) -- no explicit
    # transpose is materialized; bf16 inputs, f32 accumulation on the MXU.
    gram = lax.dot_general(
        hn_row_ref[...], hn_col_ref[...],
        dimension_numbers=(((1,), (1,)), ((), ())),
        preferred_element_type=jnp.float32)
    ti, tj = out_ref.shape
    row_id = i * ti + lax.broadcasted_iota(jnp.int32, (ti, tj), 0)
    col_id = j * tj + lax.broadcasted_iota(jnp.int32, (ti, tj), 1)
    out_ref[...] = jnp.where(row_id == col_id, 0.0, gram)


# ---------------------------------------------------------------------------
# Wrapper
# ---------------------------------------------------------------------------
def gmlp_forward(x, params):
    n, f = x.shape
    h_dim = params["w1"].shape[1]
    c = params["w3"].shape[1]

    # ---- lane-dense padding (all padding is mathematically exact or sliced
    #      off in the wrapper) ----
    f_pad = _round_up(f, 128)
    c_pad = _round_up(c, 128)

    n_lane = _round_up(n, 128)
    if n_lane <= 512:
        tm = ti = tj = n_lane            # single tile per axis for small graphs
        n_pad = n_lane
    else:
        tm, ti, tj = 256, 256, 512       # 512-wide lane-dense x_dis tiles
        n_pad = _round_up(n, 512)

    f32 = jnp.float32
    x_p = jnp.zeros((n_pad, f_pad), f32).at[:n, :f].set(x.astype(f32))
    w1_p = jnp.zeros((f_pad, h_dim), f32).at[:f, :].set(params["w1"].astype(f32))
    w3_p = jnp.zeros((h_dim, c_pad), f32).at[:, :c].set(params["w3"].astype(f32))
    b3_p = jnp.full((1, c_pad), -1e30, f32).at[:, :c].set(params["b3"].astype(f32))
    b1 = params["b1"].astype(f32)
    gamma = params["gamma"].astype(f32)
    beta = params["beta"].astype(f32)
    w2 = params["w2"].astype(f32)
    b2 = params["b2"].astype(f32)

    def _full(a):
        # Whole-array block (block dims == array dims -> no (8,128) constraint).
        return pl.BlockSpec(a.shape, lambda m: (0,) * a.ndim)

    # ---- kernel 1: MLP head + normalized features --------------------------
    flops1 = 2 * n_pad * (f_pad * h_dim + h_dim * h_dim + h_dim * c_pad)
    bytes1 = 4 * (n_pad * f_pad + n_pad * c_pad + f_pad * h_dim
                  + h_dim * h_dim + h_dim * c_pad) + 2 * n_pad * h_dim
    logp_pad, h_n = pl.pallas_call(
        mlp_kernel,
        grid=(n_pad // tm,),
        in_specs=[pl.BlockSpec((tm, f_pad), lambda m: (m, 0)),
                  _full(w1_p), _full(b1), _full(gamma), _full(beta),
                  _full(w2), _full(b2), _full(w3_p), _full(b3_p)],
        out_specs=(pl.BlockSpec((tm, c_pad), lambda m: (m, 0)),
                   pl.BlockSpec((tm, h_dim), lambda m: (m, 0))),
        out_shape=(jax.ShapeDtypeStruct((n_pad, c_pad), jnp.float32),
                   jax.ShapeDtypeStruct((n_pad, h_dim), jnp.bfloat16)),
        compiler_params=pltpu.CompilerParams(
            dimension_semantics=("parallel",),
            vmem_limit_bytes=32 * 1024 * 1024),
        cost_estimate=pl.CostEstimate(
            flops=int(flops1),
            transcendentals=int(n_pad * (h_dim + c_pad)),
            bytes_accessed=int(bytes1)),
    )(x_p, w1_p, b1, gamma, beta, w2, b2, w3_p, b3_p)

    # ---- kernel 2: tiled x_dis = off-diagonal cosine similarity ------------
    xdis_pad = pl.pallas_call(
        xdis_kernel,
        grid=(n_pad // ti, n_pad // tj),
        in_specs=[pl.BlockSpec((ti, h_dim), lambda i, j: (i, 0)),
                  pl.BlockSpec((tj, h_dim), lambda i, j: (j, 0))],
        out_specs=pl.BlockSpec((ti, tj), lambda i, j: (i, j)),
        out_shape=jax.ShapeDtypeStruct((n_pad, n_pad), jnp.float32),
        compiler_params=pltpu.CompilerParams(
            dimension_semantics=("parallel", "parallel"),
            vmem_limit_bytes=32 * 1024 * 1024),
        cost_estimate=pl.CostEstimate(
            flops=int(2 * n_pad * n_pad * h_dim),
            transcendentals=0,
            bytes_accessed=int(4 * n_pad * n_pad + 4 * n_pad * h_dim)),
    )(h_n, h_n)

    return logp_pad[:n, :c], xdis_pad[:n, :n]


# ---------------------------------------------------------------------------
# Pure-JAX reference (ground truth for the sanity check)
# ---------------------------------------------------------------------------
def _reference(x, params):
    with jax.default_matmul_precision("highest"):
        h = x @ params["w1"] + params["b1"]
        h = 0.5 * h * (1.0 + lax.erf(h / jnp.sqrt(2.0)))
        mu = h.mean(-1, keepdims=True)
        var = ((h - mu) ** 2).mean(-1, keepdims=True)
        h = (h - mu) / jnp.sqrt(var + 1e-6)
        h = h * params["gamma"] + params["beta"]
        h = h @ params["w2"] + params["b2"]
        logits = h @ params["w3"] + params["b3"]
        logp = jax.nn.log_softmax(logits, axis=1)
        nrm = jnp.sqrt(jnp.sum(h * h, axis=1, keepdims=True))
        xdis = (h @ h.T) / (nrm @ nrm.T)
        xdis = (1.0 - jnp.eye(x.shape[0], dtype=jnp.float32)) * xdis
    return logp, xdis


if __name__ == "__main__":
    # Small synthetic graph: N nodes x input_feature -> hidden -> classes.
    # N is NOT a multiple of the tile sizes and F/C are not lane-aligned, so
    # the padding + global-index masking paths are exercised.
    N, F, H, C = 1000, 100, 64, 7

    key = jax.random.PRNGKey(0)
    ks = jax.random.split(key, 8)
    x = jax.random.normal(ks[0], (N, F), jnp.float32)

    params = dict(
        w1=jax.random.normal(ks[1], (F, H), jnp.float32) * 0.1,
        b1=jax.random.normal(ks[2], (1, H), jnp.float32) * 0.1,
        gamma=jnp.ones((1, H), jnp.float32),   # nn.LayerNorm default weight
        beta=jnp.zeros((1, H), jnp.float32),   # nn.LayerNorm default bias
        w2=jax.random.normal(ks[3], (H, H), jnp.float32) * 0.1,
        b2=jax.random.normal(ks[4], (1, H), jnp.float32) * 0.1,
        w3=jax.random.normal(ks[5], (H, C), jnp.float32) * 0.1,
        b3=jax.random.normal(ks[6], (1, C), jnp.float32) * 0.1,
    )

    logp, xdis = gmlp_forward(x, params)
    jax.block_until_ready((logp, xdis))

    # Sanity check against the pure-JAX f32 reference (loose tolerance since
    # the gram uses bf16 MXU inputs with f32 accumulation).
    logp_ref, xdis_ref = _reference(x, params)
    assert logp.shape == (N, C) and xdis.shape == (N, N)
    assert float(jnp.max(jnp.abs(logp - logp_ref))) < 1e-1
    assert float(jnp.max(jnp.abs(xdis - xdis_ref))) < 1e-1
    assert bool(jnp.all(jnp.diag(xdis) == 0.0))

    print("KERNEL_OK")
</pallas_src>

<mosaic_0001>
module attributes {stable_mosaic.version = 11 : i64} {
  func.func @mlp_kernel(%arg0: i32, %arg1: memref<256x128xf32, #tpu.memory_space<vmem>>, %arg2: memref<128x64xf32, #tpu.memory_space<vmem>>, %arg3: memref<1x64xf32, #tpu.memory_space<vmem>>, %arg4: memref<1x64xf32, #tpu.memory_space<vmem>>, %arg5: memref<1x64xf32, #tpu.memory_space<vmem>>, %arg6: memref<64x64xf32, #tpu.memory_space<vmem>>, %arg7: memref<1x64xf32, #tpu.memory_space<vmem>>, %arg8: memref<64x128xf32, #tpu.memory_space<vmem>>, %arg9: memref<1x128xf32, #tpu.memory_space<vmem>>, %arg10: memref<256x128xf32, #tpu.memory_space<vmem>>, %arg11: memref<256x64xbf16, #tpu.memory_space<vmem>>) attributes {dimension_semantics = [#tpu.dimension_semantics<parallel>], iteration_bounds = array<i64: 4>, scalar_prefetch = 0 : i64, scratch_operands = 0 : i64, tpu.core_type = #tpu.core_type<tc>, window_params = [{transform_indices = @transform_0, window_bounds = array<i64: 256, 128>}, {pipeline_mode = #tpu.pipeline_mode<synchronous>, transform_indices = @transform_1, window_bounds = array<i64: 128, 64>}, {pipeline_mode = #tpu.pipeline_mode<synchronous>, transform_indices = @transform_2, window_bounds = array<i64: 1, 64>}, {pipeline_mode = #tpu.pipeline_mode<synchronous>, transform_indices = @transform_3, window_bounds = array<i64: 1, 64>}, {pipeline_mode = #tpu.pipeline_mode<synchronous>, transform_indices = @transform_4, window_bounds = array<i64: 1, 64>}, {pipeline_mode = #tpu.pipeline_mode<synchronous>, transform_indices = @transform_5, window_bounds = array<i64: 64, 64>}, {pipeline_mode = #tpu.pipeline_mode<synchronous>, transform_indices = @transform_6, window_bounds = array<i64: 1, 64>}, {pipeline_mode = #tpu.pipeline_mode<synchronous>, transform_indices = @transform_7, window_bounds = array<i64: 64, 128>}, {pipeline_mode = #tpu.pipeline_mode<synchronous>, transform_indices = @transform_8, window_bounds = array<i64: 1, 128>}, {transform_indices = @transform_9, window_bounds = array<i64: 256, 128>}, {transform_indices = @transform_10, window_bounds = array<i64: 256, 64>}]} {
    %c0 = arith.constant 0 : index
    %c0_0 = arith.constant 0 : index
    %0 = vector.load %arg1[%c0, %c0_0] : memref<256x128xf32, #tpu.memory_space<vmem>>, vector<256x128xf32>
    %c0_1 = arith.constant 0 : index
    %c0_2 = arith.constant 0 : index
    %1 = vector.load %arg2[%c0_1, %c0_2] : memref<128x64xf32, #tpu.memory_space<vmem>>, vector<128x64xf32>
    %cst = arith.constant dense<0.000000e+00> : vector<256x64xf32>
    %2 = tpu.matmul %0, %1, %cst {dimension_numbers = #tpu.dot_dimension_numbers<[1], [0], [0], [1], [0, 0, 1, 1], [], []>} : vector<256x128xf32>, vector<128x64xf32>, vector<256x64xf32> -> vector<256x64xf32>
    %c0_3 = arith.constant 0 : index
    %c0_4 = arith.constant 0 : index
    %3 = vector.load %arg3[%c0_3, %c0_4] : memref<1x64xf32, #tpu.memory_space<vmem>>, vector<1x64xf32>
    %4 = vector.broadcast %3 : vector<1x64xf32> to vector<256x64xf32>
    %5 = arith.addf %2, %4 : vector<256x64xf32>
    %cst_5 = arith.constant 5.000000e-01 : f32
    %6 = vector.broadcast %cst_5 : f32 to vector<256x64xf32>
    %7 = arith.mulf %6, %5 : vector<256x64xf32>
    %cst_6 = arith.constant 0.707106769 : f32
    %8 = vector.broadcast %cst_6 : f32 to vector<256x64xf32>
    %9 = arith.mulf %5, %8 : vector<256x64xf32>
    %10 = math.erf %9 : vector<256x64xf32>
    %cst_7 = arith.constant 1.000000e+00 : f32
    %11 = vector.broadcast %cst_7 : f32 to vector<256x64xf32>
    %12 = arith.addf %11, %10 : vector<256x64xf32>
    %13 = arith.mulf %7, %12 : vector<256x64xf32>
    %cst_8 = arith.constant dense<0.000000e+00> : vector<256xf32>
    %14 = vector.multi_reduction <add>, %13, %cst_8 [1] : vector<256x64xf32> to vector<256xf32>
    %15 = vector.shape_cast %14 : vector<256xf32> to vector<256x1xf32>
    %cst_9 = arith.constant 6.400000e+01 : f32
    %16 = vector.broadcast %cst_9 : f32 to vector<256x1xf32>
    %17 = arith.divf %15, %16 : vector<256x1xf32>
    %18 = vector.broadcast %17 : vector<256x1xf32> to vector<256x64xf32>
    %19 = arith.subf %13, %18 : vector<256x64xf32>
    %20 = arith.mulf %19, %19 : vector<256x64xf32>
    %cst_10 = arith.constant dense<0.000000e+00> : vector<256xf32>
    %21 = vector.multi_reduction <add>, %20, %cst_10 [1] : vector<256x64xf32> to vector<256xf32>
    %22 = vector.shape_cast %21 : vector<256xf32> to vector<256x1xf32>
    %cst_11 = arith.constant 6.400000e+01 : f32
    %23 = vector.broadcast %cst_11 : f32 to vector<256x1xf32>
    %24 = arith.divf %22, %23 : vector<256x1xf32>
    %25 = vector.broadcast %17 : vector<256x1xf32> to vector<256x64xf32>
    %26 = arith.subf %13, %25 : vector<256x64xf32>
    %cst_12 = arith.constant 9.99999997E-7 : f32
    %27 = vector.broadcast %cst_12 : f32 to vector<256x1xf32>
    %28 = arith.addf %24, %27 : vector<256x1xf32>
    %29 = math.rsqrt %28 : vector<256x1xf32>
    %30 = vector.broadcast %29 : vector<256x1xf32> to vector<256x64xf32>
    %31 = arith.mulf %26, %30 : vector<256x64xf32>
    %c0_13 = arith.constant 0 : index
    %c0_14 = arith.constant 0 : index
    %32 = vector.load %arg4[%c0_13, %c0_14] : memref<1x64xf32, #tpu.memory_space<vmem>>, vector<1x64xf32>
    %33 = vector.broadcast %32 : vector<1x64xf32> to vector<256x64xf32>
    %34 = arith.mulf %31, %33 : vector<256x64xf32>
    %c0_15 = arith.constant 0 : index
    %c0_16 = arith.constant 0 : index
    %35 = vector.load %arg5[%c0_15, %c0_16] : memref<1x64xf32, #tpu.memory_space<vmem>>, vector<1x64xf32>
    %36 = vector.broadcast %35 : vector<1x64xf32> to vector<256x64xf32>
    %37 = arith.addf %34, %36 : vector<256x64xf32>
    %c0_17 = arith.constant 0 : index
    %c0_18 = arith.constant 0 : index
    %38 = vector.load %arg6[%c0_17, %c0_18] : memref<64x64xf32, #tpu.memory_space<vmem>>, vector<64x64xf32>
    %cst_19 = arith.constant dense<0.000000e+00> : vector<256x64xf32>
    %39 = tpu.matmul %37, %38, %cst_19 {dimension_numbers = #tpu.dot_dimension_numbers<[1], [0], [0], [1], [0, 0, 1, 1], [], []>} : vector<256x64xf32>, vector<64x64xf32>, vector<256x64xf32> -> vector<256x64xf32>
    %c0_20 = arith.constant 0 : index
    %c0_21 = arith.constant 0 : index
    %40 = vector.load %arg7[%c0_20, %c0_21] : memref<1x64xf32, #tpu.memory_space<vmem>>, vector<1x64xf32>
    %41 = vector.broadcast %40 : vector<1x64xf32> to vector<256x64xf32>
    %42 = arith.addf %39, %41 : vector<256x64xf32>
    %c0_22 = arith.constant 0 : index
    %c0_23 = arith.constant 0 : index
    %43 = vector.load %arg8[%c0_22, %c0_23] : memref<64x128xf32, #tpu.memory_space<vmem>>, vector<64x128xf32>
    %cst_24 = arith.constant dense<0.000000e+00> : vector<256x128xf32>
    %44 = tpu.matmul %42, %43, %cst_24 {dimension_numbers = #tpu.dot_dimension_numbers<[1], [0], [0], [1], [0, 0, 1, 1], [], []>} : vector<256x64xf32>, vector<64x128xf32>, vector<256x128xf32> -> vector<256x128xf32>
    %c0_25 = arith.constant 0 : index
    %c0_26 = arith.constant 0 : index
    %45 = vector.load %arg9[%c0_25, %c0_26] : memref<1x128xf32, #tpu.memory_space<vmem>>, vector<1x128xf32>
    %46 = vector.broadcast %45 : vector<1x128xf32> to vector<256x128xf32>
    %47 = arith.addf %44, %46 : vector<256x128xf32>
    %cst_27 = arith.constant dense<0xFF800000> : vector<256xf32>
    %48 = vector.multi_reduction <maximumf>, %47, %cst_27 [1] : vector<256x128xf32> to vector<256xf32>
    %49 = vector.shape_cast %48 : vector<256xf32> to vector<256x1xf32>
    %50 = vector.broadcast %49 : vector<256x1xf32> to vector<256x128xf32>
    %51 = arith.subf %47, %50 : vector<256x128xf32>
    %52 = math.exp %51 : vector<256x128xf32>
    %cst_28 = arith.constant dense<0.000000e+00> : vector<256xf32>
    %53 = vector.multi_reduction <add>, %52, %cst_28 [1] : vector<256x128xf32> to vector<256xf32>
    %54 = vector.shape_cast %53 : vector<256xf32> to vector<256x1xf32>
    %55 = math.log %54 : vector<256x1xf32>
    %56 = vector.broadcast %55 : vector<256x1xf32> to vector<256x128xf32>
    %57 = arith.subf %51, %56 : vector<256x128xf32>
    %c0_29 = arith.constant 0 : index
    %c0_30 = arith.constant 0 : index
    %58 = vector.load %arg10[%c0_29, %c0_30] : memref<256x128xf32, #tpu.memory_space<vmem>>, vector<256x128xf32>
    tpu.vector_store %arg10[%c0_29, %c0_30], %57 {strides = array<i32>} : memref<256x128xf32, #tpu.memory_space<vmem>>, vector<256x128xf32>,
    %59 = arith.mulf %42, %42 : vector<256x64xf32>
    %cst_31 = arith.constant dense<0.000000e+00> : vector<256xf32>
    %60 = vector.multi_reduction <add>, %59, %cst_31 [1] : vector<256x64xf32> to vector<256xf32>
    %61 = vector.shape_cast %60 : vector<256xf32> to vector<256x1xf32>
    %62 = math.rsqrt %61 : vector<256x1xf32>
    %63 = vector.broadcast %62 : vector<256x1xf32> to vector<256x64xf32>
    %64 = arith.mulf %42, %63 : vector<256x64xf32>
    %65 = arith.truncf %64 : vector<256x64xf32> to vector<256x64xbf16>
    %c0_32 = arith.constant 0 : index
    %c0_33 = arith.constant 0 : index
    %66 = vector.load %arg11[%c0_32, %c0_33] : memref<256x64xbf16, #tpu.memory_space<vmem>>, vector<256x64xbf16>
    tpu.vector_store %arg11[%c0_32, %c0_33], %65 {strides = array<i32>} : memref<256x64xbf16, #tpu.memory_space<vmem>>, vector<256x64xbf16>,
    return
  }
  func.func @transform_0(%arg0: i32) -> (i32, i32) {
    %c0_i32 = arith.constant 0 : i32
    %c0_i32_0 = arith.constant 0 : i32
    return %arg0, %c0_i32 : i32, i32
  }
  func.func @transform_1(%arg0: i32) -> (i32, i32) {
    %c0_i32 = arith.constant 0 : i32
    %c0_i32_0 = arith.constant 0 : i32
    %c0_i32_1 = arith.constant 0 : i32
    return %c0_i32, %c0_i32_0 : i32, i32
  }
  func.func @transform_2(%arg0: i32) -> (i32, i32) {
    %c0_i32 = arith.constant 0 : i32
    %c0_i32_0 = arith.constant 0 : i32
    %c0_i32_1 = arith.constant 0 : i32
    return %c0_i32, %c0_i32_0 : i32, i32
  }
  func.func @transform_3(%arg0: i32) -> (i32, i32) {
    %c0_i32 = arith.constant 0 : i32
    %c0_i32_0 = arith.constant 0 : i32
    %c0_i32_1 = arith.constant 0 : i32
    return %c0_i32, %c0_i32_0 : i32, i32
  }
  func.func @transform_4(%arg0: i32) -> (i32, i32) {
    %c0_i32 = arith.constant 0 : i32
    %c0_i32_0 = arith.constant 0 : i32
    %c0_i32_1 = arith.constant 0 : i32
    return %c0_i32, %c0_i32_0 : i32, i32
  }
  func.func @transform_5(%arg0: i32) -> (i32, i32) {
    %c0_i32 = arith.constant 0 : i32
    %c0_i32_0 = arith.constant 0 : i32
    %c0_i32_1 = arith.constant 0 : i32
    return %c0_i32, %c0_i32_0 : i32, i32
  }
  func.func @transform_6(%arg0: i32) -> (i32, i32) {
    %c0_i32 = arith.constant 0 : i32
    %c0_i32_0 = arith.constant 0 : i32
    %c0_i32_1 = arith.constant 0 : i32
    return %c0_i32, %c0_i32_0 : i32, i32
  }
  func.func @transform_7(%arg0: i32) -> (i32, i32) {
    %c0_i32 = arith.constant 0 : i32
    %c0_i32_0 = arith.constant 0 : i32
    %c0_i32_1 = arith.constant 0 : i32
    return %c0_i32, %c0_i32_0 : i32, i32
  }
  func.func @transform_8(%arg0: i32) -> (i32, i32) {
    %c0_i32 = arith.constant 0 : i32
    %c0_i32_0 = arith.constant 0 : i32
    %c0_i32_1 = arith.constant 0 : i32
    return %c0_i32, %c0_i32_0 : i32, i32
  }
  func.func @transform_9(%arg0: i32) -> (i32, i32) {
    %c0_i32 = arith.constant 0 : i32
    %c0_i32_0 = arith.constant 0 : i32
    return %arg0, %c0_i32 : i32, i32
  }
  func.func @transform_10(%arg0: i32) -> (i32, i32) {
    %c0_i32 = arith.constant 0 : i32
    %c0_i32_0 = arith.constant 0 : i32
    return %arg0, %c0_i32 : i32, i32
  }
}

</mosaic_0001>

<llo_original>
// kernel: tpu_custom_call.1
$region0: #{tpu_custom_call.1}
  #allocation0 [shape = 'u32[]', space=smem, size = 0x4, offset = 0x4, fixed_abs, tag = 'smem constant byte address 0x4 - core index']
  #allocation1 [shape = 'u32[72,128]{1,0:T(1,128)}', space=vmem, size = 0x9000, scoped, tag = 'internal scratch']
  %s0 = inlined_call_operand.hbm [shape: f32[1024,128], index: 0, kind: input, shape index: {}]
  %s1 = inlined_call_operand.vmem [shape: f32[128,64], index: 1, kind: input, shape index: {}]
  %s2 = inlined_call_operand.vmem [shape: f32[1,64], index: 2, kind: input, shape index: {}]
  %s3 = inlined_call_operand.vmem [shape: f32[1,64], index: 3, kind: input, shape index: {}]
  %s4 = inlined_call_operand.vmem [shape: f32[1,64], index: 4, kind: input, shape index: {}]
  %s5 = inlined_call_operand.vmem [shape: f32[64,64], index: 5, kind: input, shape index: {}]
  %s6 = inlined_call_operand.vmem [shape: f32[1,64], index: 6, kind: input, shape index: {}]
  %s7 = inlined_call_operand.vmem [shape: f32[64,128], index: 7, kind: input, shape index: {}]
  %s8 = inlined_call_operand.vmem [shape: f32[1,128], index: 8, kind: input, shape index: {}]
  %s9 = inlined_call_operand.hbm [shape: f32[1024,128], index: 9, kind: output, shape index: {0}]
  %s10 = inlined_call_operand.vmem [shape: bf16[1024,64], index: 10, kind: output, shape index: {1}]
  %11 = xla_tuple %s9, %s10
  %s12 = sld [smem:[#allocation0]]
  $region81: #{tpu_custom_call.1} parent=0
    _
  %s14 = ssub.s32 1, %s12
  %s15 = scalar_select 0, %s14, %s12
  $region1: #{tpu_custom_call.1} parent=0
    #allocation2 [shape = 'u8[262144]{0}', space=vmem, size = 0x40000, scoped, tag = 'input window, operand 0']
    #allocation3 [shape = 's32[2]{0}', space=sflag, size = 0x8, scoped, tag = 'scoped memory for tpu_custom_call.1']
    #allocation4 [shape = 's32[2]{0}', space=sflag, size = 0x8, scoped, tag = 'scoped memory for tpu_custom_call.1']
    #allocation5 [shape = 'u8[262144]{0}', space=vmem, size = 0x40000, scoped, tag = 'output window, operand 0']
    %16 = vsyncpa [#allocation3], 0
    %s17 = scalar_lea.sflag [#allocation3], 1
    %18 = vsyncpa %s17, 0
    %19 = vsyncpa [#allocation4], 0
    %s20 = scalar_lea.sflag [#allocation4], 1
    %21 = vsyncpa %s20, 0
    loop: start=0, step=1, limit=6
    $region2: #{tpu_custom_call.1} parent=1 // loop_pre_header
      _
    $region3: #{tpu_custom_call.1} parent=1 // loop_header
      %s23 = sphi 0, %s27
      %p24 = scmp.ge.s32.totalorder %s23, 6
      %s33 = sphi 0, %s35
      %s36 = sphi 0, %s33
      %s37 = sphi 0, %s36
      %s53 = sphi 0, %s37
      %s57 = sphi 0, %s57
      %s59 = sphi 0, %s57
      %s60 = sphi 0, %s59
      %s74 = sphi 0, %s60
      %s78 = sphi 0, %s78
      %s80 = sphi 0, %s78
      %s81 = sphi 0, %s80
      %s95 = sphi 0, %s81
      %s99 = sphi 0, %s99
      %s101 = sphi 0, %s99
      %s102 = sphi 0, %s101
      %s116 = sphi 0, %s102
      %s120 = sphi 0, %s120
      %s122 = sphi 0, %s120
      %s123 = sphi 0, %s122
      %s137 = sphi 0, %s123
      %s141 = sphi 0, %s141
      %s143 = sphi 0, %s141
      %s144 = sphi 0, %s143
      %s158 = sphi 0, %s144
      %s162 = sphi 0, %s162
      %s164 = sphi 0, %s162
      %s165 = sphi 0, %s164
      %s179 = sphi 0, %s165
      %s183 = sphi 0, %s183
      %s185 = sphi 0, %s183
      %s186 = sphi 0, %s185
      %s200 = sphi 0, %s186
      %s204 = sphi 0, %s204
      %s206 = sphi 0, %s204
      %s207 = sphi 0, %s206
      %s221 = sphi 0, %s207
      %s227 = sphi 0, %s229
      %s230 = sphi 0, %s227
      %s231 = sphi 0, %s230
      %s247 = sphi 0, %s231
      %s253 = sphi 0, %s255
      %s256 = sphi 0, %s253
      %s257 = sphi 0, %s256
      %s273 = sphi 0, %s257
    $region4: #{tpu_custom_call.1} parent=1 // loop_header_branch
      %26 = sbr.rel (%p24) target = $region8
    $region5: #{tpu_custom_call.1} parent=1 // loop_body
      %s28 = ssub.s32 %s23, 1
      %s29 = ssub.s32 %s23, 2
      %s30 = sadd.s32 %s23, 1
      %s31 = ssub.s32 %s23, %s30
      %p32 = scmp.eq.s32.totalorder %s31, 0
      %s34 = sadd.s32 %s33, 1
      %s35 = scalar_select %p32, %s33, %s34
      %p38 = pneg %p32
      %p39 = scmp.eq.s32.totalorder %s23, 3
      %p40 = por %p38, %p39
      %p41 = scmp.ne.s32.totalorder %s33, %s36
      %p42 = scmp.eq.s32.totalorder %s23, 0
      %p43 = por %p41, %p42
      %p44 = scmp.ne.s32.totalorder %s33, %s36
      %p45 = scmp.eq.s32.totalorder %s28, 3
      %p46 = por %p44, %p45
      %p47 = scmp.ne.s32.totalorder %s36, %s37
      %p48 = scmp.eq.s32.totalorder %s28, 0
      %p49 = por %p47, %p48
      %p50 = scmp.ne.s32.totalorder %s36, %s37
      %p51 = scmp.eq.s32.totalorder %s29, 3
      %p52 = por %p50, %p51
      %p54 = scmp.ne.s32.totalorder %s37, %s53
      %p55 = scmp.eq.s32.totalorder %s29, 0
      %p56 = por %p54, %p55
      %s58 = sadd.s32 %s57, 1
      %p61 = scmp.eq.s32.totalorder %s23, 3
      %p62 = scmp.ne.s32.totalorder %s57, %s59
      %p63 = scmp.eq.s32.totalorder %s23, 0
      %p64 = por %p62, %p63
      %p65 = scmp.ne.s32.totalorder %s57, %s59
      %p66 = scmp.eq.s32.totalorder %s28, 3
      %p67 = por %p65, %p66
      %p68 = scmp.ne.s32.totalorder %s59, %s60
      %p69 = scmp.eq.s32.totalorder %s28, 0
      %p70 = por %p68, %p69
      %p71 = scmp.ne.s32.totalorder %s59, %s60
      %p72 = scmp.eq.s32.totalorder %s29, 3
      %p73 = por %p71, %p72
      %p75 = scmp.ne.s32.totalorder %s60, %s74
      %p76 = scmp.eq.s32.totalorder %s29, 0
      %p77 = por %p75, %p76
      %s79 = sadd.s32 %s78, 1
      %p82 = scmp.eq.s32.totalorder %s23, 3
      %p83 = scmp.ne.s32.totalorder %s78, %s80
      %p84 = scmp.eq.s32.totalorder %s23, 0
      %p85 = por %p83, %p84
      %p86 = scmp.ne.s32.totalorder %s78, %s80
      %p87 = scmp.eq.s32.totalorder %s28, 3
      %p88 = por %p86, %p87
      %p89 = scmp.ne.s32.totalorder %s80, %s81
      %p90 = scmp.eq.s32.totalorder %s28, 0
      %p91 = por %p89, %p90
      %p92 = scmp.ne.s32.totalorder %s80, %s81
      %p93 = scmp.eq.s32.totalorder %s29, 3
      %p94 = por %p92, %p93
      %p96 = scmp.ne.s32.totalorder %s81, %s95
      %p97 = scmp.eq.s32.totalorder %s29, 0
      %p98 = por %p96, %p97
      %s100 = sadd.s32 %s99, 1
      %p103 = scmp.eq.s32.totalorder %s23, 3
      %p104 = scmp.ne.s32.totalorder %s99, %s101
      %p105 = scmp.eq.s32.totalorder %s23, 0
      %p106 = por %p104, %p105
      %p107 = scmp.ne.s32.totalorder %s99, %s101
      %p108 = scmp.eq.s32.totalorder %s28, 3
      %p109 = por %p107, %p108
      %p110 = scmp.ne.s32.totalorder %s101, %s102
      %p111 = scmp.eq.s32.totalorder %s28, 0
      %p112 = por %p110, %p111
      %p113 = scmp.ne.s32.totalorder %s101, %s102
      %p114 = scmp.eq.s32.totalorder %s29, 3
      %p115 = por %p113, %p114
      %p117 = scmp.ne.s32.totalorder %s102, %s116
      %p118 = scmp.eq.s32.totalorder %s29, 0
      %p119 = por %p117, %p118
      %s121 = sadd.s32 %s120, 1
      %p124 = scmp.eq.s32.totalorder %s23, 3
      %p125 = scmp.ne.s32.totalorder %s120, %s122
      %p126 = scmp.eq.s32.totalorder %s23, 0
      %p127 = por %p125, %p126
      %p128 = scmp.ne.s32.totalorder %s120, %s122
      %p129 = scmp.eq.s32.totalorder %s28, 3
      %p130 = por %p128, %p129
      %p131 = scmp.ne.s32.totalorder %s122, %s123
      %p132 = scmp.eq.s32.totalorder %s28, 0
      %p133 = por %p131, %p132
      %p134 = scmp.ne.s32.totalorder %s122, %s123
      %p135 = scmp.eq.s32.totalorder %s29, 3
      %p136 = por %p134, %p135
      %p138 = scmp.ne.s32.totalorder %s123, %s137
      %p139 = scmp.eq.s32.totalorder %s29, 0
      %p140 = por %p138, %p139
      %s142 = sadd.s32 %s141, 1
      %p145 = scmp.eq.s32.totalorder %s23, 3
      %p146 = scmp.ne.s32.totalorder %s141, %s143
      %p147 = scmp.eq.s32.totalorder %s23, 0
      %p148 = por %p146, %p147
      %p149 = scmp.ne.s32.totalorder %s141, %s143
      %p150 = scmp.eq.s32.totalorder %s28, 3
      %p151 = por %p149, %p150
      %p152 = scmp.ne.s32.totalorder %s143, %s144
      %p153 = scmp.eq.s32.totalorder %s28, 0
      %p154 = por %p152, %p153
      %p155 = scmp.ne.s32.totalorder %s143, %s144
      %p156 = scmp.eq.s32.totalorder %s29, 3
      %p157 = por %p155, %p156
      %p159 = scmp.ne.s32.totalorder %s144, %s158
      %p160 = scmp.eq.s32.totalorder %s29, 0
      %p161 = por %p159, %p160
      %s163 = sadd.s32 %s162, 1
      %p166 = scmp.eq.s32.totalorder %s23, 3
      %p167 = scmp.ne.s32.totalorder %s162, %s164
      %p168 = scmp.eq.s32.totalorder %s23, 0
      %p169 = por %p167, %p168
      %p170 = scmp.ne.s32.totalorder %s162, %s164
      %p171 = scmp.eq.s32.totalorder %s28, 3
      %p172 = por %p170, %p171
      %p173 = scmp.ne.s32.totalorder %s164, %s165
      %p174 = scmp.eq.s32.totalorder %s28, 0
      %p175 = por %p173, %p174
      %p176 = scmp.ne.s32.totalorder %s164, %s165
      %p177 = scmp.eq.s32.totalorder %s29, 3
      %p178 = por %p176, %p177
      %p180 = scmp.ne.s32.totalorder %s165, %s179
      %p181 = scmp.eq.s32.totalorder %s29, 0
      %p182 = por %p180, %p181
      %s184 = sadd.s32 %s183, 1
      %p187 = scmp.eq.s32.totalorder %s23, 3
      %p188 = scmp.ne.s32.totalorder %s183, %s185
      %p189 = scmp.eq.s32.totalorder %s23, 0
      %p190 = por %p188, %p189
      %p191 = scmp.ne.s32.totalorder %s183, %s185
      %p192 = scmp.eq.s32.totalorder %s28, 3
      %p193 = por %p191, %p192
      %p194 = scmp.ne.s32.totalorder %s185, %s186
      %p195 = scmp.eq.s32.totalorder %s28, 0
      %p196 = por %p194, %p195
      %p197 = scmp.ne.s32.totalorder %s185, %s186
      %p198 = scmp.eq.s32.totalorder %s29, 3
      %p199 = por %p197, %p198
      %p201 = scmp.ne.s32.totalorder %s186, %s200
      %p202 = scmp.eq.s32.totalorder %s29, 0
      %p203 = por %p201, %p202
      %s205 = sadd.s32 %s204, 1
      %p208 = scmp.eq.s32.totalorder %s23, 3
      %p209 = scmp.ne.s32.totalorder %s204, %s206
      %p210 = scmp.eq.s32.totalorder %s23, 0
      %p211 = por %p209, %p210
      %p212 = scmp.ne.s32.totalorder %s204, %s206
      %p213 = scmp.eq.s32.totalorder %s28, 3
      %p214 = por %p212, %p213
      %p215 = scmp.ne.s32.totalorder %s206, %s207
      %p216 = scmp.eq.s32.totalorder %s28, 0
      %p217 = por %p215, %p216
      %p218 = scmp.ne.s32.totalorder %s206, %s207
      %p219 = scmp.eq.s32.totalorder %s29, 3
      %p220 = por %p218, %p219
      %p222 = scmp.ne.s32.totalorder %s207, %s221
      %p223 = scmp.eq.s32.totalorder %s29, 0
      %p224 = por %p222, %p223
      %s225 = ssub.s32 %s23, %s30
      %p226 = scmp.eq.s32.totalorder %s225, 0
      %s228 = sadd.s32 %s227, 1
      %s229 = scalar_select %p226, %s227, %s228
      %p232 = pneg %p226
      %p233 = scmp.eq.s32.totalorder %s23, 3
      %p234 = por %p232, %p233
      %p235 = scmp.ne.s32.totalorder %s227, %s230
      %p236 = scmp.eq.s32.totalorder %s23, 0
      %p237 = por %p235, %p236
      %p238 = scmp.ne.s32.totalorder %s227, %s230
      %p239 = scmp.eq.s32.totalorder %s28, 3
      %p240 = por %p238, %p239
      %p241 = scmp.ne.s32.totalorder %s230, %s231
      %p242 = scmp.eq.s32.totalorder %s28, 0
      %p243 = por %p241, %p242
      %p244 = scmp.ne.s32.totalorder %s230, %s231
      %p245 = scmp.eq.s32.totalorder %s29, 3
      %p246 = por %p244, %p245
      %p248 = scmp.ne.s32.totalorder %s231, %s247
      %p249 = scmp.eq.s32.totalorder %s29, 0
      %p250 = por %p248, %p249
      %s251 = ssub.s32 %s23, %s30
      %p252 = scmp.eq.s32.totalorder %s251, 0
      %s254 = sadd.s32 %s253, 1
      %s255 = scalar_select %p252, %s253, %s254
      %p258 = pneg %p252
      %p259 = scmp.eq.s32.totalorder %s23, 3
      %p260 = por %p258, %p259
      %p261 = scmp.ne.s32.totalorder %s253, %s256
      %p262 = scmp.eq.s32.totalorder %s23, 0
      %p263 = por %p261, %p262
      %p264 = scmp.ne.s32.totalorder %s253, %s256
      %p265 = scmp.eq.s32.totalorder %s28, 3
      %p266 = por %p264, %p265
      %p267 = scmp.ne.s32.totalorder %s256, %s257
      %p268 = scmp.eq.s32.totalorder %s28, 0
      %p269 = por %p267, %p268
      %p270 = scmp.ne.s32.totalorder %s256, %s257
      %p271 = scmp.eq.s32.totalorder %s29, 3
      %p272 = por %p270, %p271
      %p274 = scmp.ne.s32.totalorder %s257, %s273
      %p275 = scmp.eq.s32.totalorder %s29, 0
      %p276 = por %p274, %p275
      %p277 = scmp.le.s32.totalorder 1, %s23
      %p278 = scmp.lt.s32.totalorder %s23, 5
      %p279 = pnand %p277, %p278
      %p280 = pneg %p279
      // Predicated region
      $region9: #{tpu_custom_call.1} parent=5 // pred_check
        _
      $region10: #{tpu_custom_call.1} parent=5 // pred_check_branch
        %282 = sbr.rel (%p279) target = $region12
      $region11: #{tpu_custom_call.1} parent=5 // pred_region
        %s283 = ssub.s32 %s23, 1
        // Predicated region
        $region13: #{tpu_custom_call.1} parent=11 // pred_check
          %p284 = pneg %p70
        $region14: #{tpu_custom_call.1} parent=11 // pred_check_branch
          %286 = sbr.rel (%p284) target = $region16
        $region15: #{tpu_custom_call.1} parent=11 // pred_region
          _
        $region16: #{tpu_custom_call.1} parent=11 // pred_fallthru
          _
        // Predicated region
        $region17: #{tpu_custom_call.1} parent=11 // pred_check
          %p287 = pneg %p91
        $region18: #{tpu_custom_call.1} parent=11 // pred_check_branch
          %289 = sbr.rel (%p287) target = $region20
        $region19: #{tpu_custom_call.1} parent=11 // pred_region
          _
        $region20: #{tpu_custom_call.1} parent=11 // pred_fallthru
          _
        // Predicated region
        $region21: #{tpu_custom_call.1} parent=11 // pred_check
          %p290 = pneg %p112
        $region22: #{tpu_custom_call.1} parent=11 // pred_check_branch
          %292 = sbr.rel (%p290) target = $region24
        $region23: #{tpu_custom_call.1} parent=11 // pred_region
          _
        $region24: #{tpu_custom_call.1} parent=11 // pred_fallthru
          _
        // Predicated region
        $region25: #{tpu_custom_call.1} parent=11 // pred_check
          %p293 = pneg %p133
        $region26: #{tpu_custom_call.1} parent=11 // pred_check_branch
          %295 = sbr.rel (%p293) target = $region28
        $region27: #{tpu_custom_call.1} parent=11 // pred_region
          _
        $region28: #{tpu_custom_call.1} parent=11 // pred_fallthru
          _
        // Predicated region
        $region29: #{tpu_custom_call.1} parent=11 // pred_check
          %p296 = pneg %p154
        $region30: #{tpu_custom_call.1} parent=11 // pred_check_branch
          %298 = sbr.rel (%p296) target = $region32
        $region31: #{tpu_custom_call.1} parent=11 // pred_region
          _
        $region32: #{tpu_custom_call.1} parent=11 // pred_fallthru
          _
        // Predicated region
        $region33: #{tpu_custom_call.1} parent=11 // pred_check
          %p299 = pneg %p175
        $region34: #{tpu_custom_call.1} parent=11 // pred_check_branch
          %301 = sbr.rel (%p299) target = $region36
        $region35: #{tpu_custom_call.1} parent=11 // pred_region
          _
        $region36: #{tpu_custom_call.1} parent=11 // pred_fallthru
          _
        // Predicated region
        $region37: #{tpu_custom_call.1} parent=11 // pred_check
          %p302 = pneg %p196
        $region38: #{tpu_custom_call.1} parent=11 // pred_check_branch
          %304 = sbr.rel (%p302) target = $region40
        $region39: #{tpu_custom_call.1} parent=11 // pred_region
          _
        $region40: #{tpu_custom_call.1} parent=11 // pred_fallthru
          _
        // Predicated region
        $region41: #{tpu_custom_call.1} parent=11 // pred_check
          %p305 = pneg %p217
        $region42: #{tpu_custom_call.1} parent=11 // pred_check_branch
          %307 = sbr.rel (%p305) target = $region44
        $region43: #{tpu_custom_call.1} parent=11 // pred_region
          _
        $region44: #{tpu_custom_call.1} parent=11 // pred_fallthru
          _
      $region12: #{tpu_custom_call.1} parent=5 // pred_fallthru
        _
      %p308 = scmp.lt.s32.totalorder %s23, 4
      // Predicated region
      $region45: #{tpu_custom_call.1} parent=5 // pred_check
        %p309 = pneg %p308
      $region46: #{tpu_custom_call.1} parent=5 // pred_check_branch
        %311 = sbr.rel (%p309) target = $region48
      $region47: #{tpu_custom_call.1} parent=5 // pred_region
        // Predicated region
        $region49: #{tpu_custom_call.1} parent=47 // pred_check
          %p312 = pneg %p43
        $region50: #{tpu_custom_call.1} parent=47 // pred_check_branch
          %314 = sbr.rel (%p312) target = $region52
        $region51: #{tpu_custom_call.1} parent=47 // pred_region
          %s315 = sand.u32 %s33, 1
          %s316 = scalar_lea.sflag [#allocation3], %s315
          %s317 = sand.u32 %s33, 1
          %s318 = smul.addr %s317, 256
          %s319 = scalar_lea.vmem [#allocation2], %s318
          %s320 = smul.u32 32, %s23
          %322 = vsyncadd %s316, 0
          %s323 = smul.addr %s320, 8
          %s324 = scalar_lea.hbm %s0, %s323
          %s325 = sshll.u32 %s324, 4
          %s326 = int_to_ptr.hbm [resolvable:$true] %s325
          %s327 = sshll.u32 %s319, 4
          %s328 = int_to_ptr.vmem [resolvable:$true] %s327
          %333 = dma.hbm_to_vmem [thread:$0]  %s326, 4096, %s328, %s316, 128, 128, 8
        $region52: #{tpu_custom_call.1} parent=47 // pred_fallthru
          _
      $region48: #{tpu_custom_call.1} parent=5 // pred_fallthru
        _
      %p334 = scmp.le.s32.totalorder 1, %s23
      %p335 = scmp.lt.s32.totalorder %s23, 5
      %p336 = pnand %p334, %p335
      %p337 = pneg %p336
      // Predicated region
      $region53: #{tpu_custom_call.1} parent=5 // pred_check
        _
      $region54: #{tpu_custom_call.1} parent=5 // pred_check_branch
        %339 = sbr.rel (%p336) target = $region56
      $region55: #{tpu_custom_call.1} parent=5 // pred_region
        %s340 = ssub.s32 %s23, 1
        %s341 = sand.u32 %s36, 1
        %s342 = scalar_lea.sflag [#allocation3], %s341
        %s343 = sand.u32 %s36, 1
        %s344 = smul.addr %s343, 256
        %s345 = scalar_lea.vmem [#allocation2], %s344
        // Predicated region
        $region57: #{tpu_custom_call.1} parent=55 // pred_check
          %p346 = pneg %p49
        $region58: #{tpu_custom_call.1} parent=55 // pred_check_branch
          %348 = sbr.rel (%p346) target = $region60
        $region59: #{tpu_custom_call.1} parent=55 // pred_region
          %350 = dma.done %s342, 4096
        $region60: #{tpu_custom_call.1} parent=55 // pred_fallthru
          _
        %s351 = sand.u32 %s36, 1
        %s352 = scalar_lea.sflag [#allocation3], %s351
        %s353 = sand.u32 %s36, 1
        %s354 = smul.addr %s353, 256
        %s355 = scalar_lea.vmem [#allocation2], %s354
        %p356 = pneg %p49
        %p357 = pneg %p46
        %p358 = pneg %p70
        %p359 = pneg %p67
        %p360 = pneg %p91
        %p361 = pneg %p88
        %p362 = pneg %p112
        %p363 = pneg %p109
        %p364 = pneg %p133
        %p365 = pneg %p130
        %p366 = pneg %p154
        %p367 = pneg %p151
        %p368 = pneg %p175
        %p369 = pneg %p172
        %p370 = pneg %p196
        %p371 = pneg %p193
        %p372 = pneg %p217
        %p373 = pneg %p214
        %p374 = pneg %p243
        %p375 = pneg %p240
        %s376 = sand.u32 %s230, 1
        %s377 = scalar_lea.sflag [#allocation4], %s376
        %s378 = sand.u32 %s230, 1
        %s379 = smul.addr %s378, 256
        %s380 = scalar_lea.vmem [#allocation5], %s379
        %p381 = pneg %p269
        %p382 = pneg %p266
        %s383 = smul.u32 32, %s28
        %p384 = scmp.lt.s32.totalorder %s383, 127
        %s385 = scalar_select %p384, %s383, 127
        %s386 = smul.addr %s385, 4
        %s387 = scalar_lea.vmem %s10, %s386
        %s388 = smul.u32 32, %s28
        %s389 = smul.u32 32, %s28
        %s390 = smul.u32 32, %s28
        %p391 = scmp.lt.s32.totalorder %s390, 127
        %s392 = scalar_select %p391, %s390, 127
        %s393 = smul.addr %s392, 4
        %s394 = scalar_lea.vmem %s10, %s393
        %s395 = smul.u32 32, %s28
        %v396 = vld [vmem:[%s345] sm:$0xff]
        %v397 = vld [vmem:[%s345 + $0x8] sm:$0xff]
        %v398 = vld [vmem:[%s345 + $0x10] sm:$0xff]
        %v399 = vld [vmem:[%s345 + $0x18] sm:$0xff]
        %v400 = vld [vmem:[%s345 + $0x20] sm:$0xff]
        %v401 = vld [vmem:[%s345 + $0x28] sm:$0xff]
        %v402 = vld [vmem:[%s345 + $0x30] sm:$0xff]
        %v403 = vld [vmem:[%s345 + $0x38] sm:$0xff]
        %v404 = vld [vmem:[%s345 + $0x40] sm:$0xff]
        %v405 = vld [vmem:[%s345 + $0x48] sm:$0xff]
        %v406 = vld [vmem:[%s345 + $0x50] sm:$0xff]
        %v407 = vld [vmem:[%s345 + $0x58] sm:$0xff]
        %v408 = vld [vmem:[%s345 + $0x60] sm:$0xff]
        %v409 = vld [vmem:[%s345 + $0x68] sm:$0xff]
        %v410 = vld [vmem:[%s345 + $0x70] sm:$0xff]
        %v411 = vld [vmem:[%s345 + $0x78] sm:$0xff]
        %v412 = vld [vmem:[%s345 + $0x80] sm:$0xff]
        %v413 = vld [vmem:[%s345 + $0x88] sm:$0xff]
        %v414 = vld [vmem:[%s345 + $0x90] sm:$0xff]
        %v415 = vld [vmem:[%s345 + $0x98] sm:$0xff]
        %v416 = vld [vmem:[%s345 + $0xa0] sm:$0xff]
        %v417 = vld [vmem:[%s345 + $0xa8] sm:$0xff]
        %v418 = vld [vmem:[%s345 + $0xb0] sm:$0xff]
        %v419 = vld [vmem:[%s345 + $0xb8] sm:$0xff]
        %v420 = vld [vmem:[%s345 + $0xc0] sm:$0xff]
        %v421 = vld [vmem:[%s345 + $0xc8] sm:$0xff]
        %v422 = vld [vmem:[%s345 + $0xd0] sm:$0xff]
        %v423 = vld [vmem:[%s345 + $0xd8] sm:$0xff]
        %v424 = vld [vmem:[%s345 + $0xe0] sm:$0xff]
        %v425 = vld [vmem:[%s345 + $0xe8] sm:$0xff]
        %v426 = vld [vmem:[%s345 + $0xf0] sm:$0xff]
        %v427 = vld [vmem:[%s345 + $0xf8] sm:$0xff]
        %v428 = vld [vmem:[%s1] sm:$0xff]
        %v429 = vld [vmem:[%s1 + $0x8] sm:$0xff]
        %v430 = vld [vmem:[%s1 + $0x10] sm:$0xff]
        %v431 = vld [vmem:[%s1 + $0x18] sm:$0xff]
        %v432 = vld [vmem:[%s1 + $0x20] sm:$0xff]
        %v433 = vld [vmem:[%s1 + $0x28] sm:$0xff]
        %v434 = vld [vmem:[%s1 + $0x30] sm:$0xff]
        %v435 = vld [vmem:[%s1 + $0x38] sm:$0xff]
        %v436 = vld [vmem:[%s1 + $0x40] sm:$0xff]
        %v437 = vld [vmem:[%s1 + $0x48] sm:$0xff]
        %v438 = vld [vmem:[%s1 + $0x50] sm:$0xff]
        %v439 = vld [vmem:[%s1 + $0x58] sm:$0xff]
        %v440 = vld [vmem:[%s1 + $0x60] sm:$0xff]
        %v441 = vld [vmem:[%s1 + $0x68] sm:$0xff]
        %v442 = vld [vmem:[%s1 + $0x70] sm:$0xff]
        %v443 = vld [vmem:[%s1 + $0x78] sm:$0xff]
        %v444 = vld [vmem:[%s2] sm:$0x1]
        %v446 = vperm.slane %v444, 0
        %448 = vmatpush.msra.mxu0 %v443
        %449 = vmatpush.msra.mxu0 %v442
        %450 = vmatpush.msra.mxu0 %v441
        %451 = vmatpush.msra.mxu0 %v440
        %452 = vmatpush.msra.mxu0 %v439
        %453 = vmatpush.msra.mxu0 %v438
        %454 = vmatpush.msra.mxu0 %v437
        %455 = vmatpush.msra.mxu0 %v436
        %456 = vmatpush.msra.mxu0 %v435
        %457 = vmatpush.msra.mxu0 %v434
        %458 = vmatpush.msra.mxu0 %v433
        %459 = vmatpush.msra.mxu0 %v432
        %460 = vmatpush.msra.mxu0 %v431
        %461 = vmatpush.msra.mxu0 %v430
        %462 = vmatpush.msra.mxu0 %v429
        %463 = vmatpush.msra.mxu0 %v428
        %464 = vmatmul.f32.gmra.mxu0 %v396
        %v465 = vpop.f32.mrf.mxu0
        %v466 = vadd.f32 %v446, %v465
        %467 = vmatmul.f32.gmra.mxu0 %v397
        %v468 = vpop.f32.mrf.mxu0
        %v469 = vadd.f32 %v446, %v468
        %470 = vmatmul.f32.gmra.mxu0 %v398
        %v471 = vpop.f32.mrf.mxu0
        %v472 = vadd.f32 %v446, %v471
        %473 = vmatmul.f32.gmra.mxu0 %v399
        %v474 = vpop.f32.mrf.mxu0
        %v475 = vadd.f32 %v446, %v474
        %476 = vmatmul.f32.gmra.mxu0 %v400
        %v477 = vpop.f32.mrf.mxu0
        %v478 = vadd.f32 %v446, %v477
        %479 = vmatmul.f32.gmra.mxu0 %v401
        %v480 = vpop.f32.mrf.mxu0
        %v481 = vadd.f32 %v446, %v480
        %482 = vmatmul.f32.gmra.mxu0 %v402
        %v483 = vpop.f32.mrf.mxu0
        %v484 = vadd.f32 %v446, %v483
        %485 = vmatmul.f32.gmra.mxu0 %v403
        %v486 = vpop.f32.mrf.mxu0
        %v487 = vadd.f32 %v446, %v486
        %488 = vmatmul.f32.gmra.mxu0 %v404
        %v489 = vpop.f32.mrf.mxu0
        %v490 = vadd.f32 %v446, %v489
        %491 = vmatmul.f32.gmra.mxu0 %v405
        %v492 = vpop.f32.mrf.mxu0
        %v493 = vadd.f32 %v446, %v492
        %494 = vmatmul.f32.gmra.mxu0 %v406
        %v495 = vpop.f32.mrf.mxu0
        %v496 = vadd.f32 %v446, %v495
        %497 = vmatmul.f32.gmra.mxu0 %v407
        %v498 = vpop.f32.mrf.mxu0
        %v499 = vadd.f32 %v446, %v498
        %500 = vmatmul.f32.gmra.mxu0 %v408
        %v501 = vpop.f32.mrf.mxu0
        %v502 = vadd.f32 %v446, %v501
        %503 = vmatmul.f32.gmra.mxu0 %v409
        %v504 = vpop.f32.mrf.mxu0
        %v505 = vadd.f32 %v446, %v504
        %506 = vmatmul.f32.gmra.mxu0 %v410
        %v507 = vpop.f32.mrf.mxu0
        %v508 = vadd.f32 %v446, %v507
        %509 = vmatmul.f32.gmra.mxu0 %v411
        %v510 = vpop.f32.mrf.mxu0
        %v511 = vadd.f32 %v446, %v510
        %512 = vmatmul.f32.gmra.mxu0 %v412
        %v513 = vpop.f32.mrf.mxu0
        %v514 = vadd.f32 %v446, %v513
        %515 = vmatmul.f32.gmra.mxu0 %v413
        %v516 = vpop.f32.mrf.mxu0
        %v517 = vadd.f32 %v446, %v516
        %518 = vmatmul.f32.gmra.mxu0 %v414
        %v519 = vpop.f32.mrf.mxu0
        %v520 = vadd.f32 %v446, %v519
        %521 = vmatmul.f32.gmra.mxu0 %v415
        %v522 = vpop.f32.mrf.mxu0
        %v523 = vadd.f32 %v446, %v522
        %524 = vmatmul.f32.gmra.mxu0 %v416
        %v525 = vpop.f32.mrf.mxu0
        %v526 = vadd.f32 %v446, %v525
        %527 = vmatmul.f32.gmra.mxu0 %v417
        %v528 = vpop.f32.mrf.mxu0
        %v529 = vadd.f32 %v446, %v528
        %530 = vmatmul.f32.gmra.mxu0 %v418
        %v531 = vpop.f32.mrf.mxu0
        %v532 = vadd.f32 %v446, %v531
        %533 = vmatmul.f32.gmra.mxu0 %v419
        %v534 = vpop.f32.mrf.mxu0
        %v535 = vadd.f32 %v446, %v534
        %536 = vmatmul.f32.gmra.mxu0 %v420
        %v537 = vpop.f32.mrf.mxu0
        %v538 = vadd.f32 %v446, %v537
        %539 = vmatmul.f32.gmra.mxu0 %v421
        %v540 = vpop.f32.mrf.mxu0
        %v541 = vadd.f32 %v446, %v540
        %542 = vmatmul.f32.gmra.mxu0 %v422
        %v543 = vpop.f32.mrf.mxu0
        %v544 = vadd.f32 %v446, %v543
        %545 = vmatmul.f32.gmra.mxu0 %v423
        %v546 = vpop.f32.mrf.mxu0
        %v547 = vadd.f32 %v446, %v546
        %548 = vmatmul.f32.gmra.mxu0 %v424
        %v549 = vpop.f32.mrf.mxu0
        %v550 = vadd.f32 %v446, %v549
        %551 = vmatmul.f32.gmra.mxu0 %v425
        %v552 = vpop.f32.mrf.mxu0
        %v553 = vadd.f32 %v446, %v552
        %554 = vmatmul.f32.gmra.mxu0 %v426
        %v555 = vpop.f32.mrf.mxu0
        %v556 = vadd.f32 %v446, %v555
        %557 = vmatmul.f32.gmra.mxu0 %v427
        %v558 = vpop.f32.mrf.mxu0
        %v559 = vadd.f32 %v446, %v558
        %560 = vdwg.mxu0
        %v561 = vmul.f32 %v466, 0.5
        %v562 = vmul.f32 %v469, 0.5
        %v563 = vmul.f32 %v472, 0.5
        %v564 = vmul.f32 %v475, 0.5
        %v565 = vmul.f32 %v478, 0.5
        %v566 = vmul.f32 %v481, 0.5
        %v567 = vmul.f32 %v484, 0.5
        %v568 = vmul.f32 %v487, 0.5
        %v569 = vmul.f32 %v490, 0.5
        %v570 = vmul.f32 %v493, 0.5
        %v571 = vmul.f32 %v496, 0.5
        %v572 = vmul.f32 %v499, 0.5
        %v573 = vmul.f32 %v502, 0.5
        %v574 = vmul.f32 %v505, 0.5
        %v575 = vmul.f32 %v508, 0.5
        %v576 = vmul.f32 %v511, 0.5
        %v577 = vmul.f32 %v514, 0.5
        %v578 = vmul.f32 %v517, 0.5
        %v579 = vmul.f32 %v520, 0.5
        %v580 = vmul.f32 %v523, 0.5
        %v581 = vmul.f32 %v526, 0.5
        %v582 = vmul.f32 %v529, 0.5
        %v583 = vmul.f32 %v532, 0.5
        %v584 = vmul.f32 %v535, 0.5
        %v585 = vmul.f32 %v538, 0.5
        %v586 = vmul.f32 %v541, 0.5
        %v587 = vmul.f32 %v544, 0.5
        %v588 = vmul.f32 %v547, 0.5
        %v589 = vmul.f32 %v550, 0.5
        %v590 = vmul.f32 %v553, 0.5
        %v591 = vmul.f32 %v556, 0.5
        %v592 = vmul.f32 %v559, 0.5
        %v593 = vmul.f32 %v466, 0.70710677
        %v594 = vmul.f32 %v469, 0.70710677
        %v595 = vmul.f32 %v472, 0.70710677
        %v596 = vmul.f32 %v475, 0.70710677
        %v597 = vmul.f32 %v478, 0.70710677
        %v598 = vmul.f32 %v481, 0.70710677
        %v599 = vmul.f32 %v484, 0.70710677
        %v600 = vmul.f32 %v487, 0.70710677
        %v601 = vmul.f32 %v490, 0.70710677
        %v602 = vmul.f32 %v493, 0.70710677
        %v603 = vmul.f32 %v496, 0.70710677
        %v604 = vmul.f32 %v499, 0.70710677
        %v605 = vmul.f32 %v502, 0.70710677
        %v606 = vmul.f32 %v505, 0.70710677
        %v607 = vmul.f32 %v508, 0.70710677
        %v608 = vmul.f32 %v511, 0.70710677
        %v609 = vmul.f32 %v514, 0.70710677
        %v610 = vmul.f32 %v517, 0.70710677
        %v611 = vmul.f32 %v520, 0.70710677
        %v612 = vmul.f32 %v523, 0.70710677
        %v613 = vmul.f32 %v526, 0.70710677
        %v614 = vmul.f32 %v529, 0.70710677
        %v615 = vmul.f32 %v532, 0.70710677
        %v616 = vmul.f32 %v535, 0.70710677
        %v617 = vmul.f32 %v538, 0.70710677
        %v618 = vmul.f32 %v541, 0.70710677
        %v619 = vmul.f32 %v544, 0.70710677
        %v620 = vmul.f32 %v547, 0.70710677
        %v621 = vmul.f32 %v550, 0.70710677
        %v622 = vmul.f32 %v553, 0.70710677
        %v623 = vmul.f32 %v556, 0.70710677
        %v624 = vmul.f32 %v559, 0.70710677
        %v625 = vmul.f32 %v593, %v593
        %v626 = vmin.f32 16.0, %v625
        %v627 = vmul.f32 %v626, 2.1237322e-06
        %v628 = vadd.f32 %v627, 0.00028619796
        %v629 = vmul.f32 %v626, %v628
        %v630 = vadd.f32 %v629, 0.0036580483
        %v631 = vmul.f32 %v626, %v630
        %v632 = vadd.f32 %v631, 0.05243302
        %v633 = vmul.f32 %v626, %v632
        %v634 = vadd.f32 %v633, 0.18741608
        %v635 = vmul.f32 %v626, %v634
        %v636 = vadd.f32 %v635, 1.1283791
        %v637 = vmul.f32 %v593, %v636
        %v638 = vmul.f32 %v626, 3.8918573e-05
        %v639 = vadd.f32 %v638, 0.001143296
        %v640 = vmul.f32 %v626, %v639
        %v641 = vadd.f32 %v640, 0.014752088
        %v642 = vmul.f32 %v626, %v641
        %v643 = vadd.f32 %v642, 0.112945676
        %v644 = vmul.f32 %v626, %v643
        %v645 = vadd.f32 %v644, 0.4994258
        %v646 = vmul.f32 %v626, %v645
        %v647 = vadd.f32 %v646, 1.0
        %v648 = vrcp.pop %v647
        %v649 = vmul.f32 %v647, %v648
        %v650 = vsub.f32 1.0, %v649
        %v651 = vmul.f32 %v648, %v650
        %v652 = vadd.f32 %v648, %v651
        %vm653 = vweird.f32 %v647
        %vm654 = vweird.f32 %v648
        %vm655 = vmor %vm653, %vm654
        %v656 = vsel %vm655, %v648, %v652
        %v657 = vand.u32 2147483647, %v647
        %vm658 = vcmp.eq.f32.partialorder %v657, 8.507059e+37
        %v659 = vand.u32 %v647, 2147483648
        %v660 = vor.u32 1.1754944e-38, %v659
        %v661 = vsel %vm658, %v660, %v656
        %v662 = vmul.f32 %v637, %v661
        %v663 = vmin.f32 %v662, 1.0
        %v664 = vmax.f32 %v663, -1.0
        %v665 = vmul.f32 %v594, %v594
        %v666 = vmin.f32 16.0, %v665
        %v667 = vmul.f32 %v666, 2.1237322e-06
        %v668 = vadd.f32 %v667, 0.00028619796
        %v669 = vmul.f32 %v666, %v668
        %v670 = vadd.f32 %v669, 0.0036580483
        %v671 = vmul.f32 %v666, %v670
        %v672 = vadd.f32 %v671, 0.05243302
        %v673 = vmul.f32 %v666, %v672
        %v674 = vadd.f32 %v673, 0.18741608
        %v675 = vmul.f32 %v666, %v674
        %v676 = vadd.f32 %v675, 1.1283791
        %v677 = vmul.f32 %v594, %v676
        %v678 = vmul.f32 %v666, 3.8918573e-05
        %v679 = vadd.f32 %v678, 0.001143296
        %v680 = vmul.f32 %v666, %v679
        %v681 = vadd.f32 %v680, 0.014752088
        %v682 = vmul.f32 %v666, %v681
        %v683 = vadd.f32 %v682, 0.112945676
        %v684 = vmul.f32 %v666, %v683
        %v685 = vadd.f32 %v684, 0.4994258
        %v686 = vmul.f32 %v666, %v685
        %v687 = vadd.f32 %v686, 1.0
        %v688 = vrcp.pop %v687
        %v689 = vmul.f32 %v687, %v688
        %v690 = vsub.f32 1.0, %v689
        %v691 = vmul.f32 %v688, %v690
        %v692 = vadd.f32 %v688, %v691
        %vm693 = vweird.f32 %v687
        %vm694 = vweird.f32 %v688
        %vm695 = vmor %vm693, %vm694
        %v696 = vsel %vm695, %v688, %v692
        %v697 = vand.u32 2147483647, %v687
        %vm698 = vcmp.eq.f32.partialorder %v697, 8.507059e+37
        %v699 = vand.u32 %v687, 2147483648
        %v700 = vor.u32 1.1754944e-38, %v699
        %v701 = vsel %vm698, %v700, %v696
        %v702 = vmul.f32 %v677, %v701
        %v703 = vmin.f32 %v702, 1.0
        %v704 = vmax.f32 %v703, -1.0
        %v705 = vmul.f32 %v595, %v595
        %v706 = vmin.f32 16.0, %v705
        %v707 = vmul.f32 %v706, 2.1237322e-06
        %v708 = vadd.f32 %v707, 0.00028619796
        %v709 = vmul.f32 %v706, %v708
        %v710 = vadd.f32 %v709, 0.0036580483
        %v711 = vmul.f32 %v706, %v710
        %v712 = vadd.f32 %v711, 0.05243302
        %v713 = vmul.f32 %v706, %v712
        %v714 = vadd.f32 %v713, 0.18741608
        %v715 = vmul.f32 %v706, %v714
        %v716 = vadd.f32 %v715, 1.1283791
        %v717 = vmul.f32 %v595, %v716
        %v718 = vmul.f32 %v706, 3.8918573e-05
        %v719 = vadd.f32 %v718, 0.001143296
        %v720 = vmul.f32 %v706, %v719
        %v721 = vadd.f32 %v720, 0.014752088
        %v722 = vmul.f32 %v706, %v721
        %v723 = vadd.f32 %v722, 0.112945676
        %v724 = vmul.f32 %v706, %v723
        %v725 = vadd.f32 %v724, 0.4994258
        %v726 = vmul.f32 %v706, %v725
        %v727 = vadd.f32 %v726, 1.0
        %v728 = vrcp.pop %v727
        %v729 = vmul.f32 %v727, %v728
        %v730 = vsub.f32 1.0, %v729
        %v731 = vmul.f32 %v728, %v730
        %v732 = vadd.f32 %v728, %v731
        %vm733 = vweird.f32 %v727
        %vm734 = vweird.f32 %v728
        %vm735 = vmor %vm733, %vm734
        %v736 = vsel %vm735, %v728, %v732
        %v737 = vand.u32 2147483647, %v727
        %vm738 = vcmp.eq.f32.partialorder %v737, 8.507059e+37
        %v739 = vand.u32 %v727, 2147483648
        %v740 = vor.u32 1.1754944e-38, %v739
        %v741 = vsel %vm738, %v740, %v736
        %v742 = vmul.f32 %v717, %v741
        %v743 = vmin.f32 %v742, 1.0
        %v744 = vmax.f32 %v743, -1.0
        %v745 = vmul.f32 %v596, %v596
        %v746 = vmin.f32 16.0, %v745
        %v747 = vmul.f32 %v746, 2.1237322e-06
        %v748 = vadd.f32 %v747, 0.00028619796
        %v749 = vmul.f32 %v746, %v748
        %v750 = vadd.f32 %v749, 0.0036580483
        %v751 = vmul.f32 %v746, %v750
        %v752 = vadd.f32 %v751, 0.05243302
        %v753 = vmul.f32 %v746, %v752
        %v754 = vadd.f32 %v753, 0.18741608
        %v755 = vmul.f32 %v746, %v754
        %v756 = vadd.f32 %v755, 1.1283791
        %v757 = vmul.f32 %v596, %v756
        %v758 = vmul.f32 %v746, 3.8918573e-05
        %v759 = vadd.f32 %v758, 0.001143296
        %v760 = vmul.f32 %v746, %v759
        %v761 = vadd.f32 %v760, 0.014752088
        %v762 = vmul.f32 %v746, %v761
        %v763 = vadd.f32 %v762, 0.112945676
        %v764 = vmul.f32 %v746, %v763
        %v765 = vadd.f32 %v764, 0.4994258
        %v766 = vmul.f32 %v746, %v765
        %v767 = vadd.f32 %v766, 1.0
        %v768 = vrcp.pop %v767
        %v769 = vmul.f32 %v767, %v768
        %v770 = vsub.f32 1.0, %v769
        %v771 = vmul.f32 %v768, %v770
        %v772 = vadd.f32 %v768, %v771
        %vm773 = vweird.f32 %v767
        %vm774 = vweird.f32 %v768
        %vm775 = vmor %vm773, %vm774
        %v776 = vsel %vm775, %v768, %v772
        %v777 = vand.u32 2147483647, %v767
        %vm778 = vcmp.eq.f32.partialorder %v777, 8.507059e+37
        %v779 = vand.u32 %v767, 2147483648
        %v780 = vor.u32 1.1754944e-38, %v779
        %v781 = vsel %vm778, %v780, %v776
        %v782 = vmul.f32 %v757, %v781
        %v783 = vmin.f32 %v782, 1.0
        %v784 = vmax.f32 %v783, -1.0
        %v785 = vmul.f32 %v597, %v597
        %v786 = vmin.f32 16.0, %v785
        %v787 = vmul.f32 %v786, 2.1237322e-06
        %v788 = vadd.f32 %v787, 0.00028619796
        %v789 = vmul.f32 %v786, %v788
        %v790 = vadd.f32 %v789, 0.0036580483
        %v791 = vmul.f32 %v786, %v790
        %v792 = vadd.f32 %v791, 0.05243302
        %v793 = vmul.f32 %v786, %v792
        %v794 = vadd.f32 %v793, 0.18741608
        %v795 = vmul.f32 %v786, %v794
        %v796 = vadd.f32 %v795, 1.1283791
        %v797 = vmul.f32 %v597, %v796
        %v798 = vmul.f32 %v786, 3.8918573e-05
        %v799 = vadd.f32 %v798, 0.001143296
        %v800 = vmul.f32 %v786, %v799
        %v801 = vadd.f32 %v800, 0.014752088
        %v802 = vmul.f32 %v786, %v801
        %v803 = vadd.f32 %v802, 0.112945676
        %v804 = vmul.f32 %v786, %v803
        %v805 = vadd.f32 %v804, 0.4994258
        %v806 = vmul.f32 %v786, %v805
        %v807 = vadd.f32 %v806, 1.0
        %v808 = vrcp.pop %v807
        %v809 = vmul.f32 %v807, %v808
        %v810 = vsub.f32 1.0, %v809
        %v811 = vmul.f32 %v808, %v810
        %v812 = vadd.f32 %v808, %v811
        %vm813 = vweird.f32 %v807
        %vm814 = vweird.f32 %v808
        %vm815 = vmor %vm813, %vm814
        %v816 = vsel %vm815, %v808, %v812
        %v817 = vand.u32 2147483647, %v807
        %vm818 = vcmp.eq.f32.partialorder %v817, 8.507059e+37
        %v819 = vand.u32 %v807, 2147483648
        %v820 = vor.u32 1.1754944e-38, %v819
        %v821 = vsel %vm818, %v820, %v816
        %v822 = vmul.f32 %v797, %v821
        %v823 = vmin.f32 %v822, 1.0
        %v824 = vmax.f32 %v823, -1.0
        %v825 = vmul.f32 %v598, %v598
        %v826 = vmin.f32 16.0, %v825
        %v827 = vmul.f32 %v826, 2.1237322e-06
        %v828 = vadd.f32 %v827, 0.00028619796
        %v829 = vmul.f32 %v826, %v828
        %v830 = vadd.f32 %v829, 0.0036580483
        %v831 = vmul.f32 %v826, %v830
        %v832 = vadd.f32 %v831, 0.05243302
        %v833 = vmul.f32 %v826, %v832
        %v834 = vadd.f32 %v833, 0.18741608
        %v835 = vmul.f32 %v826, %v834
        %v836 = vadd.f32 %v835, 1.1283791
        %v837 = vmul.f32 %v598, %v836
        %v838 = vmul.f32 %v826, 3.8918573e-05
        %v839 = vadd.f32 %v838, 0.001143296
        %v840 = vmul.f32 %v826, %v839
        %v841 = vadd.f32 %v840, 0.014752088
        %v842 = vmul.f32 %v826, %v841
        %v843 = vadd.f32 %v842, 0.112945676
        %v844 = vmul.f32 %v826, %v843
        %v845 = vadd.f32 %v844, 0.4994258
        %v846 = vmul.f32 %v826, %v845
        %v847 = vadd.f32 %v846, 1.0
        %v848 = vrcp.pop %v847
        %v849 = vmul.f32 %v847, %v848
        %v850 = vsub.f32 1.0, %v849
        %v851 = vmul.f32 %v848, %v850
        %v852 = vadd.f32 %v848, %v851
        %vm853 = vweird.f32 %v847
        %vm854 = vweird.f32 %v848
        %vm855 = vmor %vm853, %vm854
        %v856 = vsel %vm855, %v848, %v852
        %v857 = vand.u32 2147483647, %v847
        %vm858 = vcmp.eq.f32.partialorder %v857, 8.507059e+37
        %v859 = vand.u32 %v847, 2147483648
        %v860 = vor.u32 1.1754944e-38, %v859
        %v861 = vsel %vm858, %v860, %v856
        %v862 = vmul.f32 %v837, %v861
        %v863 = vmin.f32 %v862, 1.0
        %v864 = vmax.f32 %v863, -1.0
        %v865 = vmul.f32 %v599, %v599
        %v866 = vmin.f32 16.0, %v865
        %v867 = vmul.f32 %v866, 2.1237322e-06
        %v868 = vadd.f32 %v867, 0.00028619796
        %v869 = vmul.f32 %v866, %v868
        %v870 = vadd.f32 %v869, 0.0036580483
        %v871 = vmul.f32 %v866, %v870
        %v872 = vadd.f32 %v871, 0.05243302
        %v873 = vmul.f32 %v866, %v872
        %v874 = vadd.f32 %v873, 0.18741608
        %v875 = vmul.f32 %v866, %v874
        %v876 = vadd.f32 %v875, 1.1283791
        %v877 = vmul.f32 %v599, %v876
        %v878 = vmul.f32 %v866, 3.8918573e-05
        %v879 = vadd.f32 %v878, 0.001143296
        %v880 = vmul.f32 %v866, %v879
        %v881 = vadd.f32 %v880, 0.014752088
        %v882 = vmul.f32 %v866, %v881
        %v883 = vadd.f32 %v882, 0.112945676
        %v884 = vmul.f32 %v866, %v883
        %v885 = vadd.f32 %v884, 0.4994258
        %v886 = vmul.f32 %v866, %v885
        %v887 = vadd.f32 %v886, 1.0
        %v888 = vrcp.pop %v887
        %v889 = vmul.f32 %v887, %v888
        %v890 = vsub.f32 1.0, %v889
        %v891 = vmul.f32 %v888, %v890
        %v892 = vadd.f32 %v888, %v891
        %vm893 = vweird.f32 %v887
        %vm894 = vweird.f32 %v888
        %vm895 = vmor %vm893, %vm894
        %v896 = vsel %vm895, %v888, %v892
        %v897 = vand.u32 2147483647, %v887
        %vm898 = vcmp.eq.f32.partialorder %v897, 8.507059e+37
        %v899 = vand.u32 %v887, 2147483648
        %v900 = vor.u32 1.1754944e-38, %v899
        %v901 = vsel %vm898, %v900, %v896
        %v902 = vmul.f32 %v877, %v901
        %v903 = vmin.f32 %v902, 1.0
        %v904 = vmax.f32 %v903, -1.0
        %v905 = vmul.f32 %v600, %v600
        %v906 = vmin.f32 16.0, %v905
        %v907 = vmul.f32 %v906, 2.1237322e-06
        %v908 = vadd.f32 %v907, 0.00028619796
        %v909 = vmul.f32 %v906, %v908
        %v910 = vadd.f32 %v909, 0.0036580483
        %v911 = vmul.f32 %v906, %v910
        %v912 = vadd.f32 %v911, 0.05243302
        %v913 = vmul.f32 %v906, %v912
        %v914 = vadd.f32 %v913, 0.18741608
        %v915 = vmul.f32 %v906, %v914
        %v916 = vadd.f32 %v915, 1.1283791
        %v917 = vmul.f32 %v600, %v916
        %v918 = vmul.f32 %v906, 3.8918573e-05
        %v919 = vadd.f32 %v918, 0.001143296
        %v920 = vmul.f32 %v906, %v919
        %v921 = vadd.f32 %v920, 0.014752088
        %v922 = vmul.f32 %v906, %v921
        %v923 = vadd.f32 %v922, 0.112945676
        %v924 = vmul.f32 %v906, %v923
        %v925 = vadd.f32 %v924, 0.4994258
        %v926 = vmul.f32 %v906, %v925
        %v927 = vadd.f32 %v926, 1.0
        %v928 = vrcp.pop %v927
        %v929 = vmul.f32 %v927, %v928
        %v930 = vsub.f32 1.0, %v929
        %v931 = vmul.f32 %v928, %v930
        %v932 = vadd.f32 %v928, %v931
        %vm933 = vweird.f32 %v927
        %vm934 = vweird.f32 %v928
        %vm935 = vmor %vm933, %vm934
        %v936 = vsel %vm935, %v928, %v932
        %v937 = vand.u32 2147483647, %v927
        %vm938 = vcmp.eq.f32.partialorder %v937, 8.507059e+37
        %v939 = vand.u32 %v927, 2147483648
        %v940 = vor.u32 1.1754944e-38, %v939
        %v941 = vsel %vm938, %v940, %v936
        %v942 = vmul.f32 %v917, %v941
        %v943 = vmin.f32 %v942, 1.0
        %v944 = vmax.f32 %v943, -1.0
        %v945 = vmul.f32 %v601, %v601
        %v946 = vmin.f32 16.0, %v945
        %v947 = vmul.f32 %v946, 2.1237322e-06
        %v948 = vadd.f32 %v947, 0.00028619796
        %v949 = vmul.f32 %v946, %v948
        %v950 = vadd.f32 %v949, 0.0036580483
        %v951 = vmul.f32 %v946, %v950
        %v952 = vadd.f32 %v951, 0.05243302
        %v953 = vmul.f32 %v946, %v952
        %v954 = vadd.f32 %v953, 0.18741608
        %v955 = vmul.f32 %v946, %v954
        %v956 = vadd.f32 %v955, 1.1283791
        %v957 = vmul.f32 %v601, %v956
        %v958 = vmul.f32 %v946, 3.8918573e-05
        %v959 = vadd.f32 %v958, 0.001143296
        %v960 = vmul.f32 %v946, %v959
        %v961 = vadd.f32 %v960, 0.014752088
        %v962 = vmul.f32 %v946, %v961
        %v963 = vadd.f32 %v962, 0.112945676
        %v964 = vmul.f32 %v946, %v963
        %v965 = vadd.f32 %v964, 0.4994258
        %v966 = vmul.f32 %v946, %v965
        %v967 = vadd.f32 %v966, 1.0
        %v968 = vrcp.pop %v967
        %v969 = vmul.f32 %v967, %v968
        %v970 = vsub.f32 1.0, %v969
        %v971 = vmul.f32 %v968, %v970
        %v972 = vadd.f32 %v968, %v971
        %vm973 = vweird.f32 %v967
        %vm974 = vweird.f32 %v968
        %vm975 = vmor %vm973, %vm974
        %v976 = vsel %vm975, %v968, %v972
        %v977 = vand.u32 2147483647, %v967
        %vm978 = vcmp.eq.f32.partialorder %v977, 8.507059e+37
        %v979 = vand.u32 %v967, 2147483648
        %v980 = vor.u32 1.1754944e-38, %v979
        %v981 = vsel %vm978, %v980, %v976
        %v982 = vmul.f32 %v957, %v981
        %v983 = vmin.f32 %v982, 1.0
        %v984 = vmax.f32 %v983, -1.0
        %v985 = vmul.f32 %v602, %v602
        %v986 = vmin.f32 16.0, %v985
        %v987 = vmul.f32 %v986, 2.1237322e-06
        %v988 = vadd.f32 %v987, 0.00028619796
        %v989 = vmul.f32 %v986, %v988
        %v990 = vadd.f32 %v989, 0.0036580483
        %v991 = vmul.f32 %v986, %v990
        %v992 = vadd.f32 %v991, 0.05243302
        %v993 = vmul.f32 %v986, %v992
        %v994 = vadd.f32 %v993, 0.18741608
        %v995 = vmul.f32 %v986, %v994
        %v996 = vadd.f32 %v995, 1.1283791
        %v997 = vmul.f32 %v602, %v996
        %v998 = vmul.f32 %v986, 3.8918573e-05
        %v999 = vadd.f32 %v998, 0.001143296
        %v1000 = vmul.f32 %v986, %v999
        %v1001 = vadd.f32 %v1000, 0.014752088
        %v1002 = vmul.f32 %v986, %v1001
        %v1003 = vadd.f32 %v1002, 0.112945676
        %v1004 = vmul.f32 %v986, %v1003
        %v1005 = vadd.f32 %v1004, 0.4994258
        %v1006 = vmul.f32 %v986, %v1005
        %v1007 = vadd.f32 %v1006, 1.0
        %v1008 = vrcp.pop %v1007
        %v1009 = vmul.f32 %v1007, %v1008
        %v1010 = vsub.f32 1.0, %v1009
        %v1011 = vmul.f32 %v1008, %v1010
        %v1012 = vadd.f32 %v1008, %v1011
        %vm1013 = vweird.f32 %v1007
        %vm1014 = vweird.f32 %v1008
        %vm1015 = vmor %vm1013, %vm1014
        %v1016 = vsel %vm1015, %v1008, %v1012
        %v1017 = vand.u32 2147483647, %v1007
        %vm1018 = vcmp.eq.f32.partialorder %v1017, 8.507059e+37
        %v1019 = vand.u32 %v1007, 2147483648
        %v1020 = vor.u32 1.1754944e-38, %v1019
        %v1021 = vsel %vm1018, %v1020, %v1016
        %v1022 = vmul.f32 %v997, %v1021
        %v1023 = vmin.f32 %v1022, 1.0
        %v1024 = vmax.f32 %v1023, -1.0
        %v1025 = vmul.f32 %v603, %v603
        %v1026 = vmin.f32 16.0, %v1025
        %v1027 = vmul.f32 %v1026, 2.1237322e-06
        %v1028 = vadd.f32 %v1027, 0.00028619796
        %v1029 = vmul.f32 %v1026, %v1028
        %v1030 = vadd.f32 %v1029, 0.0036580483
        %v1031 = vmul.f32 %v1026, %v1030
        %v1032 = vadd.f32 %v1031, 0.05243302
        %v1033 = vmul.f32 %v1026, %v1032
        %v1034 = vadd.f32 %v1033, 0.18741608
        %v1035 = vmul.f32 %v1026, %v1034
        %v1036 = vadd.f32 %v1035, 1.1283791
        %v1037 = vmul.f32 %v603, %v1036
        %v1038 = vmul.f32 %v1026, 3.8918573e-05
        %v1039 = vadd.f32 %v1038, 0.001143296
        %v1040 = vmul.f32 %v1026, %v1039
        %v1041 = vadd.f32 %v1040, 0.014752088
        %v1042 = vmul.f32 %v1026, %v1041
        %v1043 = vadd.f32 %v1042, 0.112945676
        %v1044 = vmul.f32 %v1026, %v1043
        %v1045 = vadd.f32 %v1044, 0.4994258
        %v1046 = vmul.f32 %v1026, %v1045
        %v1047 = vadd.f32 %v1046, 1.0
        %v1048 = vrcp.pop %v1047
        %v1049 = vmul.f32 %v1047, %v1048
        %v1050 = vsub.f32 1.0, %v1049
        %v1051 = vmul.f32 %v1048, %v1050
        %v1052 = vadd.f32 %v1048, %v1051
        %vm1053 = vweird.f32 %v1047
        %vm1054 = vweird.f32 %v1048
        %vm1055 = vmor %vm1053, %vm1054
        %v1056 = vsel %vm1055, %v1048, %v1052
        %v1057 = vand.u32 2147483647, %v1047
        %vm1058 = vcmp.eq.f32.partialorder %v1057, 8.507059e+37
        %v1059 = vand.u32 %v1047, 2147483648
        %v1060 = vor.u32 1.1754944e-38, %v1059
        %v1061 = vsel %vm1058, %v1060, %v1056
        %v1062 = vmul.f32 %v1037, %v1061
        %v1063 = vmin.f32 %v1062, 1.0
        %v1064 = vmax.f32 %v1063, -1.0
        %v1065 = vmul.f32 %v604, %v604
        %v1066 = vmin.f32 16.0, %v1065
        %v1067 = vmul.f32 %v1066, 2.1237322e-06
        %v1068 = vadd.f32 %v1067, 0.00028619796
        %v1069 = vmul.f32 %v1066, %v1068
        %v1070 = vadd.f32 %v1069, 0.0036580483
        %v1071 = vmul.f32 %v1066, %v1070
        %v1072 = vadd.f32 %v1071, 0.05243302
        %v1073 = vmul.f32 %v1066, %v1072
        %v1074 = vadd.f32 %v1073, 0.18741608
        %v1075 = vmul.f32 %v1066, %v1074
        %v1076 = vadd.f32 %v1075, 1.1283791
        %v1077 = vmul.f32 %v604, %v1076
        %v1078 = vmul.f32 %v1066, 3.8918573e-05
        %v1079 = vadd.f32 %v1078, 0.001143296
        %v1080 = vmul.f32 %v1066, %v1079
        %v1081 = vadd.f32 %v1080, 0.014752088
        %v1082 = vmul.f32 %v1066, %v1081
        %v1083 = vadd.f32 %v1082, 0.112945676
        %v1084 = vmul.f32 %v1066, %v1083
        %v1085 = vadd.f32 %v1084, 0.4994258
        %v1086 = vmul.f32 %v1066, %v1085
        %v1087 = vadd.f32 %v1086, 1.0
        %v1088 = vrcp.pop %v1087
        %v1089 = vmul.f32 %v1087, %v1088
        %v1090 = vsub.f32 1.0, %v1089
        %v1091 = vmul.f32 %v1088, %v1090
        %v1092 = vadd.f32 %v1088, %v1091
        %vm1093 = vweird.f32 %v1087
        %vm1094 = vweird.f32 %v1088
        %vm1095 = vmor %vm1093, %vm1094
        %v1096 = vsel %vm1095, %v1088, %v1092
        %v1097 = vand.u32 2147483647, %v1087
        %vm1098 = vcmp.eq.f32.partialorder %v1097, 8.507059e+37
        %v1099 = vand.u32 %v1087, 2147483648
        %v1100 = vor.u32 1.1754944e-38, %v1099
        %v1101 = vsel %vm1098, %v1100, %v1096
        %v1102 = vmul.f32 %v1077, %v1101
        %v1103 = vmin.f32 %v1102, 1.0
        %v1104 = vmax.f32 %v1103, -1.0
        %v1105 = vmul.f32 %v605, %v605
        %v1106 = vmin.f32 16.0, %v1105
        %v1107 = vmul.f32 %v1106, 2.1237322e-06
        %v1108 = vadd.f32 %v1107, 0.00028619796
        %v1109 = vmul.f32 %v1106, %v1108
        %v1110 = vadd.f32 %v1109, 0.0036580483
        %v1111 = vmul.f32 %v1106, %v1110
        %v1112 = vadd.f32 %v1111, 0.05243302
        %v1113 = vmul.f32 %v1106, %v1112
        %v1114 = vadd.f32 %v1113, 0.18741608
        %v1115 = vmul.f32 %v1106, %v1114
        %v1116 = vadd.f32 %v1115, 1.1283791
        %v1117 = vmul.f32 %v605, %v1116
        %v1118 = vmul.f32 %v1106, 3.8918573e-05
        %v1119 = vadd.f32 %v1118, 0.001143296
        %v1120 = vmul.f32 %v1106, %v1119
        %v1121 = vadd.f32 %v1120, 0.014752088
        %v1122 = vmul.f32 %v1106, %v1121
        %v1123 = vadd.f32 %v1122, 0.112945676
        %v1124 = vmul.f32 %v1106, %v1123
        %v1125 = vadd.f32 %v1124, 0.4994258
        %v1126 = vmul.f32 %v1106, %v1125
        %v1127 = vadd.f32 %v1126, 1.0
        %v1128 = vrcp.pop %v1127
        %v1129 = vmul.f32 %v1127, %v1128
        %v1130 = vsub.f32 1.0, %v1129
        %v1131 = vmul.f32 %v1128, %v1130
        %v1132 = vadd.f32 %v1128, %v1131
        %vm1133 = vweird.f32 %v1127
        %vm1134 = vweird.f32 %v1128
        %vm1135 = vmor %vm1133, %vm1134
        %v1136 = vsel %vm1135, %v1128, %v1132
        %v1137 = vand.u32 2147483647, %v1127
        %vm1138 = vcmp.eq.f32.partialorder %v1137, 8.507059e+37
        %v1139 = vand.u32 %v1127, 2147483648
        %v1140 = vor.u32 1.1754944e-38, %v1139
        %v1141 = vsel %vm1138, %v1140, %v1136
        %v1142 = vmul.f32 %v1117, %v1141
        %v1143 = vmin.f32 %v1142, 1.0
        %v1144 = vmax.f32 %v1143, -1.0
        %v1145 = vmul.f32 %v606, %v606
        %v1146 = vmin.f32 16.0, %v1145
        %v1147 = vmul.f32 %v1146, 2.1237322e-06
        %v1148 = vadd.f32 %v1147, 0.00028619796
        %v1149 = vmul.f32 %v1146, %v1148
        %v1150 = vadd.f32 %v1149, 0.0036580483
        %v1151 = vmul.f32 %v1146, %v1150
        %v1152 = vadd.f32 %v1151, 0.05243302
        %v1153 = vmul.f32 %v1146, %v1152
        %v1154 = vadd.f32 %v1153, 0.18741608
        %v1155 = vmul.f32 %v1146, %v1154
        %v1156 = vadd.f32 %v1155, 1.1283791
        %v1157 = vmul.f32 %v606, %v1156
        %v1158 = vmul.f32 %v1146, 3.8918573e-05
        %v1159 = vadd.f32 %v1158, 0.001143296
        %v1160 = vmul.f32 %v1146, %v1159
        %v1161 = vadd.f32 %v1160, 0.014752088
        %v1162 = vmul.f32 %v1146, %v1161
        %v1163 = vadd.f32 %v1162, 0.112945676
        %v1164 = vmul.f32 %v1146, %v1163
        %v1165 = vadd.f32 %v1164, 0.4994258
        %v1166 = vmul.f32 %v1146, %v1165
        %v1167 = vadd.f32 %v1166, 1.0
        %v1168 = vrcp.pop %v1167
        %v1169 = vmul.f32 %v1167, %v1168
        %v1170 = vsub.f32 1.0, %v1169
        %v1171 = vmul.f32 %v1168, %v1170
        %v1172 = vadd.f32 %v1168, %v1171
        %vm1173 = vweird.f32 %v1167
        %vm1174 = vweird.f32 %v1168
        %vm1175 = vmor %vm1173, %vm1174
        %v1176 = vsel %vm1175, %v1168, %v1172
        %v1177 = vand.u32 2147483647, %v1167
        %vm1178 = vcmp.eq.f32.partialorder %v1177, 8.507059e+37
        %v1179 = vand.u32 %v1167, 2147483648
        %v1180 = vor.u32 1.1754944e-38, %v1179
        %v1181 = vsel %vm1178, %v1180, %v1176
        %v1182 = vmul.f32 %v1157, %v1181
        %v1183 = vmin.f32 %v1182, 1.0
        %v1184 = vmax.f32 %v1183, -1.0
        %v1185 = vmul.f32 %v607, %v607
        %v1186 = vmin.f32 16.0, %v1185
        %v1187 = vmul.f32 %v1186, 2.1237322e-06
        %v1188 = vadd.f32 %v1187, 0.00028619796
        %v1189 = vmul.f32 %v1186, %v1188
        %v1190 = vadd.f32 %v1189, 0.0036580483
        %v1191 = vmul.f32 %v1186, %v1190
        %v1192 = vadd.f32 %v1191, 0.05243302
        %v1193 = vmul.f32 %v1186, %v1192
        %v1194 = vadd.f32 %v1193, 0.18741608
        %v1195 = vmul.f32 %v1186, %v1194
        %v1196 = vadd.f32 %v1195, 1.1283791
        %v1197 = vmul.f32 %v607, %v1196
        %v1198 = vmul.f32 %v1186, 3.8918573e-05
        %v1199 = vadd.f32 %v1198, 0.001143296
        %v1200 = vmul.f32 %v1186, %v1199
        %v1201 = vadd.f32 %v1200, 0.014752088
        %v1202 = vmul.f32 %v1186, %v1201
        %v1203 = vadd.f32 %v1202, 0.112945676
        %v1204 = vmul.f32 %v1186, %v1203
        %v1205 = vadd.f32 %v1204, 0.4994258
        %v1206 = vmul.f32 %v1186, %v1205
        %v1207 = vadd.f32 %v1206, 1.0
        %v1208 = vrcp.pop %v1207
        %v1209 = vmul.f32 %v1207, %v1208
        %v1210 = vsub.f32 1.0, %v1209
        %v1211 = vmul.f32 %v1208, %v1210
        %v1212 = vadd.f32 %v1208, %v1211
        %vm1213 = vweird.f32 %v1207
        %vm1214 = vweird.f32 %v1208
        %vm1215 = vmor %vm1213, %vm1214
        %v1216 = vsel %vm1215, %v1208, %v1212
        %v1217 = vand.u32 2147483647, %v1207
        %vm1218 = vcmp.eq.f32.partialorder %v1217, 8.507059e+37
        %v1219 = vand.u32 %v1207, 2147483648
        %v1220 = vor.u32 1.1754944e-38, %v1219
        %v1221 = vsel %vm1218, %v1220, %v1216
        %v1222 = vmul.f32 %v1197, %v1221
        %v1223 = vmin.f32 %v1222, 1.0
        %v1224 = vmax.f32 %v1223, -1.0
        %v1225 = vmul.f32 %v608, %v608
        %v1226 = vmin.f32 16.0, %v1225
        %v1227 = vmul.f32 %v1226, 2.1237322e-06
        %v1228 = vadd.f32 %v1227, 0.00028619796
        %v1229 = vmul.f32 %v1226, %v1228
        %v1230 = vadd.f32 %v1229, 0.0036580483
        %v1231 = vmul.f32 %v1226, %v1230
        %v1232 = vadd.f32 %v1231, 0.05243302
        %v1233 = vmul.f32 %v1226, %v1232
        %v1234 = vadd.f32 %v1233, 0.18741608
        %v1235 = vmul.f32 %v1226, %v1234
        %v1236 = vadd.f32 %v1235, 1.1283791
        %v1237 = vmul.f32 %v608, %v1236
        %v1238 = vmul.f32 %v1226, 3.8918573e-05
        %v1239 = vadd.f32 %v1238, 0.001143296
        %v1240 = vmul.f32 %v1226, %v1239
        %v1241 = vadd.f32 %v1240, 0.014752088
        %v1242 = vmul.f32 %v1226, %v1241
        %v1243 = vadd.f32 %v1242, 0.112945676
        %v1244 = vmul.f32 %v1226, %v1243
        %v1245 = vadd.f32 %v1244, 0.4994258
        %v1246 = vmul.f32 %v1226, %v1245
        %v1247 = vadd.f32 %v1246, 1.0
        %v1248 = vrcp.pop %v1247
        %v1249 = vmul.f32 %v1247, %v1248
        %v1250 = vsub.f32 1.0, %v1249
        %v1251 = vmul.f32 %v1248, %v1250
        %v1252 = vadd.f32 %v1248, %v1251
        %vm1253 = vweird.f32 %v1247
        %vm1254 = vweird.f32 %v1248
        %vm1255 = vmor %vm1253, %vm1254
        %v1256 = vsel %vm1255, %v1248, %v1252
        %v1257 = vand.u32 2147483647, %v1247
        %vm1258 = vcmp.eq.f32.partialorder %v1257, 8.507059e+37
        %v1259 = vand.u32 %v1247, 2147483648
        %v1260 = vor.u32 1.1754944e-38, %v1259
        %v1261 = vsel %vm1258, %v1260, %v1256
        %v1262 = vmul.f32 %v1237, %v1261
        %v1263 = vmin.f32 %v1262, 1.0
        %v1264 = vmax.f32 %v1263, -1.0
        %v1265 = vmul.f32 %v609, %v609
        %v1266 = vmin.f32 16.0, %v1265
        %v1267 = vmul.f32 %v1266, 2.1237322e-06
        %v1268 = vadd.f32 %v1267, 0.00028619796
        %v1269 = vmul.f32 %v1266, %v1268
        %v1270 = vadd.f32 %v1269, 0.0036580483
        %v1271 = vmul.f32 %v1266, %v1270
        %v1272 = vadd.f32 %v1271, 0.05243302
        %v1273 = vmul.f32 %v1266, %v1272
        %v1274 = vadd.f32 %v1273, 0.18741608
        %v1275 = vmul.f32 %v1266, %v1274
        %v1276 = vadd.f32 %v1275, 1.1283791
        %v1277 = vmul.f32 %v609, %v1276
        %v1278 = vmul.f32 %v1266, 3.8918573e-05
        %v1279 = vadd.f32 %v1278, 0.001143296
        %v1280 = vmul.f32 %v1266, %v1279
        %v1281 = vadd.f32 %v1280, 0.014752088
        %v1282 = vmul.f32 %v1266, %v1281
        %v1283 = vadd.f32 %v1282, 0.112945676
        %v1284 = vmul.f32 %v1266, %v1283
        %v1285 = vadd.f32 %v1284, 0.4994258
        %v1286 = vmul.f32 %v1266, %v1285
        %v1287 = vadd.f32 %v1286, 1.0
        %v1288 = vrcp.pop %v1287
        %v1289 = vmul.f32 %v1287, %v1288
        %v1290 = vsub.f32 1.0, %v1289
        %v1291 = vmul.f32 %v1288, %v1290
        %v1292 = vadd.f32 %v1288, %v1291
        %vm1293 = vweird.f32 %v1287
        %vm1294 = vweird.f32 %v1288
        %vm1295 = vmor %vm1293, %vm1294
        %v1296 = vsel %vm1295, %v1288, %v1292
        %v1297 = vand.u32 2147483647, %v1287
        %vm1298 = vcmp.eq.f32.partialorder %v1297, 8.507059e+37
        %v1299 = vand.u32 %v1287, 2147483648
        %v1300 = vor.u32 1.1754944e-38, %v1299
        %v1301 = vsel %vm1298, %v1300, %v1296
        %v1302 = vmul.f32 %v1277, %v1301
        %v1303 = vmin.f32 %v1302, 1.0
        %v1304 = vmax.f32 %v1303, -1.0
        %v1305 = vmul.f32 %v610, %v610
        %v1306 = vmin.f32 16.0, %v1305
        %v1307 = vmul.f32 %v1306, 2.1237322e-06
        %v1308 = vadd.f32 %v1307, 0.00028619796
        %v1309 = vmul.f32 %v1306, %v1308
        %v1310 = vadd.f32 %v1309, 0.0036580483
        %v1311 = vmul.f32 %v1306, %v1310
        %v1312 = vadd.f32 %v1311, 0.05243302
        %v1313 = vmul.f32 %v1306, %v1312
        %v1314 = vadd.f32 %v1313, 0.18741608
        %v1315 = vmul.f32 %v1306, %v1314
        %v1316 = vadd.f32 %v1315, 1.1283791
        %v1317 = vmul.f32 %v610, %v1316
        %v1318 = vmul.f32 %v1306, 3.8918573e-05
        %v1319 = vadd.f32 %v1318, 0.001143296
        %v1320 = vmul.f32 %v1306, %v1319
        %v1321 = vadd.f32 %v1320, 0.014752088
        %v1322 = vmul.f32 %v1306, %v1321
        %v1323 = vadd.f32 %v1322, 0.112945676
        %v1324 = vmul.f32 %v1306, %v1323
        %v1325 = vadd.f32 %v1324, 0.4994258
        %v1326 = vmul.f32 %v1306, %v1325
        %v1327 = vadd.f32 %v1326, 1.0
        %v1328 = vrcp.pop %v1327
        %v1329 = vmul.f32 %v1327, %v1328
        %v1330 = vsub.f32 1.0, %v1329
        %v1331 = vmul.f32 %v1328, %v1330
        %v1332 = vadd.f32 %v1328, %v1331
        %vm1333 = vweird.f32 %v1327
        %vm1334 = vweird.f32 %v1328
        %vm1335 = vmor %vm1333, %vm1334
        %v1336 = vsel %vm1335, %v1328, %v1332
        %v1337 = vand.u32 2147483647, %v1327
        %vm1338 = vcmp.eq.f32.partialorder %v1337, 8.507059e+37
        %v1339 = vand.u32 %v1327, 2147483648
        %v1340 = vor.u32 1.1754944e-38, %v1339
        %v1341 = vsel %vm1338, %v1340, %v1336
        %v1342 = vmul.f32 %v1317, %v1341
        %v1343 = vmin.f32 %v1342, 1.0
        %v1344 = vmax.f32 %v1343, -1.0
        %v1345 = vmul.f32 %v611, %v611
        %v1346 = vmin.f32 16.0, %v1345
        %v1347 = vmul.f32 %v1346, 2.1237322e-06
        %v1348 = vadd.f32 %v1347, 0.00028619796
        %v1349 = vmul.f32 %v1346, %v1348
        %v1350 = vadd.f32 %v1349, 0.0036580483
        %v1351 = vmul.f32 %v1346, %v1350
        %v1352 = vadd.f32 %v1351, 0.05243302
        %v1353 = vmul.f32 %v1346, %v1352
        %v1354 = vadd.f32 %v1353, 0.18741608
        %v1355 = vmul.f32 %v1346, %v1354
        %v1356 = vadd.f32 %v1355, 1.1283791
        %v1357 = vmul.f32 %v611, %v1356
        %v1358 = vmul.f32 %v1346, 3.8918573e-05
        %v1359 = vadd.f32 %v1358, 0.001143296
        %v1360 = vmul.f32 %v1346, %v1359
        %v1361 = vadd.f32 %v1360, 0.014752088
        %v1362 = vmul.f32 %v1346, %v1361
        %v1363 = vadd.f32 %v1362, 0.112945676
        %v1364 = vmul.f32 %v1346, %v1363
        %v1365 = vadd.f32 %v1364, 0.4994258
        %v1366 = vmul.f32 %v1346, %v1365
        %v1367 = vadd.f32 %v1366, 1.0
        %v1368 = vrcp.pop %v1367
        %v1369 = vmul.f32 %v1367, %v1368
        %v1370 = vsub.f32 1.0, %v1369
        %v1371 = vmul.f32 %v1368, %v1370
        %v1372 = vadd.f32 %v1368, %v1371
        %vm1373 = vweird.f32 %v1367
        %vm1374 = vweird.f32 %v1368
        %vm1375 = vmor %vm1373, %vm1374
        %v1376 = vsel %vm1375, %v1368, %v1372
        %v1377 = vand.u32 2147483647, %v1367
        %vm1378 = vcmp.eq.f32.partialorder %v1377, 8.507059e+37
        %v1379 = vand.u32 %v1367, 2147483648
        %v1380 = vor.u32 1.1754944e-38, %v1379
        %v1381 = vsel %vm1378, %v1380, %v1376
        %v1382 = vmul.f32 %v1357, %v1381
        %v1383 = vmin.f32 %v1382, 1.0
        %v1384 = vmax.f32 %v1383, -1.0
        %v1385 = vmul.f32 %v612, %v612
        %v1386 = vmin.f32 16.0, %v1385
        %v1387 = vmul.f32 %v1386, 2.1237322e-06
        %v1388 = vadd.f32 %v1387, 0.00028619796
        %v1389 = vmul.f32 %v1386, %v1388
        %v1390 = vadd.f32 %v1389, 0.0036580483
        %v1391 = vmul.f32 %v1386, %v1390
        %v1392 = vadd.f32 %v1391, 0.05243302
        %v1393 = vmul.f32 %v1386, %v1392
        %v1394 = vadd.f32 %v1393, 0.18741608
        %v1395 = vmul.f32 %v1386, %v1394
        %v1396 = vadd.f32 %v1395, 1.1283791
        %v1397 = vmul.f32 %v612, %v1396
        %v1398 = vmul.f32 %v1386, 3.8918573e-05
        %v1399 = vadd.f32 %v1398, 0.001143296
        %v1400 = vmul.f32 %v1386, %v1399
        %v1401 = vadd.f32 %v1400, 0.014752088
        %v1402 = vmul.f32 %v1386, %v1401
        %v1403 = vadd.f32 %v1402, 0.112945676
        %v1404 = vmul.f32 %v1386, %v1403
        %v1405 = vadd.f32 %v1404, 0.4994258
        %v1406 = vmul.f32 %v1386, %v1405
        %v1407 = vadd.f32 %v1406, 1.0
        %v1408 = vrcp.pop %v1407
        %v1409 = vmul.f32 %v1407, %v1408
        %v1410 = vsub.f32 1.0, %v1409
        %v1411 = vmul.f32 %v1408, %v1410
        %v1412 = vadd.f32 %v1408, %v1411
        %vm1413 = vweird.f32 %v1407
        %vm1414 = vweird.f32 %v1408
        %vm1415 = vmor %vm1413, %vm1414
        %v1416 = vsel %vm1415, %v1408, %v1412
        %v1417 = vand.u32 2147483647, %v1407
        %vm1418 = vcmp.eq.f32.partialorder %v1417, 8.507059e+37
        %v1419 = vand.u32 %v1407, 2147483648
        %v1420 = vor.u32 1.1754944e-38, %v1419
        %v1421 = vsel %vm1418, %v1420, %v1416
        %v1422 = vmul.f32 %v1397, %v1421
        %v1423 = vmin.f32 %v1422, 1.0
        %v1424 = vmax.f32 %v1423, -1.0
        %v1425 = vmul.f32 %v613, %v613
        %v1426 = vmin.f32 16.0, %v1425
        %v1427 = vmul.f32 %v1426, 2.1237322e-06
        %v1428 = vadd.f32 %v1427, 0.00028619796
        %v1429 = vmul.f32 %v1426, %v1428
        %v1430 = vadd.f32 %v1429, 0.0036580483
        %v1431 = vmul.f32 %v1426, %v1430
        %v1432 = vadd.f32 %v1431, 0.05243302
        %v1433 = vmul.f32 %v1426, %v1432
        %v1434 = vadd.f32 %v1433, 0.18741608
        %v1435 = vmul.f32 %v1426, %v1434
        %v1436 = vadd.f32 %v1435, 1.1283791
        %v1437 = vmul.f32 %v613, %v1436
        %v1438 = vmul.f32 %v1426, 3.8918573e-05
        %v1439 = vadd.f32 %v1438, 0.001143296
        %v1440 = vmul.f32 %v1426, %v1439
        %v1441 = vadd.f32 %v1440, 0.014752088
        %v1442 = vmul.f32 %v1426, %v1441
        %v1443 = vadd.f32 %v1442, 0.112945676
        %v1444 = vmul.f32 %v1426, %v1443
        %v1445 = vadd.f32 %v1444, 0.4994258
        %v1446 = vmul.f32 %v1426, %v1445
        %v1447 = vadd.f32 %v1446, 1.0
        %v1448 = vrcp.pop %v1447
        %v1449 = vmul.f32 %v1447, %v1448
        %v1450 = vsub.f32 1.0, %v1449
        %v1451 = vmul.f32 %v1448, %v1450
        %v1452 = vadd.f32 %v1448, %v1451
        %vm1453 = vweird.f32 %v1447
        %vm1454 = vweird.f32 %v1448
        %vm1455 = vmor %vm1453, %vm1454
        %v1456 = vsel %vm1455, %v1448, %v1452
        %v1457 = vand.u32 2147483647, %v1447
        %vm1458 = vcmp.eq.f32.partialorder %v1457, 8.507059e+37
        %v1459 = vand.u32 %v1447, 2147483648
        %v1460 = vor.u32 1.1754944e-38, %v1459
        %v1461 = vsel %vm1458, %v1460, %v1456
        %v1462 = vmul.f32 %v1437, %v1461
        %v1463 = vmin.f32 %v1462, 1.0
        %v1464 = vmax.f32 %v1463, -1.0
        %v1465 = vmul.f32 %v614, %v614
        %v1466 = vmin.f32 16.0, %v1465
        %v1467 = vmul.f32 %v1466, 2.1237322e-06
        %v1468 = vadd.f32 %v1467, 0.00028619796
        %v1469 = vmul.f32 %v1466, %v1468
        %v1470 = vadd.f32 %v1469, 0.0036580483
        %v1471 = vmul.f32 %v1466, %v1470
        %v1472 = vadd.f32 %v1471, 0.05243302
        %v1473 = vmul.f32 %v1466, %v1472
        %v1474 = vadd.f32 %v1473, 0.18741608
        %v1475 = vmul.f32 %v1466, %v1474
        %v1476 = vadd.f32 %v1475, 1.1283791
        %v1477 = vmul.f32 %v614, %v1476
        %v1478 = vmul.f32 %v1466, 3.8918573e-05
        %v1479 = vadd.f32 %v1478, 0.001143296
        %v1480 = vmul.f32 %v1466, %v1479
        %v1481 = vadd.f32 %v1480, 0.014752088
        %v1482 = vmul.f32 %v1466, %v1481
        %v1483 = vadd.f32 %v1482, 0.112945676
        %v1484 = vmul.f32 %v1466, %v1483
        %v1485 = vadd.f32 %v1484, 0.4994258
        %v1486 = vmul.f32 %v1466, %v1485
        %v1487 = vadd.f32 %v1486, 1.0
        %v1488 = vrcp.pop %v1487
        %v1489 = vmul.f32 %v1487, %v1488
        %v1490 = vsub.f32 1.0, %v1489
        %v1491 = vmul.f32 %v1488, %v1490
        %v1492 = vadd.f32 %v1488, %v1491
        %vm1493 = vweird.f32 %v1487
        %vm1494 = vweird.f32 %v1488
        %vm1495 = vmor %vm1493, %vm1494
        %v1496 = vsel %vm1495, %v1488, %v1492
        %v1497 = vand.u32 2147483647, %v1487
        %vm1498 = vcmp.eq.f32.partialorder %v1497, 8.507059e+37
        %v1499 = vand.u32 %v1487, 2147483648
        %v1500 = vor.u32 1.1754944e-38, %v1499
        %v1501 = vsel %vm1498, %v1500, %v1496
        %v1502 = vmul.f32 %v1477, %v1501
        %v1503 = vmin.f32 %v1502, 1.0
        %v1504 = vmax.f32 %v1503, -1.0
        %v1505 = vmul.f32 %v615, %v615
        %v1506 = vmin.f32 16.0, %v1505
        %v1507 = vmul.f32 %v1506, 2.1237322e-06
        %v1508 = vadd.f32 %v1507, 0.00028619796
        %v1509 = vmul.f32 %v1506, %v1508
        %v1510 = vadd.f32 %v1509, 0.0036580483
        %v1511 = vmul.f32 %v1506, %v1510
        %v1512 = vadd.f32 %v1511, 0.05243302
        %v1513 = vmul.f32 %v1506, %v1512
        %v1514 = vadd.f32 %v1513, 0.18741608
        %v1515 = vmul.f32 %v1506, %v1514
        %v1516 = vadd.f32 %v1515, 1.1283791
        %v1517 = vmul.f32 %v615, %v1516
        %v1518 = vmul.f32 %v1506, 3.8918573e-05
        %v1519 = vadd.f32 %v1518, 0.001143296
        %v1520 = vmul.f32 %v1506, %v1519
        %v1521 = vadd.f32 %v1520, 0.014752088
        %v1522 = vmul.f32 %v1506, %v1521
        %v1523 = vadd.f32 %v1522, 0.112945676
        %v1524 = vmul.f32 %v1506, %v1523
        %v1525 = vadd.f32 %v1524, 0.4994258
        %v1526 = vmul.f32 %v1506, %v1525
        %v1527 = vadd.f32 %v1526, 1.0
        %v1528 = vrcp.pop %v1527
        %v1529 = vmul.f32 %v1527, %v1528
        %v1530 = vsub.f32 1.0, %v1529
        %v1531 = vmul.f32 %v1528, %v1530
        %v1532 = vadd.f32 %v1528, %v1531
        %vm1533 = vweird.f32 %v1527
        %vm1534 = vweird.f32 %v1528
        %vm1535 = vmor %vm1533, %vm1534
        %v1536 = vsel %vm1535, %v1528, %v1532
        %v1537 = vand.u32 2147483647, %v1527
        %vm1538 = vcmp.eq.f32.partialorder %v1537, 8.507059e+37
        %v1539 = vand.u32 %v1527, 2147483648
        %v1540 = vor.u32 1.1754944e-38, %v1539
        %v1541 = vsel %vm1538, %v1540, %v1536
        %v1542 = vmul.f32 %v1517, %v1541
        %v1543 = vmin.f32 %v1542, 1.0
        %v1544 = vmax.f32 %v1543, -1.0
        %v1545 = vmul.f32 %v616, %v616
        %v1546 = vmin.f32 16.0, %v1545
        %v1547 = vmul.f32 %v1546, 2.1237322e-06
        %v1548 = vadd.f32 %v1547, 0.00028619796
        %v1549 = vmul.f32 %v1546, %v1548
        %v1550 = vadd.f32 %v1549, 0.0036580483
        %v1551 = vmul.f32 %v1546, %v1550
        %v1552 = vadd.f32 %v1551, 0.05243302
        %v1553 = vmul.f32 %v1546, %v1552
        %v1554 = vadd.f32 %v1553, 0.18741608
        %v1555 = vmul.f32 %v1546, %v1554
        %v1556 = vadd.f32 %v1555, 1.1283791
        %v1557 = vmul.f32 %v616, %v1556
        %v1558 = vmul.f32 %v1546, 3.8918573e-05
        %v1559 = vadd.f32 %v1558, 0.001143296
        %v1560 = vmul.f32 %v1546, %v1559
        %v1561 = vadd.f32 %v1560, 0.014752088
        %v1562 = vmul.f32 %v1546, %v1561
        %v1563 = vadd.f32 %v1562, 0.112945676
        %v1564 = vmul.f32 %v1546, %v1563
        %v1565 = vadd.f32 %v1564, 0.4994258
        %v1566 = vmul.f32 %v1546, %v1565
        %v1567 = vadd.f32 %v1566, 1.0
        %v1568 = vrcp.pop %v1567
        %v1569 = vmul.f32 %v1567, %v1568
        %v1570 = vsub.f32 1.0, %v1569
        %v1571 = vmul.f32 %v1568, %v1570
        %v1572 = vadd.f32 %v1568, %v1571
        %vm1573 = vweird.f32 %v1567
        %vm1574 = vweird.f32 %v1568
        %vm1575 = vmor %vm1573, %vm1574
        %v1576 = vsel %vm1575, %v1568, %v1572
        %v1577 = vand.u32 2147483647, %v1567
        %vm1578 = vcmp.eq.f32.partialorder %v1577, 8.507059e+37
        %v1579 = vand.u32 %v1567, 2147483648
        %v1580 = vor.u32 1.1754944e-38, %v1579
        %v1581 = vsel %vm1578, %v1580, %v1576
        %v1582 = vmul.f32 %v1557, %v1581
        %v1583 = vmin.f32 %v1582, 1.0
        %v1584 = vmax.f32 %v1583, -1.0
        %v1585 = vmul.f32 %v617, %v617
        %v1586 = vmin.f32 16.0, %v1585
        %v1587 = vmul.f32 %v1586, 2.1237322e-06
        %v1588 = vadd.f32 %v1587, 0.00028619796
        %v1589 = vmul.f32 %v1586, %v1588
        %v1590 = vadd.f32 %v1589, 0.0036580483
        %v1591 = vmul.f32 %v1586, %v1590
        %v1592 = vadd.f32 %v1591, 0.05243302
        %v1593 = vmul.f32 %v1586, %v1592
        %v1594 = vadd.f32 %v1593, 0.18741608
        %v1595 = vmul.f32 %v1586, %v1594
        %v1596 = vadd.f32 %v1595, 1.1283791
        %v1597 = vmul.f32 %v617, %v1596
        %v1598 = vmul.f32 %v1586, 3.8918573e-05
        %v1599 = vadd.f32 %v1598, 0.001143296
        %v1600 = vmul.f32 %v1586, %v1599
        %v1601 = vadd.f32 %v1600, 0.014752088
        %v1602 = vmul.f32 %v1586, %v1601
        %v1603 = vadd.f32 %v1602, 0.112945676
        %v1604 = vmul.f32 %v1586, %v1603
        %v1605 = vadd.f32 %v1604, 0.4994258
        %v1606 = vmul.f32 %v1586, %v1605
        %v1607 = vadd.f32 %v1606, 1.0
        %v1608 = vrcp.pop %v1607
        %v1609 = vmul.f32 %v1607, %v1608
        %v1610 = vsub.f32 1.0, %v1609
        %v1611 = vmul.f32 %v1608, %v1610
        %v1612 = vadd.f32 %v1608, %v1611
        %vm1613 = vweird.f32 %v1607
        %vm1614 = vweird.f32 %v1608
        %vm1615 = vmor %vm1613, %vm1614
        %v1616 = vsel %vm1615, %v1608, %v1612
        %v1617 = vand.u32 2147483647, %v1607
        %vm1618 = vcmp.eq.f32.partialorder %v1617, 8.507059e+37
        %v1619 = vand.u32 %v1607, 2147483648
        %v1620 = vor.u32 1.1754944e-38, %v1619
        %v1621 = vsel %vm1618, %v1620, %v1616
        %v1622 = vmul.f32 %v1597, %v1621
        %v1623 = vmin.f32 %v1622, 1.0
        %v1624 = vmax.f32 %v1623, -1.0
        %v1625 = vmul.f32 %v618, %v618
        %v1626 = vmin.f32 16.0, %v1625
        %v1627 = vmul.f32 %v1626, 2.1237322e-06
        %v1628 = vadd.f32 %v1627, 0.00028619796
        %v1629 = vmul.f32 %v1626, %v1628
        %v1630 = vadd.f32 %v1629, 0.0036580483
        %v1631 = vmul.f32 %v1626, %v1630
        %v1632 = vadd.f32 %v1631, 0.05243302
        %v1633 = vmul.f32 %v1626, %v1632
        %v1634 = vadd.f32 %v1633, 0.18741608
        %v1635 = vmul.f32 %v1626, %v1634
        %v1636 = vadd.f32 %v1635, 1.1283791
        %v1637 = vmul.f32 %v618, %v1636
        %v1638 = vmul.f32 %v1626, 3.8918573e-05
        %v1639 = vadd.f32 %v1638, 0.001143296
        %v1640 = vmul.f32 %v1626, %v1639
        %v1641 = vadd.f32 %v1640, 0.014752088
        %v1642 = vmul.f32 %v1626, %v1641
        %v1643 = vadd.f32 %v1642, 0.112945676
        %v1644 = vmul.f32 %v1626, %v1643
        %v1645 = vadd.f32 %v1644, 0.4994258
        %v1646 = vmul.f32 %v1626, %v1645
        %v1647 = vadd.f32 %v1646, 1.0
        %v1648 = vrcp.pop %v1647
        %v1649 = vmul.f32 %v1647, %v1648
        %v1650 = vsub.f32 1.0, %v1649
        %v1651 = vmul.f32 %v1648, %v1650
        %v1652 = vadd.f32 %v1648, %v1651
        %vm1653 = vweird.f32 %v1647
        %vm1654 = vweird.f32 %v1648
        %vm1655 = vmor %vm1653, %vm1654
        %v1656 = vsel %vm1655, %v1648, %v1652
        %v1657 = vand.u32 2147483647, %v1647
        %vm1658 = vcmp.eq.f32.partialorder %v1657, 8.507059e+37
        %v1659 = vand.u32 %v1647, 2147483648
        %v1660 = vor.u32 1.1754944e-38, %v1659
        %v1661 = vsel %vm1658, %v1660, %v1656
        %v1662 = vmul.f32 %v1637, %v1661
        %v1663 = vmin.f32 %v1662, 1.0
        %v1664 = vmax.f32 %v1663, -1.0
        %v1665 = vmul.f32 %v619, %v619
        %v1666 = vmin.f32 16.0, %v1665
        %v1667 = vmul.f32 %v1666, 2.1237322e-06
        %v1668 = vadd.f32 %v1667, 0.00028619796
        %v1669 = vmul.f32 %v1666, %v1668
        %v1670 = vadd.f32 %v1669, 0.0036580483
        %v1671 = vmul.f32 %v1666, %v1670
        %v1672 = vadd.f32 %v1671, 0.05243302
        %v1673 = vmul.f32 %v1666, %v1672
        %v1674 = vadd.f32 %v1673, 0.18741608
        %v1675 = vmul.f32 %v1666, %v1674
        %v1676 = vadd.f32 %v1675, 1.1283791
        %v1677 = vmul.f32 %v619, %v1676
        %v1678 = vmul.f32 %v1666, 3.8918573e-05
        %v1679 = vadd.f32 %v1678, 0.001143296
        %v1680 = vmul.f32 %v1666, %v1679
        %v1681 = vadd.f32 %v1680, 0.014752088
        %v1682 = vmul.f32 %v1666, %v1681
        %v1683 = vadd.f32 %v1682, 0.112945676
        %v1684 = vmul.f32 %v1666, %v1683
        %v1685 = vadd.f32 %v1684, 0.4994258
        %v1686 = vmul.f32 %v1666, %v1685
        %v1687 = vadd.f32 %v1686, 1.0
        %v1688 = vrcp.pop %v1687
        %v1689 = vmul.f32 %v1687, %v1688
        %v1690 = vsub.f32 1.0, %v1689
        %v1691 = vmul.f32 %v1688, %v1690
        %v1692 = vadd.f32 %v1688, %v1691
        %vm1693 = vweird.f32 %v1687
        %vm1694 = vweird.f32 %v1688
        %vm1695 = vmor %vm1693, %vm1694
        %v1696 = vsel %vm1695, %v1688, %v1692
        %v1697 = vand.u32 2147483647, %v1687
        %vm1698 = vcmp.eq.f32.partialorder %v1697, 8.507059e+37
        %v1699 = vand.u32 %v1687, 2147483648
        %v1700 = vor.u32 1.1754944e-38, %v1699
        %v1701 = vsel %vm1698, %v1700, %v1696
        %v1702 = vmul.f32 %v1677, %v1701
        %v1703 = vmin.f32 %v1702, 1.0
        %v1704 = vmax.f32 %v1703, -1.0
        %v1705 = vmul.f32 %v620, %v620
        %v1706 = vmin.f32 16.0, %v1705
        %v1707 = vmul.f32 %v1706, 2.1237322e-06
        %v1708 = vadd.f32 %v1707, 0.00028619796
        %v1709 = vmul.f32 %v1706, %v1708
        %v1710 = vadd.f32 %v1709, 0.0036580483
        %v1711 = vmul.f32 %v1706, %v1710
        %v1712 = vadd.f32 %v1711, 0.05243302
        %v1713 = vmul.f32 %v1706, %v1712
        %v1714 = vadd.f32 %v1713, 0.18741608
        %v1715 = vmul.f32 %v1706, %v1714
        %v1716 = vadd.f32 %v1715, 1.1283791
        %v1717 = vmul.f32 %v620, %v1716
        %v1718 = vmul.f32 %v1706, 3.8918573e-05
        %v1719 = vadd.f32 %v1718, 0.001143296
        %v1720 = vmul.f32 %v1706, %v1719
        %v1721 = vadd.f32 %v1720, 0.014752088
        %v1722 = vmul.f32 %v1706, %v1721
        %v1723 = vadd.f32 %v1722, 0.112945676
        %v1724 = vmul.f32 %v1706, %v1723
        %v1725 = vadd.f32 %v1724, 0.4994258
        %v1726 = vmul.f32 %v1706, %v1725
        %v1727 = vadd.f32 %v1726, 1.0
        %v1728 = vrcp.pop %v1727
        %v1729 = vmul.f32 %v1727, %v1728
        %v1730 = vsub.f32 1.0, %v1729
        %v1731 = vmul.f32 %v1728, %v1730
        %v1732 = vadd.f32 %v1728, %v1731
        %vm1733 = vweird.f32 %v1727
        %vm1734 = vweird.f32 %v1728
        %vm1735 = vmor %vm1733, %vm1734
        %v1736 = vsel %vm1735, %v1728, %v1732
        %v1737 = vand.u32 2147483647, %v1727
        %vm1738 = vcmp.eq.f32.partialorder %v1737, 8.507059e+37
        %v1739 = vand.u32 %v1727, 2147483648
        %v1740 = vor.u32 1.1754944e-38, %v1739
        %v1741 = vsel %vm1738, %v1740, %v1736
        %v1742 = vmul.f32 %v1717, %v1741
        %v1743 = vmin.f32 %v1742, 1.0
        %v1744 = vmax.f32 %v1743, -1.0
        %v1745 = vmul.f32 %v621, %v621
        %v1746 = vmin.f32 16.0, %v1745
        %v1747 = vmul.f32 %v1746, 2.1237322e-06
        %v1748 = vadd.f32 %v1747, 0.00028619796
        %v1749 = vmul.f32 %v1746, %v1748
        %v1750 = vadd.f32 %v1749, 0.0036580483
        %v1751 = vmul.f32 %v1746, %v1750
        %v1752 = vadd.f32 %v1751, 0.05243302
        %v1753 = vmul.f32 %v1746, %v1752
        %v1754 = vadd.f32 %v1753, 0.18741608
        %v1755 = vmul.f32 %v1746, %v1754
        %v1756 = vadd.f32 %v1755, 1.1283791
        %v1757 = vmul.f32 %v621, %v1756
        %v1758 = vmul.f32 %v1746, 3.8918573e-05
        %v1759 = vadd.f32 %v1758, 0.001143296
        %v1760 = vmul.f32 %v1746, %v1759
        %v1761 = vadd.f32 %v1760, 0.014752088
        %v1762 = vmul.f32 %v1746, %v1761
        %v1763 = vadd.f32 %v1762, 0.112945676
        %v1764 = vmul.f32 %v1746, %v1763
        %v1765 = vadd.f32 %v1764, 0.4994258
        %v1766 = vmul.f32 %v1746, %v1765
        %v1767 = vadd.f32 %v1766, 1.0
        %v1768 = vrcp.pop %v1767
        %v1769 = vmul.f32 %v1767, %v1768
        %v1770 = vsub.f32 1.0, %v1769
        %v1771 = vmul.f32 %v1768, %v1770
        %v1772 = vadd.f32 %v1768, %v1771
        %vm1773 = vweird.f32 %v1767
        %vm1774 = vweird.f32 %v1768
        %vm1775 = vmor %vm1773, %vm1774
        %v1776 = vsel %vm1775, %v1768, %v1772
        %v1777 = vand.u32 2147483647, %v1767
        %vm1778 = vcmp.eq.f32.partialorder %v1777, 8.507059e+37
        %v1779 = vand.u32 %v1767, 2147483648
        %v1780 = vor.u32 1.1754944e-38, %v1779
        %v1781 = vsel %vm1778, %v1780, %v1776
        %v1782 = vmul.f32 %v1757, %v1781
        %v1783 = vmin.f32 %v1782, 1.0
        %v1784 = vmax.f32 %v1783, -1.0
        %v1785 = vmul.f32 %v622, %v622
        %v1786 = vmin.f32 16.0, %v1785
        %v1787 = vmul.f32 %v1786, 2.1237322e-06
        %v1788 = vadd.f32 %v1787, 0.00028619796
        %v1789 = vmul.f32 %v1786, %v1788
        %v1790 = vadd.f32 %v1789, 0.0036580483
        %v1791 = vmul.f32 %v1786, %v1790
        %v1792 = vadd.f32 %v1791, 0.05243302
        %v1793 = vmul.f32 %v1786, %v1792
        %v1794 = vadd.f32 %v1793, 0.18741608
        %v1795 = vmul.f32 %v1786, %v1794
        %v1796 = vadd.f32 %v1795, 1.1283791
        %v1797 = vmul.f32 %v622, %v1796
        %v1798 = vmul.f32 %v1786, 3.8918573e-05
        %v1799 = vadd.f32 %v1798, 0.001143296
        %v1800 = vmul.f32 %v1786, %v1799
        %v1801 = vadd.f32 %v1800, 0.014752088
        %v1802 = vmul.f32 %v1786, %v1801
        %v1803 = vadd.f32 %v1802, 0.112945676
        %v1804 = vmul.f32 %v1786, %v1803
        %v1805 = vadd.f32 %v1804, 0.4994258
        %v1806 = vmul.f32 %v1786, %v1805
        %v1807 = vadd.f32 %v1806, 1.0
        %v1808 = vrcp.pop %v1807
        %v1809 = vmul.f32 %v1807, %v1808
        %v1810 = vsub.f32 1.0, %v1809
        %v1811 = vmul.f32 %v1808, %v1810
        %v1812 = vadd.f32 %v1808, %v1811
        %vm1813 = vweird.f32 %v1807
        %vm1814 = vweird.f32 %v1808
        %vm1815 = vmor %vm1813, %vm1814
        %v1816 = vsel %vm1815, %v1808, %v1812
        %v1817 = vand.u32 2147483647, %v1807
        %vm1818 = vcmp.eq.f32.partialorder %v1817, 8.507059e+37
        %v1819 = vand.u32 %v1807, 2147483648
        %v1820 = vor.u32 1.1754944e-38, %v1819
        %v1821 = vsel %vm1818, %v1820, %v1816
        %v1822 = vmul.f32 %v1797, %v1821
        %v1823 = vmin.f32 %v1822, 1.0
        %v1824 = vmax.f32 %v1823, -1.0
        %v1825 = vmul.f32 %v623, %v623
        %v1826 = vmin.f32 16.0, %v1825
        %v1827 = vmul.f32 %v1826, 2.1237322e-06
        %v1828 = vadd.f32 %v1827, 0.00028619796
        %v1829 = vmul.f32 %v1826, %v1828
        %v1830 = vadd.f32 %v1829, 0.0036580483
        %v1831 = vmul.f32 %v1826, %v1830
        %v1832 = vadd.f32 %v1831, 0.05243302
        %v1833 = vmul.f32 %v1826, %v1832
        %v1834 = vadd.f32 %v1833, 0.18741608
        %v1835 = vmul.f32 %v1826, %v1834
        %v1836 = vadd.f32 %v1835, 1.1283791
        %v1837 = vmul.f32 %v623, %v1836
        %v1838 = vmul.f32 %v1826, 3.8918573e-05
        %v1839 = vadd.f32 %v1838, 0.001143296
        %v1840 = vmul.f32 %v1826, %v1839
        %v1841 = vadd.f32 %v1840, 0.014752088
        %v1842 = vmul.f32 %v1826, %v1841
        %v1843 = vadd.f32 %v1842, 0.112945676
        %v1844 = vmul.f32 %v1826, %v1843
        %v1845 = vadd.f32 %v1844, 0.4994258
        %v1846 = vmul.f32 %v1826, %v1845
        %v1847 = vadd.f32 %v1846, 1.0
        %v1848 = vrcp.pop %v1847
        %v1849 = vmul.f32 %v1847, %v1848
        %v1850 = vsub.f32 1.0, %v1849
        %v1851 = vmul.f32 %v1848, %v1850
        %v1852 = vadd.f32 %v1848, %v1851
        %vm1853 = vweird.f32 %v1847
        %vm1854 = vweird.f32 %v1848
        %vm1855 = vmor %vm1853, %vm1854
        %v1856 = vsel %vm1855, %v1848, %v1852
        %v1857 = vand.u32 2147483647, %v1847
        %vm1858 = vcmp.eq.f32.partialorder %v1857, 8.507059e+37
        %v1859 = vand.u32 %v1847, 2147483648
        %v1860 = vor.u32 1.1754944e-38, %v1859
        %v1861 = vsel %vm1858, %v1860, %v1856
        %v1862 = vmul.f32 %v1837, %v1861
        %v1863 = vmin.f32 %v1862, 1.0
        %v1864 = vmax.f32 %v1863, -1.0
        %v1865 = vmul.f32 %v624, %v624
        %v1866 = vmin.f32 16.0, %v1865
        %v1867 = vmul.f32 %v1866, 2.1237322e-06
        %v1868 = vadd.f32 %v1867, 0.00028619796
        %v1869 = vmul.f32 %v1866, %v1868
        %v1870 = vadd.f32 %v1869, 0.0036580483
        %v1871 = vmul.f32 %v1866, %v1870
        %v1872 = vadd.f32 %v1871, 0.05243302
        %v1873 = vmul.f32 %v1866, %v1872
        %v1874 = vadd.f32 %v1873, 0.18741608
        %v1875 = vmul.f32 %v1866, %v1874
        %v1876 = vadd.f32 %v1875, 1.1283791
        %v1877 = vmul.f32 %v624, %v1876
        %v1878 = vmul.f32 %v1866, 3.8918573e-05
        %v1879 = vadd.f32 %v1878, 0.001143296
        %v1880 = vmul.f32 %v1866, %v1879
        %v1881 = vadd.f32 %v1880, 0.014752088
        %v1882 = vmul.f32 %v1866, %v1881
        %v1883 = vadd.f32 %v1882, 0.112945676
        %v1884 = vmul.f32 %v1866, %v1883
        %v1885 = vadd.f32 %v1884, 0.4994258
        %v1886 = vmul.f32 %v1866, %v1885
        %v1887 = vadd.f32 %v1886, 1.0
        %v1888 = vrcp.pop %v1887
        %v1889 = vmul.f32 %v1887, %v1888
        %v1890 = vsub.f32 1.0, %v1889
        %v1891 = vmul.f32 %v1888, %v1890
        %v1892 = vadd.f32 %v1888, %v1891
        %vm1893 = vweird.f32 %v1887
        %vm1894 = vweird.f32 %v1888
        %vm1895 = vmor %vm1893, %vm1894
        %v1896 = vsel %vm1895, %v1888, %v1892
        %v1897 = vand.u32 2147483647, %v1887
        %vm1898 = vcmp.eq.f32.partialorder %v1897, 8.507059e+37
        %v1899 = vand.u32 %v1887, 2147483648
        %v1900 = vor.u32 1.1754944e-38, %v1899
        %v1901 = vsel %vm1898, %v1900, %v1896
        %v1902 = vmul.f32 %v1877, %v1901
        %v1903 = vmin.f32 %v1902, 1.0
        %v1904 = vmax.f32 %v1903, -1.0
        %v1905 = vadd.f32 %v664, 1.0
        %v1906 = vadd.f32 %v704, 1.0
        %v1907 = vadd.f32 %v744, 1.0
        %v1908 = vadd.f32 %v784, 1.0
        %v1909 = vadd.f32 %v824, 1.0
        %v1910 = vadd.f32 %v864, 1.0
        %v1911 = vadd.f32 %v904, 1.0
        %v1912 = vadd.f32 %v944, 1.0
        %v1913 = vadd.f32 %v984, 1.0
        %v1914 = vadd.f32 %v1024, 1.0
        %v1915 = vadd.f32 %v1064, 1.0
        %v1916 = vadd.f32 %v1104, 1.0
        %v1917 = vadd.f32 %v1144, 1.0
        %v1918 = vadd.f32 %v1184, 1.0
        %v1919 = vadd.f32 %v1224, 1.0
        %v1920 = vadd.f32 %v1264, 1.0
        %v1921 = vadd.f32 %v1304, 1.0
        %v1922 = vadd.f32 %v1344, 1.0
        %v1923 = vadd.f32 %v1384, 1.0
        %v1924 = vadd.f32 %v1424, 1.0
        %v1925 = vadd.f32 %v1464, 1.0
        %v1926 = vadd.f32 %v1504, 1.0
        %v1927 = vadd.f32 %v1544, 1.0
        %v1928 = vadd.f32 %v1584, 1.0
        %v1929 = vadd.f32 %v1624, 1.0
        %v1930 = vadd.f32 %v1664, 1.0
        %v1931 = vadd.f32 %v1704, 1.0
        %v1932 = vadd.f32 %v1744, 1.0
        %v1933 = vadd.f32 %v1784, 1.0
        %v1934 = vadd.f32 %v1824, 1.0
        %v1935 = vadd.f32 %v1864, 1.0
        %v1936 = vadd.f32 %v1904, 1.0
        %v1937 = vmul.f32 %v561, %v1905
        %v1938 = vmul.f32 %v562, %v1906
        %v1939 = vmul.f32 %v563, %v1907
        %v1940 = vmul.f32 %v564, %v1908
        %v1941 = vmul.f32 %v565, %v1909
        %v1942 = vmul.f32 %v566, %v1910
        %v1943 = vmul.f32 %v567, %v1911
        %v1944 = vmul.f32 %v568, %v1912
        %v1945 = vmul.f32 %v569, %v1913
        %v1946 = vmul.f32 %v570, %v1914
        %v1947 = vmul.f32 %v571, %v1915
        %v1948 = vmul.f32 %v572, %v1916
        %v1949 = vmul.f32 %v573, %v1917
        %v1950 = vmul.f32 %v574, %v1918
        %v1951 = vmul.f32 %v575, %v1919
        %v1952 = vmul.f32 %v576, %v1920
        %v1953 = vmul.f32 %v577, %v1921
        %v1954 = vmul.f32 %v578, %v1922
        %v1955 = vmul.f32 %v579, %v1923
        %v1956 = vmul.f32 %v580, %v1924
        %v1957 = vmul.f32 %v581, %v1925
        %v1958 = vmul.f32 %v582, %v1926
        %v1959 = vmul.f32 %v583, %v1927
        %v1960 = vmul.f32 %v584, %v1928
        %v1961 = vmul.f32 %v585, %v1929
        %v1962 = vmul.f32 %v586, %v1930
        %v1963 = vmul.f32 %v587, %v1931
        %v1964 = vmul.f32 %v588, %v1932
        %v1965 = vmul.f32 %v589, %v1933
        %v1966 = vmul.f32 %v590, %v1934
        %v1967 = vmul.f32 %v591, %v1935
        %v1968 = vmul.f32 %v592, %v1936
        %vm1969 = vcmask 523264
        %v1970 = vsel %vm1969, %v1937, 0.0
        %1971 = vadd.xlane.f32.xlu0 %v1970
        %v1972 = vpop.xlane.xlu0 %1971
        %v1973 = vsel %vm1969, %v1938, 0.0
        %1974 = vadd.xlane.f32.xlu0 %v1973
        %v1975 = vpop.xlane.xlu0 %1974
        %v1976 = vsel %vm1969, %v1939, 0.0
        %1977 = vadd.xlane.f32.xlu0 %v1976
        %v1978 = vpop.xlane.xlu0 %1977
        %v1979 = vsel %vm1969, %v1940, 0.0
        %1980 = vadd.xlane.f32.xlu0 %v1979
        %v1981 = vpop.xlane.xlu0 %1980
        %v1982 = vsel %vm1969, %v1941, 0.0
        %1983 = vadd.xlane.f32.xlu0 %v1982
        %v1984 = vpop.xlane.xlu0 %1983
        %v1985 = vsel %vm1969, %v1942, 0.0
        %1986 = vadd.xlane.f32.xlu0 %v1985
        %v1987 = vpop.xlane.xlu0 %1986
        %v1988 = vsel %vm1969, %v1943, 0.0
        %1989 = vadd.xlane.f32.xlu0 %v1988
        %v1990 = vpop.xlane.xlu0 %1989
        %v1991 = vsel %vm1969, %v1944, 0.0
        %1992 = vadd.xlane.f32.xlu0 %v1991
        %v1993 = vpop.xlane.xlu0 %1992
        %v1994 = vsel %vm1969, %v1945, 0.0
        %1995 = vadd.xlane.f32.xlu0 %v1994
        %v1996 = vpop.xlane.xlu0 %1995
        %v1997 = vsel %vm1969, %v1946, 0.0
        %1998 = vadd.xlane.f32.xlu0 %v1997
        %v1999 = vpop.xlane.xlu0 %1998
        %v2000 = vsel %vm1969, %v1947, 0.0
        %2001 = vadd.xlane.f32.xlu0 %v2000
        %v2002 = vpop.xlane.xlu0 %2001
        %v2003 = vsel %vm1969, %v1948, 0.0
        %2004 = vadd.xlane.f32.xlu0 %v2003
        %v2005 = vpop.xlane.xlu0 %2004
        %v2006 = vsel %vm1969, %v1949, 0.0
        %2007 = vadd.xlane.f32.xlu0 %v2006
        %v2008 = vpop.xlane.xlu0 %2007
        %v2009 = vsel %vm1969, %v1950, 0.0
        %2010 = vadd.xlane.f32.xlu0 %v2009
        %v2011 = vpop.xlane.xlu0 %2010
        %v2012 = vsel %vm1969, %v1951, 0.0
        %2013 = vadd.xlane.f32.xlu0 %v2012
        %v2014 = vpop.xlane.xlu0 %2013
        %v2015 = vsel %vm1969, %v1952, 0.0
        %2016 = vadd.xlane.f32.xlu0 %v2015
        %v2017 = vpop.xlane.xlu0 %2016
        %v2018 = vsel %vm1969, %v1953, 0.0
        %2019 = vadd.xlane.f32.xlu0 %v2018
        %v2020 = vpop.xlane.xlu0 %2019
        %v2021 = vsel %vm1969, %v1954, 0.0
        %2022 = vadd.xlane.f32.xlu0 %v2021
        %v2023 = vpop.xlane.xlu0 %2022
        %v2024 = vsel %vm1969, %v1955, 0.0
        %2025 = vadd.xlane.f32.xlu0 %v2024
        %v2026 = vpop.xlane.xlu0 %2025
        %v2027 = vsel %vm1969, %v1956, 0.0
        %2028 = vadd.xlane.f32.xlu0 %v2027
        %v2029 = vpop.xlane.xlu0 %2028
        %v2030 = vsel %vm1969, %v1957, 0.0
        %2031 = vadd.xlane.f32.xlu0 %v2030
        %v2032 = vpop.xlane.xlu0 %2031
        %v2033 = vsel %vm1969, %v1958, 0.0
        %2034 = vadd.xlane.f32.xlu0 %v2033
        %v2035 = vpop.xlane.xlu0 %2034
        %v2036 = vsel %vm1969, %v1959, 0.0
        %2037 = vadd.xlane.f32.xlu0 %v2036
        %v2038 = vpop.xlane.xlu0 %2037
        %v2039 = vsel %vm1969, %v1960, 0.0
        %2040 = vadd.xlane.f32.xlu0 %v2039
        %v2041 = vpop.xlane.xlu0 %2040
        %v2042 = vsel %vm1969, %v1961, 0.0
        %2043 = vadd.xlane.f32.xlu0 %v2042
        %v2044 = vpop.xlane.xlu0 %2043
        %v2045 = vsel %vm1969, %v1962, 0.0
        %2046 = vadd.xlane.f32.xlu0 %v2045
        %v2047 = vpop.xlane.xlu0 %2046
        %v2048 = vsel %vm1969, %v1963, 0.0
        %2049 = vadd.xlane.f32.xlu0 %v2048
        %v2050 = vpop.xlane.xlu0 %2049
        %v2051 = vsel %vm1969, %v1964, 0.0
        %2052 = vadd.xlane.f32.xlu0 %v2051
        %v2053 = vpop.xlane.xlu0 %2052
        %v2054 = vsel %vm1969, %v1965, 0.0
        %2055 = vadd.xlane.f32.xlu0 %v2054
        %v2056 = vpop.xlane.xlu0 %2055
        %v2057 = vsel %vm1969, %v1966, 0.0
        %2058 = vadd.xlane.f32.xlu0 %v2057
        %v2059 = vpop.xlane.xlu0 %2058
        %v2060 = vsel %vm1969, %v1967, 0.0
        %2061 = vadd.xlane.f32.xlu0 %v2060
        %v2062 = vpop.xlane.xlu0 %2061
        %v2063 = vsel %vm1969, %v1968, 0.0
        %2064 = vadd.xlane.f32.xlu0 %v2063
        %v2065 = vpop.xlane.xlu0 %2064
        %v2066 = vrcp.pop 64.0
        %v2067 = vmul.f32 64.0, %v2066
        %v2068 = vsub.f32 1.0, %v2067
        %v2069 = vmul.f32 %v2066, %v2068
        %v2070 = vadd.f32 %v2066, %v2069
        %vm2071 = vweird.f32 %v2066
        %v2072 = vsel %vm2071, %v2066, %v2070
        %v2073 = vmul.f32 %v1972, %v2072
        %v2074 = vmul.f32 %v1975, %v2072
        %v2075 = vmul.f32 %v1978, %v2072
        %v2076 = vmul.f32 %v1981, %v2072
        %v2077 = vmul.f32 %v1984, %v2072
        %v2078 = vmul.f32 %v1987, %v2072
        %v2079 = vmul.f32 %v1990, %v2072
        %v2080 = vmul.f32 %v1993, %v2072
        %v2081 = vmul.f32 %v1996, %v2072
        %v2082 = vmul.f32 %v1999, %v2072
        %v2083 = vmul.f32 %v2002, %v2072
        %v2084 = vmul.f32 %v2005, %v2072
        %v2085 = vmul.f32 %v2008, %v2072
        %v2086 = vmul.f32 %v2011, %v2072
        %v2087 = vmul.f32 %v2014, %v2072
        %v2088 = vmul.f32 %v2017, %v2072
        %v2089 = vmul.f32 %v2020, %v2072
        %v2090 = vmul.f32 %v2023, %v2072
        %v2091 = vmul.f32 %v2026, %v2072
        %v2092 = vmul.f32 %v2029, %v2072
        %v2093 = vmul.f32 %v2032, %v2072
        %v2094 = vmul.f32 %v2035, %v2072
        %v2095 = vmul.f32 %v2038, %v2072
        %v2096 = vmul.f32 %v2041, %v2072
        %v2097 = vmul.f32 %v2044, %v2072
        %v2098 = vmul.f32 %v2047, %v2072
        %v2099 = vmul.f32 %v2050, %v2072
        %v2100 = vmul.f32 %v2053, %v2072
        %v2101 = vmul.f32 %v2056, %v2072
        %v2102 = vmul.f32 %v2059, %v2072
        %v2103 = vmul.f32 %v2062, %v2072
        %v2104 = vmul.f32 %v2065, %v2072
        %v2105 = vsub.f32 %v1937, %v2073
        %v2106 = vsub.f32 %v1938, %v2074
        %v2107 = vsub.f32 %v1939, %v2075
        %v2108 = vsub.f32 %v1940, %v2076
        %v2109 = vsub.f32 %v1941, %v2077
        %v2110 = vsub.f32 %v1942, %v2078
        %v2111 = vsub.f32 %v1943, %v2079
        %v2112 = vsub.f32 %v1944, %v2080
        %v2113 = vsub.f32 %v1945, %v2081
        %v2114 = vsub.f32 %v1946, %v2082
        %v2115 = vsub.f32 %v1947, %v2083
        %v2116 = vsub.f32 %v1948, %v2084
        %v2117 = vsub.f32 %v1949, %v2085
        %v2118 = vsub.f32 %v1950, %v2086
        %v2119 = vsub.f32 %v1951, %v2087
        %v2120 = vsub.f32 %v1952, %v2088
        %v2121 = vsub.f32 %v1953, %v2089
        %v2122 = vsub.f32 %v1954, %v2090
        %v2123 = vsub.f32 %v1955, %v2091
        %v2124 = vsub.f32 %v1956, %v2092
        %v2125 = vsub.f32 %v1957, %v2093
        %v2126 = vsub.f32 %v1958, %v2094
        %v2127 = vsub.f32 %v1959, %v2095
        %v2128 = vsub.f32 %v1960, %v2096
        %v2129 = vsub.f32 %v1961, %v2097
        %v2130 = vsub.f32 %v1962, %v2098
        %v2131 = vsub.f32 %v1963, %v2099
        %v2132 = vsub.f32 %v1964, %v2100
        %v2133 = vsub.f32 %v1965, %v2101
        %v2134 = vsub.f32 %v1966, %v2102
        %v2135 = vsub.f32 %v1967, %v2103
        %v2136 = vsub.f32 %v1968, %v2104
        %v2137 = vmul.f32 %v2105, %v2105
        %v2138 = vmul.f32 %v2106, %v2106
        %v2139 = vmul.f32 %v2107, %v2107
        %v2140 = vmul.f32 %v2108, %v2108
        %v2141 = vmul.f32 %v2109, %v2109
        %v2142 = vmul.f32 %v2110, %v2110
        %v2143 = vmul.f32 %v2111, %v2111
        %v2144 = vmul.f32 %v2112, %v2112
        %v2145 = vmul.f32 %v2113, %v2113
        %v2146 = vmul.f32 %v2114, %v2114
        %v2147 = vmul.f32 %v2115, %v2115
        %v2148 = vmul.f32 %v2116, %v2116
        %v2149 = vmul.f32 %v2117, %v2117
        %v2150 = vmul.f32 %v2118, %v2118
        %v2151 = vmul.f32 %v2119, %v2119
        %v2152 = vmul.f32 %v2120, %v2120
        %v2153 = vmul.f32 %v2121, %v2121
        %v2154 = vmul.f32 %v2122, %v2122
        %v2155 = vmul.f32 %v2123, %v2123
        %v2156 = vmul.f32 %v2124, %v2124
        %v2157 = vmul.f32 %v2125, %v2125
        %v2158 = vmul.f32 %v2126, %v2126
        %v2159 = vmul.f32 %v2127, %v2127
        %v2160 = vmul.f32 %v2128, %v2128
        %v2161 = vmul.f32 %v2129, %v2129
        %v2162 = vmul.f32 %v2130, %v2130
        %v2163 = vmul.f32 %v2131, %v2131
        %v2164 = vmul.f32 %v2132, %v2132
        %v2165 = vmul.f32 %v2133, %v2133
        %v2166 = vmul.f32 %v2134, %v2134
        %v2167 = vmul.f32 %v2135, %v2135
        %v2168 = vmul.f32 %v2136, %v2136
        %v2169 = vsel %vm1969, %v2137, 0.0
        %2170 = vadd.xlane.f32.xlu0 %v2169
        %v2171 = vpop.xlane.xlu0 %2170
        %v2172 = vsel %vm1969, %v2138, 0.0
        %2173 = vadd.xlane.f32.xlu0 %v2172
        %v2174 = vpop.xlane.xlu0 %2173
        %v2175 = vsel %vm1969, %v2139, 0.0
        %2176 = vadd.xlane.f32.xlu0 %v2175
        %v2177 = vpop.xlane.xlu0 %2176
        %v2178 = vsel %vm1969, %v2140, 0.0
        %2179 = vadd.xlane.f32.xlu0 %v2178
        %v2180 = vpop.xlane.xlu0 %2179
        %v2181 = vsel %vm1969, %v2141, 0.0
        %2182 = vadd.xlane.f32.xlu0 %v2181
        %v2183 = vpop.xlane.xlu0 %2182
        %v2184 = vsel %vm1969, %v2142, 0.0
        %2185 = vadd.xlane.f32.xlu0 %v2184
        %v2186 = vpop.xlane.xlu0 %2185
        %v2187 = vsel %vm1969, %v2143, 0.0
        %2188 = vadd.xlane.f32.xlu0 %v2187
        %v2189 = vpop.xlane.xlu0 %2188
        %v2190 = vsel %vm1969, %v2144, 0.0
        %2191 = vadd.xlane.f32.xlu0 %v2190
        %v2192 = vpop.xlane.xlu0 %2191
        %v2193 = vsel %vm1969, %v2145, 0.0
        %2194 = vadd.xlane.f32.xlu0 %v2193
        %v2195 = vpop.xlane.xlu0 %2194
        %v2196 = vsel %vm1969, %v2146, 0.0
        %2197 = vadd.xlane.f32.xlu0 %v2196
        %v2198 = vpop.xlane.xlu0 %2197
        %v2199 = vsel %vm1969, %v2147, 0.0
        %2200 = vadd.xlane.f32.xlu0 %v2199
        %v2201 = vpop.xlane.xlu0 %2200
        %v2202 = vsel %vm1969, %v2148, 0.0
        %2203 = vadd.xlane.f32.xlu0 %v2202
        %v2204 = vpop.xlane.xlu0 %2203
        %v2205 = vsel %vm1969, %v2149, 0.0
        %2206 = vadd.xlane.f32.xlu0 %v2205
        %v2207 = vpop.xlane.xlu0 %2206
        %v2208 = vsel %vm1969, %v2150, 0.0
        %2209 = vadd.xlane.f32.xlu0 %v2208
        %v2210 = vpop.xlane.xlu0 %2209
        %v2211 = vsel %vm1969, %v2151, 0.0
        %2212 = vadd.xlane.f32.xlu0 %v2211
        %v2213 = vpop.xlane.xlu0 %2212
        %v2214 = vsel %vm1969, %v2152, 0.0
        %2215 = vadd.xlane.f32.xlu0 %v2214
        %v2216 = vpop.xlane.xlu0 %2215
        %v2217 = vsel %vm1969, %v2153, 0.0
        %2218 = vadd.xlane.f32.xlu0 %v2217
        %v2219 = vpop.xlane.xlu0 %2218
        %v2220 = vsel %vm1969, %v2154, 0.0
        %2221 = vadd.xlane.f32.xlu0 %v2220
        %v2222 = vpop.xlane.xlu0 %2221
        %v2223 = vsel %vm1969, %v2155, 0.0
        %2224 = vadd.xlane.f32.xlu0 %v2223
        %v2225 = vpop.xlane.xlu0 %2224
        %v2226 = vsel %vm1969, %v2156, 0.0
        %2227 = vadd.xlane.f32.xlu0 %v2226
        %v2228 = vpop.xlane.xlu0 %2227
        %v2229 = vsel %vm1969, %v2157, 0.0
        %2230 = vadd.xlane.f32.xlu0 %v2229
        %v2231 = vpop.xlane.xlu0 %2230
        %v2232 = vsel %vm1969, %v2158, 0.0
        %2233 = vadd.xlane.f32.xlu0 %v2232
        %v2234 = vpop.xlane.xlu0 %2233
        %v2235 = vsel %vm1969, %v2159, 0.0
        %2236 = vadd.xlane.f32.xlu0 %v2235
        %v2237 = vpop.xlane.xlu0 %2236
        %v2238 = vsel %vm1969, %v2160, 0.0
        %2239 = vadd.xlane.f32.xlu0 %v2238
        %v2240 = vpop.xlane.xlu0 %2239
        %v2241 = vsel %vm1969, %v2161, 0.0
        %2242 = vadd.xlane.f32.xlu0 %v2241
        %v2243 = vpop.xlane.xlu0 %2242
        %v2244 = vsel %vm1969, %v2162, 0.0
        %2245 = vadd.xlane.f32.xlu0 %v2244
        %v2246 = vpop.xlane.xlu0 %2245
        %v2247 = vsel %vm1969, %v2163, 0.0
        %2248 = vadd.xlane.f32.xlu0 %v2247
        %v2249 = vpop.xlane.xlu0 %2248
        %v2250 = vsel %vm1969, %v2164, 0.0
        %2251 = vadd.xlane.f32.xlu0 %v2250
        %v2252 = vpop.xlane.xlu0 %2251
        %v2253 = vsel %vm1969, %v2165, 0.0
        %2254 = vadd.xlane.f32.xlu0 %v2253
        %v2255 = vpop.xlane.xlu0 %2254
        %v2256 = vsel %vm1969, %v2166, 0.0
        %2257 = vadd.xlane.f32.xlu0 %v2256
        %v2258 = vpop.xlane.xlu0 %2257
        %v2259 = vsel %vm1969, %v2167, 0.0
        %2260 = vadd.xlane.f32.xlu0 %v2259
        %v2261 = vpop.xlane.xlu0 %2260
        %v2262 = vsel %vm1969, %v2168, 0.0
        %2263 = vadd.xlane.f32.xlu0 %v2262
        %v2264 = vpop.xlane.xlu0 %2263
        %v2265 = vmul.f32 %v2171, %v2072
        %v2266 = vmul.f32 %v2174, %v2072
        %v2267 = vmul.f32 %v2177, %v2072
        %v2268 = vmul.f32 %v2180, %v2072
        %v2269 = vmul.f32 %v2183, %v2072
        %v2270 = vmul.f32 %v2186, %v2072
        %v2271 = vmul.f32 %v2189, %v2072
        %v2272 = vmul.f32 %v2192, %v2072
        %v2273 = vmul.f32 %v2195, %v2072
        %v2274 = vmul.f32 %v2198, %v2072
        %v2275 = vmul.f32 %v2201, %v2072
        %v2276 = vmul.f32 %v2204, %v2072
        %v2277 = vmul.f32 %v2207, %v2072
        %v2278 = vmul.f32 %v2210, %v2072
        %v2279 = vmul.f32 %v2213, %v2072
        %v2280 = vmul.f32 %v2216, %v2072
        %v2281 = vmul.f32 %v2219, %v2072
        %v2282 = vmul.f32 %v2222, %v2072
        %v2283 = vmul.f32 %v2225, %v2072
        %v2284 = vmul.f32 %v2228, %v2072
        %v2285 = vmul.f32 %v2231, %v2072
        %v2286 = vmul.f32 %v2234, %v2072
        %v2287 = vmul.f32 %v2237, %v2072
        %v2288 = vmul.f32 %v2240, %v2072
        %v2289 = vmul.f32 %v2243, %v2072
        %v2290 = vmul.f32 %v2246, %v2072
        %v2291 = vmul.f32 %v2249, %v2072
        %v2292 = vmul.f32 %v2252, %v2072
        %v2293 = vmul.f32 %v2255, %v2072
        %v2294 = vmul.f32 %v2258, %v2072
        %v2295 = vmul.f32 %v2261, %v2072
        %v2296 = vmul.f32 %v2264, %v2072
        %v2297 = vadd.f32 %v2265, 1e-06
        %v2298 = vadd.f32 %v2266, 1e-06
        %v2299 = vadd.f32 %v2267, 1e-06
        %v2300 = vadd.f32 %v2268, 1e-06
        %v2301 = vadd.f32 %v2269, 1e-06
        %v2302 = vadd.f32 %v2270, 1e-06
        %v2303 = vadd.f32 %v2271, 1e-06
        %v2304 = vadd.f32 %v2272, 1e-06
        %v2305 = vadd.f32 %v2273, 1e-06
        %v2306 = vadd.f32 %v2274, 1e-06
        %v2307 = vadd.f32 %v2275, 1e-06
        %v2308 = vadd.f32 %v2276, 1e-06
        %v2309 = vadd.f32 %v2277, 1e-06
        %v2310 = vadd.f32 %v2278, 1e-06
        %v2311 = vadd.f32 %v2279, 1e-06
        %v2312 = vadd.f32 %v2280, 1e-06
        %v2313 = vadd.f32 %v2281, 1e-06
        %v2314 = vadd.f32 %v2282, 1e-06
        %v2315 = vadd.f32 %v2283, 1e-06
        %v2316 = vadd.f32 %v2284, 1e-06
        %v2317 = vadd.f32 %v2285, 1e-06
        %v2318 = vadd.f32 %v2286, 1e-06
        %v2319 = vadd.f32 %v2287, 1e-06
        %v2320 = vadd.f32 %v2288, 1e-06
        %v2321 = vadd.f32 %v2289, 1e-06
        %v2322 = vadd.f32 %v2290, 1e-06
        %v2323 = vadd.f32 %v2291, 1e-06
        %v2324 = vadd.f32 %v2292, 1e-06
        %v2325 = vadd.f32 %v2293, 1e-06
        %v2326 = vadd.f32 %v2294, 1e-06
        %v2327 = vadd.f32 %v2295, 1e-06
        %v2328 = vadd.f32 %v2296, 1e-06
        %v2329 = vrsqrt.pop %v2297
        %v2330 = vmul.f32 %v2329, %v2297
        %v2331 = vmul.f32 %v2330, %v2329
        %v2332 = vmul.f32 0.5, %v2331
        %v2333 = vsub.f32 1.5, %v2332
        %v2334 = vmul.f32 %v2329, %v2333
        %vm2335 = vweird.f32 %v2297
        %vm2336 = vweird.f32 %v2329
        %vm2337 = vmor %vm2335, %vm2336
        %v2338 = vsel %vm2337, %v2329, %v2334
        %v2339 = vrsqrt.pop %v2298
        %v2340 = vmul.f32 %v2339, %v2298
        %v2341 = vmul.f32 %v2340, %v2339
        %v2342 = vmul.f32 0.5, %v2341
        %v2343 = vsub.f32 1.5, %v2342
        %v2344 = vmul.f32 %v2339, %v2343
        %vm2345 = vweird.f32 %v2298
        %vm2346 = vweird.f32 %v2339
        %vm2347 = vmor %vm2345, %vm2346
        %v2348 = vsel %vm2347, %v2339, %v2344
        %v2349 = vrsqrt.pop %v2299
        %v2350 = vmul.f32 %v2349, %v2299
        %v2351 = vmul.f32 %v2350, %v2349
        %v2352 = vmul.f32 0.5, %v2351
        %v2353 = vsub.f32 1.5, %v2352
        %v2354 = vmul.f32 %v2349, %v2353
        %vm2355 = vweird.f32 %v2299
        %vm2356 = vweird.f32 %v2349
        %vm2357 = vmor %vm2355, %vm2356
        %v2358 = vsel %vm2357, %v2349, %v2354
        %v2359 = vrsqrt.pop %v2300
        %v2360 = vmul.f32 %v2359, %v2300
        %v2361 = vmul.f32 %v2360, %v2359
        %v2362 = vmul.f32 0.5, %v2361
        %v2363 = vsub.f32 1.5, %v2362
        %v2364 = vmul.f32 %v2359, %v2363
        %vm2365 = vweird.f32 %v2300
        %vm2366 = vweird.f32 %v2359
        %vm2367 = vmor %vm2365, %vm2366
        %v2368 = vsel %vm2367, %v2359, %v2364
        %v2369 = vrsqrt.pop %v2301
        %v2370 = vmul.f32 %v2369, %v2301
        %v2371 = vmul.f32 %v2370, %v2369
        %v2372 = vmul.f32 0.5, %v2371
        %v2373 = vsub.f32 1.5, %v2372
        %v2374 = vmul.f32 %v2369, %v2373
        %vm2375 = vweird.f32 %v2301
        %vm2376 = vweird.f32 %v2369
        %vm2377 = vmor %vm2375, %vm2376
        %v2378 = vsel %vm2377, %v2369, %v2374
        %v2379 = vrsqrt.pop %v2302
        %v2380 = vmul.f32 %v2379, %v2302
        %v2381 = vmul.f32 %v2380, %v2379
        %v2382 = vmul.f32 0.5, %v2381
        %v2383 = vsub.f32 1.5, %v2382
        %v2384 = vmul.f32 %v2379, %v2383
        %vm2385 = vweird.f32 %v2302
        %vm2386 = vweird.f32 %v2379
        %vm2387 = vmor %vm2385, %vm2386
        %v2388 = vsel %vm2387, %v2379, %v2384
        %v2389 = vrsqrt.pop %v2303
        %v2390 = vmul.f32 %v2389, %v2303
        %v2391 = vmul.f32 %v2390, %v2389
        %v2392 = vmul.f32 0.5, %v2391
        %v2393 = vsub.f32 1.5, %v2392
        %v2394 = vmul.f32 %v2389, %v2393
        %vm2395 = vweird.f32 %v2303
        %vm2396 = vweird.f32 %v2389
        %vm2397 = vmor %vm2395, %vm2396
        %v2398 = vsel %vm2397, %v2389, %v2394
        %v2399 = vrsqrt.pop %v2304
        %v2400 = vmul.f32 %v2399, %v2304
        %v2401 = vmul.f32 %v2400, %v2399
        %v2402 = vmul.f32 0.5, %v2401
        %v2403 = vsub.f32 1.5, %v2402
        %v2404 = vmul.f32 %v2399, %v2403
        %vm2405 = vweird.f32 %v2304
        %vm2406 = vweird.f32 %v2399
        %vm2407 = vmor %vm2405, %vm2406
        %v2408 = vsel %vm2407, %v2399, %v2404
        %v2409 = vrsqrt.pop %v2305
        %v2410 = vmul.f32 %v2409, %v2305
        %v2411 = vmul.f32 %v2410, %v2409
        %v2412 = vmul.f32 0.5, %v2411
        %v2413 = vsub.f32 1.5, %v2412
        %v2414 = vmul.f32 %v2409, %v2413
        %vm2415 = vweird.f32 %v2305
        %vm2416 = vweird.f32 %v2409
        %vm2417 = vmor %vm2415, %vm2416
        %v2418 = vsel %vm2417, %v2409, %v2414
        %v2419 = vrsqrt.pop %v2306
        %v2420 = vmul.f32 %v2419, %v2306
        %v2421 = vmul.f32 %v2420, %v2419
        %v2422 = vmul.f32 0.5, %v2421
        %v2423 = vsub.f32 1.5, %v2422
        %v2424 = vmul.f32 %v2419, %v2423
        %vm2425 = vweird.f32 %v2306
        %vm2426 = vweird.f32 %v2419
        %vm2427 = vmor %vm2425, %vm2426
        %v2428 = vsel %vm2427, %v2419, %v2424
        %v2429 = vrsqrt.pop %v2307
        %v2430 = vmul.f32 %v2429, %v2307
        %v2431 = vmul.f32 %v2430, %v2429
        %v2432 = vmul.f32 0.5, %v2431
        %v2433 = vsub.f32 1.5, %v2432
        %v2434 = vmul.f32 %v2429, %v2433
        %vm2435 = vweird.f32 %v2307
        %vm2436 = vweird.f32 %v2429
        %vm2437 = vmor %vm2435, %vm2436
        %v2438 = vsel %vm2437, %v2429, %v2434
        %v2439 = vrsqrt.pop %v2308
        %v2440 = vmul.f32 %v2439, %v2308
        %v2441 = vmul.f32 %v2440, %v2439
        %v2442 = vmul.f32 0.5, %v2441
        %v2443 = vsub.f32 1.5, %v2442
        %v2444 = vmul.f32 %v2439, %v2443
        %vm2445 = vweird.f32 %v2308
        %vm2446 = vweird.f32 %v2439
        %vm2447 = vmor %vm2445, %vm2446
        %v2448 = vsel %vm2447, %v2439, %v2444
        %v2449 = vrsqrt.pop %v2309
        %v2450 = vmul.f32 %v2449, %v2309
        %v2451 = vmul.f32 %v2450, %v2449
        %v2452 = vmul.f32 0.5, %v2451
        %v2453 = vsub.f32 1.5, %v2452
        %v2454 = vmul.f32 %v2449, %v2453
        %vm2455 = vweird.f32 %v2309
        %vm2456 = vweird.f32 %v2449
        %vm2457 = vmor %vm2455, %vm2456
        %v2458 = vsel %vm2457, %v2449, %v2454
        %v2459 = vrsqrt.pop %v2310
        %v2460 = vmul.f32 %v2459, %v2310
        %v2461 = vmul.f32 %v2460, %v2459
        %v2462 = vmul.f32 0.5, %v2461
        %v2463 = vsub.f32 1.5, %v2462
        %v2464 = vmul.f32 %v2459, %v2463
        %vm2465 = vweird.f32 %v2310
        %vm2466 = vweird.f32 %v2459
        %vm2467 = vmor %vm2465, %vm2466
        %v2468 = vsel %vm2467, %v2459, %v2464
        %v2469 = vrsqrt.pop %v2311
        %v2470 = vmul.f32 %v2469, %v2311
        %v2471 = vmul.f32 %v2470, %v2469
        %v2472 = vmul.f32 0.5, %v2471
        %v2473 = vsub.f32 1.5, %v2472
        %v2474 = vmul.f32 %v2469, %v2473
        %vm2475 = vweird.f32 %v2311
        %vm2476 = vweird.f32 %v2469
        %vm2477 = vmor %vm2475, %vm2476
        %v2478 = vsel %vm2477, %v2469, %v2474
        %v2479 = vrsqrt.pop %v2312
        %v2480 = vmul.f32 %v2479, %v2312
        %v2481 = vmul.f32 %v2480, %v2479
        %v2482 = vmul.f32 0.5, %v2481
        %v2483 = vsub.f32 1.5, %v2482
        %v2484 = vmul.f32 %v2479, %v2483
        %vm2485 = vweird.f32 %v2312
        %vm2486 = vweird.f32 %v2479
        %vm2487 = vmor %vm2485, %vm2486
        %v2488 = vsel %vm2487, %v2479, %v2484
        %v2489 = vrsqrt.pop %v2313
        %v2490 = vmul.f32 %v2489, %v2313
        %v2491 = vmul.f32 %v2490, %v2489
        %v2492 = vmul.f32 0.5, %v2491
        %v2493 = vsub.f32 1.5, %v2492
        %v2494 = vmul.f32 %v2489, %v2493
        %vm2495 = vweird.f32 %v2313
        %vm2496 = vweird.f32 %v2489
        %vm2497 = vmor %vm2495, %vm2496
        %v2498 = vsel %vm2497, %v2489, %v2494
        %v2499 = vrsqrt.pop %v2314
        %v2500 = vmul.f32 %v2499, %v2314
        %v2501 = vmul.f32 %v2500, %v2499
        %v2502 = vmul.f32 0.5, %v2501
        %v2503 = vsub.f32 1.5, %v2502
        %v2504 = vmul.f32 %v2499, %v2503
        %vm2505 = vweird.f32 %v2314
        %vm2506 = vweird.f32 %v2499
        %vm2507 = vmor %vm2505, %vm2506
        %v2508 = vsel %vm2507, %v2499, %v2504
        %v2509 = vrsqrt.pop %v2315
        %v2510 = vmul.f32 %v2509, %v2315
        %v2511 = vmul.f32 %v2510, %v2509
        %v2512 = vmul.f32 0.5, %v2511
        %v2513 = vsub.f32 1.5, %v2512
        %v2514 = vmul.f32 %v2509, %v2513
        %vm2515 = vweird.f32 %v2315
        %vm2516 = vweird.f32 %v2509
        %vm2517 = vmor %vm2515, %vm2516
        %v2518 = vsel %vm2517, %v2509, %v2514
        %v2519 = vrsqrt.pop %v2316
        %v2520 = vmul.f32 %v2519, %v2316
        %v2521 = vmul.f32 %v2520, %v2519
        %v2522 = vmul.f32 0.5, %v2521
        %v2523 = vsub.f32 1.5, %v2522
        %v2524 = vmul.f32 %v2519, %v2523
        %vm2525 = vweird.f32 %v2316
        %vm2526 = vweird.f32 %v2519
        %vm2527 = vmor %vm2525, %vm2526
        %v2528 = vsel %vm2527, %v2519, %v2524
        %v2529 = vrsqrt.pop %v2317
        %v2530 = vmul.f32 %v2529, %v2317
        %v2531 = vmul.f32 %v2530, %v2529
        %v2532 = vmul.f32 0.5, %v2531
        %v2533 = vsub.f32 1.5, %v2532
        %v2534 = vmul.f32 %v2529, %v2533
        %vm2535 = vweird.f32 %v2317
        %vm2536 = vweird.f32 %v2529
        %vm2537 = vmor %vm2535, %vm2536
        %v2538 = vsel %vm2537, %v2529, %v2534
        %v2539 = vrsqrt.pop %v2318
        %v2540 = vmul.f32 %v2539, %v2318
        %v2541 = vmul.f32 %v2540, %v2539
        %v2542 = vmul.f32 0.5, %v2541
        %v2543 = vsub.f32 1.5, %v2542
        %v2544 = vmul.f32 %v2539, %v2543
        %vm2545 = vweird.f32 %v2318
        %vm2546 = vweird.f32 %v2539
        %vm2547 = vmor %vm2545, %vm2546
        %v2548 = vsel %vm2547, %v2539, %v2544
        %v2549 = vrsqrt.pop %v2319
        %v2550 = vmul.f32 %v2549, %v2319
        %v2551 = vmul.f32 %v2550, %v2549
        %v2552 = vmul.f32 0.5, %v2551
        %v2553 = vsub.f32 1.5, %v2552
        %v2554 = vmul.f32 %v2549, %v2553
        %vm2555 = vweird.f32 %v2319
        %vm2556 = vweird.f32 %v2549
        %vm2557 = vmor %vm2555, %vm2556
        %v2558 = vsel %vm2557, %v2549, %v2554
        %v2559 = vrsqrt.pop %v2320
        %v2560 = vmul.f32 %v2559, %v2320
        %v2561 = vmul.f32 %v2560, %v2559
        %v2562 = vmul.f32 0.5, %v2561
        %v2563 = vsub.f32 1.5, %v2562
        %v2564 = vmul.f32 %v2559, %v2563
        %vm2565 = vweird.f32 %v2320
        %vm2566 = vweird.f32 %v2559
        %vm2567 = vmor %vm2565, %vm2566
        %v2568 = vsel %vm2567, %v2559, %v2564
        %v2569 = vrsqrt.pop %v2321
        %v2570 = vmul.f32 %v2569, %v2321
        %v2571 = vmul.f32 %v2570, %v2569
        %v2572 = vmul.f32 0.5, %v2571
        %v2573 = vsub.f32 1.5, %v2572
        %v2574 = vmul.f32 %v2569, %v2573
        %vm2575 = vweird.f32 %v2321
        %vm2576 = vweird.f32 %v2569
        %vm2577 = vmor %vm2575, %vm2576
        %v2578 = vsel %vm2577, %v2569, %v2574
        %v2579 = vrsqrt.pop %v2322
        %v2580 = vmul.f32 %v2579, %v2322
        %v2581 = vmul.f32 %v2580, %v2579
        %v2582 = vmul.f32 0.5, %v2581
        %v2583 = vsub.f32 1.5, %v2582
        %v2584 = vmul.f32 %v2579, %v2583
        %vm2585 = vweird.f32 %v2322
        %vm2586 = vweird.f32 %v2579
        %vm2587 = vmor %vm2585, %vm2586
        %v2588 = vsel %vm2587, %v2579, %v2584
        %v2589 = vrsqrt.pop %v2323
        %v2590 = vmul.f32 %v2589, %v2323
        %v2591 = vmul.f32 %v2590, %v2589
        %v2592 = vmul.f32 0.5, %v2591
        %v2593 = vsub.f32 1.5, %v2592
        %v2594 = vmul.f32 %v2589, %v2593
        %vm2595 = vweird.f32 %v2323
        %vm2596 = vweird.f32 %v2589
        %vm2597 = vmor %vm2595, %vm2596
        %v2598 = vsel %vm2597, %v2589, %v2594
        %v2599 = vrsqrt.pop %v2324
        %v2600 = vmul.f32 %v2599, %v2324
        %v2601 = vmul.f32 %v2600, %v2599
        %v2602 = vmul.f32 0.5, %v2601
        %v2603 = vsub.f32 1.5, %v2602
        %v2604 = vmul.f32 %v2599, %v2603
        %vm2605 = vweird.f32 %v2324
        %vm2606 = vweird.f32 %v2599
        %vm2607 = vmor %vm2605, %vm2606
        %v2608 = vsel %vm2607, %v2599, %v2604
        %v2609 = vrsqrt.pop %v2325
        %v2610 = vmul.f32 %v2609, %v2325
        %v2611 = vmul.f32 %v2610, %v2609
        %v2612 = vmul.f32 0.5, %v2611
        %v2613 = vsub.f32 1.5, %v2612
        %v2614 = vmul.f32 %v2609, %v2613
        %vm2615 = vweird.f32 %v2325
        %vm2616 = vweird.f32 %v2609
        %vm2617 = vmor %vm2615, %vm2616
        %v2618 = vsel %vm2617, %v2609, %v2614
        %v2619 = vrsqrt.pop %v2326
        %v2620 = vmul.f32 %v2619, %v2326
        %v2621 = vmul.f32 %v2620, %v2619
        %v2622 = vmul.f32 0.5, %v2621
        %v2623 = vsub.f32 1.5, %v2622
        %v2624 = vmul.f32 %v2619, %v2623
        %vm2625 = vweird.f32 %v2326
        %vm2626 = vweird.f32 %v2619
        %vm2627 = vmor %vm2625, %vm2626
        %v2628 = vsel %vm2627, %v2619, %v2624
        %v2629 = vrsqrt.pop %v2327
        %v2630 = vmul.f32 %v2629, %v2327
        %v2631 = vmul.f32 %v2630, %v2629
        %v2632 = vmul.f32 0.5, %v2631
        %v2633 = vsub.f32 1.5, %v2632
        %v2634 = vmul.f32 %v2629, %v2633
        %vm2635 = vweird.f32 %v2327
        %vm2636 = vweird.f32 %v2629
        %vm2637 = vmor %vm2635, %vm2636
        %v2638 = vsel %vm2637, %v2629, %v2634
        %v2639 = vrsqrt.pop %v2328
        %v2640 = vmul.f32 %v2639, %v2328
        %v2641 = vmul.f32 %v2640, %v2639
        %v2642 = vmul.f32 0.5, %v2641
        %v2643 = vsub.f32 1.5, %v2642
        %v2644 = vmul.f32 %v2639, %v2643
        %vm2645 = vweird.f32 %v2328
        %vm2646 = vweird.f32 %v2639
        %vm2647 = vmor %vm2645, %vm2646
        %v2648 = vsel %vm2647, %v2639, %v2644
        %v2649 = vmul.f32 %v2105, %v2338
        %v2650 = vmul.f32 %v2106, %v2348
        %v2651 = vmul.f32 %v2107, %v2358
        %v2652 = vmul.f32 %v2108, %v2368
        %v2653 = vmul.f32 %v2109, %v2378
        %v2654 = vmul.f32 %v2110, %v2388
        %v2655 = vmul.f32 %v2111, %v2398
        %v2656 = vmul.f32 %v2112, %v2408
        %v2657 = vmul.f32 %v2113, %v2418
        %v2658 = vmul.f32 %v2114, %v2428
        %v2659 = vmul.f32 %v2115, %v2438
        %v2660 = vmul.f32 %v2116, %v2448
        %v2661 = vmul.f32 %v2117, %v2458
        %v2662 = vmul.f32 %v2118, %v2468
        %v2663 = vmul.f32 %v2119, %v2478
        %v2664 = vmul.f32 %v2120, %v2488
        %v2665 = vmul.f32 %v2121, %v2498
        %v2666 = vmul.f32 %v2122, %v2508
        %v2667 = vmul.f32 %v2123, %v2518
        %v2668 = vmul.f32 %v2124, %v2528
        %v2669 = vmul.f32 %v2125, %v2538
        %v2670 = vmul.f32 %v2126, %v2548
        %v2671 = vmul.f32 %v2127, %v2558
        %v2672 = vmul.f32 %v2128, %v2568
        %v2673 = vmul.f32 %v2129, %v2578
        %v2674 = vmul.f32 %v2130, %v2588
        %v2675 = vmul.f32 %v2131, %v2598
        %v2676 = vmul.f32 %v2132, %v2608
        %v2677 = vmul.f32 %v2133, %v2618
        %v2678 = vmul.f32 %v2134, %v2628
        %v2679 = vmul.f32 %v2135, %v2638
        %v2680 = vmul.f32 %v2136, %v2648
        %v2681 = vld [vmem:[%s3] sm:$0x1]
        %v2683 = vperm.slane %v2681, 0
        %v2685 = vmul.f32 %v2649, %v2683
        %v2686 = vmul.f32 %v2650, %v2683
        %v2687 = vmul.f32 %v2651, %v2683
        %v2688 = vmul.f32 %v2652, %v2683
        %v2689 = vmul.f32 %v2653, %v2683
        %v2690 = vmul.f32 %v2654, %v2683
        %v2691 = vmul.f32 %v2655, %v2683
        %v2692 = vmul.f32 %v2656, %v2683
        %v2693 = vmul.f32 %v2657, %v2683
        %v2694 = vmul.f32 %v2658, %v2683
        %v2695 = vmul.f32 %v2659, %v2683
        %v2696 = vmul.f32 %v2660, %v2683
        %v2697 = vmul.f32 %v2661, %v2683
        %v2698 = vmul.f32 %v2662, %v2683
        %v2699 = vmul.f32 %v2663, %v2683
        %v2700 = vmul.f32 %v2664, %v2683
        %v2701 = vmul.f32 %v2665, %v2683
        %v2702 = vmul.f32 %v2666, %v2683
        %v2703 = vmul.f32 %v2667, %v2683
        %v2704 = vmul.f32 %v2668, %v2683
        %v2705 = vmul.f32 %v2669, %v2683
        %v2706 = vmul.f32 %v2670, %v2683
        %v2707 = vmul.f32 %v2671, %v2683
        %v2708 = vmul.f32 %v2672, %v2683
        %v2709 = vmul.f32 %v2673, %v2683
        %v2710 = vmul.f32 %v2674, %v2683
        %v2711 = vmul.f32 %v2675, %v2683
        %v2712 = vmul.f32 %v2676, %v2683
        %v2713 = vmul.f32 %v2677, %v2683
        %v2714 = vmul.f32 %v2678, %v2683
        %v2715 = vmul.f32 %v2679, %v2683
        %v2716 = vmul.f32 %v2680, %v2683
        %v2717 = vld [vmem:[%s4] sm:$0x1]
        %v2719 = vperm.slane %v2717, 0
        %v2721 = vadd.f32 %v2685, %v2719
        %v2722 = vadd.f32 %v2686, %v2719
        %v2723 = vadd.f32 %v2687, %v2719
        %v2724 = vadd.f32 %v2688, %v2719
        %v2725 = vadd.f32 %v2689, %v2719
        %v2726 = vadd.f32 %v2690, %v2719
        %v2727 = vadd.f32 %v2691, %v2719
        %v2728 = vadd.f32 %v2692, %v2719
        %v2729 = vadd.f32 %v2693, %v2719
        %v2730 = vadd.f32 %v2694, %v2719
        %v2731 = vadd.f32 %v2695, %v2719
        %v2732 = vadd.f32 %v2696, %v2719
        %v2733 = vadd.f32 %v2697, %v2719
        %v2734 = vadd.f32 %v2698, %v2719
        %v2735 = vadd.f32 %v2699, %v2719
        %v2736 = vadd.f32 %v2700, %v2719
        %v2737 = vadd.f32 %v2701, %v2719
        %v2738 = vadd.f32 %v2702, %v2719
        %v2739 = vadd.f32 %v2703, %v2719
        %v2740 = vadd.f32 %v2704, %v2719
        %v2741 = vadd.f32 %v2705, %v2719
        %v2742 = vadd.f32 %v2706, %v2719
        %v2743 = vadd.f32 %v2707, %v2719
        %v2744 = vadd.f32 %v2708, %v2719
        %v2745 = vadd.f32 %v2709, %v2719
        %v2746 = vadd.f32 %v2710, %v2719
        %v2747 = vadd.f32 %v2711, %v2719
        %v2748 = vadd.f32 %v2712, %v2719
        %v2749 = vadd.f32 %v2713, %v2719
        %v2750 = vadd.f32 %v2714, %v2719
        %v2751 = vadd.f32 %v2715, %v2719
        %v2752 = vadd.f32 %v2716, %v2719
        %v2753 = vld [vmem:[%s5] sm:$0xff]
        %v2754 = vld [vmem:[%s5 + $0x8] sm:$0xff]
        %v2755 = vld [vmem:[%s5 + $0x10] sm:$0xff]
        %v2756 = vld [vmem:[%s5 + $0x18] sm:$0xff]
        %v2757 = vld [vmem:[%s5 + $0x20] sm:$0xff]
        %v2758 = vld [vmem:[%s5 + $0x28] sm:$0xff]
        %v2759 = vld [vmem:[%s5 + $0x30] sm:$0xff]
        %v2760 = vld [vmem:[%s5 + $0x38] sm:$0xff]
        %v2761 = vld [vmem:[%s6] sm:$0x1]
        %v2763 = vperm.slane %v2761, 0
        %v2766 = vsel %vm1969, %v2721, 0
        %v2769 = vsel %vm1969, %v2722, 0
        %v2772 = vsel %vm1969, %v2723, 0
        %v2775 = vsel %vm1969, %v2724, 0
        %v2778 = vsel %vm1969, %v2725, 0
        %v2781 = vsel %vm1969, %v2726, 0
        %v2784 = vsel %vm1969, %v2727, 0
        %v2787 = vsel %vm1969, %v2728, 0
        %v2790 = vsel %vm1969, %v2729, 0
        %v2793 = vsel %vm1969, %v2730, 0
        %v2796 = vsel %vm1969, %v2731, 0
        %v2799 = vsel %vm1969, %v2732, 0
        %v2802 = vsel %vm1969, %v2733, 0
        %v2805 = vsel %vm1969, %v2734, 0
        %v2808 = vsel %vm1969, %v2735, 0
        %v2811 = vsel %vm1969, %v2736, 0
        %v2814 = vsel %vm1969, %v2737, 0
        %v2817 = vsel %vm1969, %v2738, 0
        %v2820 = vsel %vm1969, %v2739, 0
        %v2823 = vsel %vm1969, %v2740, 0
        %v2826 = vsel %vm1969, %v2741, 0
        %v2829 = vsel %vm1969, %v2742, 0
        %v2832 = vsel %vm1969, %v2743, 0
        %v2835 = vsel %vm1969, %v2744, 0
        %v2838 = vsel %vm1969, %v2745, 0
        %v2841 = vsel %vm1969, %v2746, 0
        %v2844 = vsel %vm1969, %v2747, 0
        %v2847 = vsel %vm1969, %v2748, 0
        %v2850 = vsel %vm1969, %v2749, 0
        %v2853 = vsel %vm1969, %v2750, 0
        %v2856 = vsel %vm1969, %v2751, 0
        %v2859 = vsel %vm1969, %v2752, 0
        %2861 = vmatpush.msra.mxu0 0.0
        %2862 = vmatpush.msra.mxu0 0.0
        %2863 = vmatpush.msra.mxu0 0.0
        %2864 = vmatpush.msra.mxu0 0.0
        %2865 = vmatpush.msra.mxu0 0.0
        %2866 = vmatpush.msra.mxu0 0.0
        %2867 = vmatpush.msra.mxu0 0.0
        %2868 = vmatpush.msra.mxu0 0.0
        %2869 = vmatpush.msra.mxu0 %v2760
        %2870 = vmatpush.msra.mxu0 %v2759
        %2871 = vmatpush.msra.mxu0 %v2758
        %2872 = vmatpush.msra.mxu0 %v2757
        %2873 = vmatpush.msra.mxu0 %v2756
        %2874 = vmatpush.msra.mxu0 %v2755
        %2875 = vmatpush.msra.mxu0 %v2754
        %2876 = vmatpush.msra.mxu0 %v2753
        %2877 = vmatmul.f32.gmra.mxu0 %v2766
        %v2878 = vpop.f32.mrf.mxu0
        %v2879 = vadd.f32 %v2763, %v2878
        %2880 = vmatmul.f32.gmra.mxu0 %v2769
        %v2881 = vpop.f32.mrf.mxu0
        %v2882 = vadd.f32 %v2763, %v2881
        %2883 = vmatmul.f32.gmra.mxu0 %v2772
        %v2884 = vpop.f32.mrf.mxu0
        %v2885 = vadd.f32 %v2763, %v2884
        %2886 = vmatmul.f32.gmra.mxu0 %v2775
        %v2887 = vpop.f32.mrf.mxu0
        %v2888 = vadd.f32 %v2763, %v2887
        %2889 = vmatmul.f32.gmra.mxu0 %v2778
        %v2890 = vpop.f32.mrf.mxu0
        %v2891 = vadd.f32 %v2763, %v2890
        %2892 = vmatmul.f32.gmra.mxu0 %v2781
        %v2893 = vpop.f32.mrf.mxu0
        %v2894 = vadd.f32 %v2763, %v2893
        %2895 = vmatmul.f32.gmra.mxu0 %v2784
        %v2896 = vpop.f32.mrf.mxu0
        %v2897 = vadd.f32 %v2763, %v2896
        %2898 = vmatmul.f32.gmra.mxu0 %v2787
        %v2899 = vpop.f32.mrf.mxu0
        %v2900 = vadd.f32 %v2763, %v2899
        %2901 = vmatmul.f32.gmra.mxu0 %v2790
        %v2902 = vpop.f32.mrf.mxu0
        %v2903 = vadd.f32 %v2763, %v2902
        %2904 = vmatmul.f32.gmra.mxu0 %v2793
        %v2905 = vpop.f32.mrf.mxu0
        %v2906 = vadd.f32 %v2763, %v2905
        %2907 = vmatmul.f32.gmra.mxu0 %v2796
        %v2908 = vpop.f32.mrf.mxu0
        %v2909 = vadd.f32 %v2763, %v2908
        %2910 = vmatmul.f32.gmra.mxu0 %v2799
        %v2911 = vpop.f32.mrf.mxu0
        %v2912 = vadd.f32 %v2763, %v2911
        %2913 = vmatmul.f32.gmra.mxu0 %v2802
        %v2914 = vpop.f32.mrf.mxu0
        %v2915 = vadd.f32 %v2763, %v2914
        %2916 = vmatmul.f32.gmra.mxu0 %v2805
        %v2917 = vpop.f32.mrf.mxu0
        %v2918 = vadd.f32 %v2763, %v2917
        %2919 = vmatmul.f32.gmra.mxu0 %v2808
        %v2920 = vpop.f32.mrf.mxu0
        %v2921 = vadd.f32 %v2763, %v2920
        %2922 = vmatmul.f32.gmra.mxu0 %v2811
        %v2923 = vpop.f32.mrf.mxu0
        %v2924 = vadd.f32 %v2763, %v2923
        %2925 = vmatmul.f32.gmra.mxu0 %v2814
        %v2926 = vpop.f32.mrf.mxu0
        %v2927 = vadd.f32 %v2763, %v2926
        %2928 = vmatmul.f32.gmra.mxu0 %v2817
        %v2929 = vpop.f32.mrf.mxu0
        %v2930 = vadd.f32 %v2763, %v2929
        %2931 = vmatmul.f32.gmra.mxu0 %v2820
        %v2932 = vpop.f32.mrf.mxu0
        %v2933 = vadd.f32 %v2763, %v2932
        %2934 = vmatmul.f32.gmra.mxu0 %v2823
        %v2935 = vpop.f32.mrf.mxu0
        %v2936 = vadd.f32 %v2763, %v2935
        %2937 = vmatmul.f32.gmra.mxu0 %v2826
        %v2938 = vpop.f32.mrf.mxu0
        %v2939 = vadd.f32 %v2763, %v2938
        %2940 = vmatmul.f32.gmra.mxu0 %v2829
        %v2941 = vpop.f32.mrf.mxu0
        %v2942 = vadd.f32 %v2763, %v2941
        %2943 = vmatmul.f32.gmra.mxu0 %v2832
        %v2944 = vpop.f32.mrf.mxu0
        %v2945 = vadd.f32 %v2763, %v2944
        %2946 = vmatmul.f32.gmra.mxu0 %v2835
        %v2947 = vpop.f32.mrf.mxu0
        %v2948 = vadd.f32 %v2763, %v2947
        %2949 = vmatmul.f32.gmra.mxu0 %v2838
        %v2950 = vpop.f32.mrf.mxu0
        %v2951 = vadd.f32 %v2763, %v2950
        %2952 = vmatmul.f32.gmra.mxu0 %v2841
        %v2953 = vpop.f32.mrf.mxu0
        %v2954 = vadd.f32 %v2763, %v2953
        %2955 = vmatmul.f32.gmra.mxu0 %v2844
        %v2956 = vpop.f32.mrf.mxu0
        %v2957 = vadd.f32 %v2763, %v2956
        %2958 = vmatmul.f32.gmra.mxu0 %v2847
        %v2959 = vpop.f32.mrf.mxu0
        %v2960 = vadd.f32 %v2763, %v2959
        %2961 = vmatmul.f32.gmra.mxu0 %v2850
        %v2962 = vpop.f32.mrf.mxu0
        %v2963 = vadd.f32 %v2763, %v2962
        %2964 = vmatmul.f32.gmra.mxu0 %v2853
        %v2965 = vpop.f32.mrf.mxu0
        %v2966 = vadd.f32 %v2763, %v2965
        %2967 = vmatmul.f32.gmra.mxu0 %v2856
        %v2968 = vpop.f32.mrf.mxu0
        %v2969 = vadd.f32 %v2763, %v2968
        %2970 = vmatmul.f32.gmra.mxu0 %v2859
        %v2971 = vpop.f32.mrf.mxu0
        %v2972 = vadd.f32 %v2763, %v2971
        %2973 = vdwg.mxu0
        %v2974 = vld [vmem:[%s7] sm:$0xff]
        %v2975 = vld [vmem:[%s7 + $0x8] sm:$0xff]
        %v2976 = vld [vmem:[%s7 + $0x10] sm:$0xff]
        %v2977 = vld [vmem:[%s7 + $0x18] sm:$0xff]
        %v2978 = vld [vmem:[%s7 + $0x20] sm:$0xff]
        %v2979 = vld [vmem:[%s7 + $0x28] sm:$0xff]
        %v2980 = vld [vmem:[%s7 + $0x30] sm:$0xff]
        %v2981 = vld [vmem:[%s7 + $0x38] sm:$0xff]
        %v2982 = vld [vmem:[%s8] sm:$0x1]
        %v2984 = vperm.slane %v2982, 0
        %v2987 = vsel %vm1969, %v2879, 0
        %v2990 = vsel %vm1969, %v2882, 0
        %v2993 = vsel %vm1969, %v2885, 0
        %v2996 = vsel %vm1969, %v2888, 0
        %v2999 = vsel %vm1969, %v2891, 0
        %v3002 = vsel %vm1969, %v2894, 0
        %v3005 = vsel %vm1969, %v2897, 0
        %v3008 = vsel %vm1969, %v2900, 0
        %v3011 = vsel %vm1969, %v2903, 0
        %v3014 = vsel %vm1969, %v2906, 0
        %v3017 = vsel %vm1969, %v2909, 0
        %v3020 = vsel %vm1969, %v2912, 0
        %v3023 = vsel %vm1969, %v2915, 0
        %v3026 = vsel %vm1969, %v2918, 0
        %v3029 = vsel %vm1969, %v2921, 0
        %v3032 = vsel %vm1969, %v2924, 0
        %v3035 = vsel %vm1969, %v2927, 0
        %v3038 = vsel %vm1969, %v2930, 0
        %v3041 = vsel %vm1969, %v2933, 0
        %v3044 = vsel %vm1969, %v2936, 0
        %v3047 = vsel %vm1969, %v2939, 0
        %v3050 = vsel %vm1969, %v2942, 0
        %v3053 = vsel %vm1969, %v2945, 0
        %v3056 = vsel %vm1969, %v2948, 0
        %v3059 = vsel %vm1969, %v2951, 0
        %v3062 = vsel %vm1969, %v2954, 0
        %v3065 = vsel %vm1969, %v2957, 0
        %v3068 = vsel %vm1969, %v2960, 0
        %v3071 = vsel %vm1969, %v2963, 0
        %v3074 = vsel %vm1969, %v2966, 0
        %v3077 = vsel %vm1969, %v2969, 0
        %v3080 = vsel %vm1969, %v2972, 0
        %3082 = vmatpush.msra.mxu0 0.0
        %3083 = vmatpush.msra.mxu0 0.0
        %3084 = vmatpush.msra.mxu0 0.0
        %3085 = vmatpush.msra.mxu0 0.0
        %3086 = vmatpush.msra.mxu0 0.0
        %3087 = vmatpush.msra.mxu0 0.0
        %3088 = vmatpush.msra.mxu0 0.0
        %3089 = vmatpush.msra.mxu0 0.0
        %3090 = vmatpush.msra.mxu0 %v2981
        %3091 = vmatpush.msra.mxu0 %v2980
        %3092 = vmatpush.msra.mxu0 %v2979
        %3093 = vmatpush.msra.mxu0 %v2978
        %3094 = vmatpush.msra.mxu0 %v2977
        %3095 = vmatpush.msra.mxu0 %v2976
        %3096 = vmatpush.msra.mxu0 %v2975
        %3097 = vmatpush.msra.mxu0 %v2974
        %3098 = vmatmul.f32.gmra.mxu0 %v2987
        %v3099 = vpop.f32.mrf.mxu0
        %v3100 = vadd.f32 %v2984, %v3099
        %3101 = vmatmul.f32.gmra.mxu0 %v2990
        %v3102 = vpop.f32.mrf.mxu0
        %v3103 = vadd.f32 %v2984, %v3102
        %3104 = vmatmul.f32.gmra.mxu0 %v2993
        %v3105 = vpop.f32.mrf.mxu0
        %v3106 = vadd.f32 %v2984, %v3105
        %3107 = vmatmul.f32.gmra.mxu0 %v2996
        %v3108 = vpop.f32.mrf.mxu0
        %v3109 = vadd.f32 %v2984, %v3108
        %3110 = vmatmul.f32.gmra.mxu0 %v2999
        %v3111 = vpop.f32.mrf.mxu0
        %v3112 = vadd.f32 %v2984, %v3111
        %3113 = vmatmul.f32.gmra.mxu0 %v3002
        %v3114 = vpop.f32.mrf.mxu0
        %v3115 = vadd.f32 %v2984, %v3114
        %3116 = vmatmul.f32.gmra.mxu0 %v3005
        %v3117 = vpop.f32.mrf.mxu0
        %v3118 = vadd.f32 %v2984, %v3117
        %3119 = vmatmul.f32.gmra.mxu0 %v3008
        %v3120 = vpop.f32.mrf.mxu0
        %v3121 = vadd.f32 %v2984, %v3120
        %3122 = vmatmul.f32.gmra.mxu0 %v3011
        %v3123 = vpop.f32.mrf.mxu0
        %v3124 = vadd.f32 %v2984, %v3123
        %3125 = vmatmul.f32.gmra.mxu0 %v3014
        %v3126 = vpop.f32.mrf.mxu0
        %v3127 = vadd.f32 %v2984, %v3126
        %3128 = vmatmul.f32.gmra.mxu0 %v3017
        %v3129 = vpop.f32.mrf.mxu0
        %v3130 = vadd.f32 %v2984, %v3129
        %3131 = vmatmul.f32.gmra.mxu0 %v3020
        %v3132 = vpop.f32.mrf.mxu0
        %v3133 = vadd.f32 %v2984, %v3132
        %3134 = vmatmul.f32.gmra.mxu0 %v3023
        %v3135 = vpop.f32.mrf.mxu0
        %v3136 = vadd.f32 %v2984, %v3135
        %3137 = vmatmul.f32.gmra.mxu0 %v3026
        %v3138 = vpop.f32.mrf.mxu0
        %v3139 = vadd.f32 %v2984, %v3138
        %3140 = vmatmul.f32.gmra.mxu0 %v3029
        %v3141 = vpop.f32.mrf.mxu0
        %v3142 = vadd.f32 %v2984, %v3141
        %3143 = vmatmul.f32.gmra.mxu0 %v3032
        %v3144 = vpop.f32.mrf.mxu0
        %v3145 = vadd.f32 %v2984, %v3144
        %3146 = vmatmul.f32.gmra.mxu0 %v3035
        %v3147 = vpop.f32.mrf.mxu0
        %v3148 = vadd.f32 %v2984, %v3147
        %3149 = vmatmul.f32.gmra.mxu0 %v3038
        %v3150 = vpop.f32.mrf.mxu0
        %v3151 = vadd.f32 %v2984, %v3150
        %3152 = vmatmul.f32.gmra.mxu0 %v3041
        %v3153 = vpop.f32.mrf.mxu0
        %v3154 = vadd.f32 %v2984, %v3153
        %3155 = vmatmul.f32.gmra.mxu0 %v3044
        %v3156 = vpop.f32.mrf.mxu0
        %v3157 = vadd.f32 %v2984, %v3156
        %3158 = vmatmul.f32.gmra.mxu0 %v3047
        %v3159 = vpop.f32.mrf.mxu0
        %v3160 = vadd.f32 %v2984, %v3159
        %3161 = vmatmul.f32.gmra.mxu0 %v3050
        %v3162 = vpop.f32.mrf.mxu0
        %v3163 = vadd.f32 %v2984, %v3162
        %3164 = vmatmul.f32.gmra.mxu0 %v3053
        %v3165 = vpop.f32.mrf.mxu0
        %v3166 = vadd.f32 %v2984, %v3165
        %3167 = vmatmul.f32.gmra.mxu0 %v3056
        %v3168 = vpop.f32.mrf.mxu0
        %v3169 = vadd.f32 %v2984, %v3168
        %3170 = vmatmul.f32.gmra.mxu0 %v3059
        %v3171 = vpop.f32.mrf.mxu0
        %v3172 = vadd.f32 %v2984, %v3171
        %3173 = vmatmul.f32.gmra.mxu0 %v3062
        %v3174 = vpop.f32.mrf.mxu0
        %v3175 = vadd.f32 %v2984, %v3174
        %3176 = vmatmul.f32.gmra.mxu0 %v3065
        %v3177 = vpop.f32.mrf.mxu0
        %v3178 = vadd.f32 %v2984, %v3177
        %3179 = vmatmul.f32.gmra.mxu0 %v3068
        %v3180 = vpop.f32.mrf.mxu0
        %v3181 = vadd.f32 %v2984, %v3180
        %3182 = vmatmul.f32.gmra.mxu0 %v3071
        %v3183 = vpop.f32.mrf.mxu0
        %v3184 = vadd.f32 %v2984, %v3183
        %3185 = vmatmul.f32.gmra.mxu0 %v3074
        %v3186 = vpop.f32.mrf.mxu0
        %v3187 = vadd.f32 %v2984, %v3186
        %3188 = vmatmul.f32.gmra.mxu0 %v3077
        %v3189 = vpop.f32.mrf.mxu0
        %v3190 = vadd.f32 %v2984, %v3189
        %3191 = vmatmul.f32.gmra.mxu0 %v3080
        %v3192 = vpop.f32.mrf.mxu0
        %v3193 = vadd.f32 %v2984, %v3192
        %3194 = vdwg.mxu0
        %3195 = vmax.xlane.f32.xlu0 %v3100
        %v3196 = vpop.xlane.xlu0 %3195
        %3197 = vmax.xlane.f32.xlu0 %v3103
        %v3198 = vpop.xlane.xlu0 %3197
        %3199 = vmax.xlane.f32.xlu0 %v3106
        %v3200 = vpop.xlane.xlu0 %3199
        %3201 = vmax.xlane.f32.xlu0 %v3109
        %v3202 = vpop.xlane.xlu0 %3201
        %3203 = vmax.xlane.f32.xlu0 %v3112
        %v3204 = vpop.xlane.xlu0 %3203
        %3205 = vmax.xlane.f32.xlu0 %v3115
        %v3206 = vpop.xlane.xlu0 %3205
        %3207 = vmax.xlane.f32.xlu0 %v3118
        %v3208 = vpop.xlane.xlu0 %3207
        %3209 = vmax.xlane.f32.xlu0 %v3121
        %v3210 = vpop.xlane.xlu0 %3209
        %3211 = vmax.xlane.f32.xlu0 %v3124
        %v3212 = vpop.xlane.xlu0 %3211
        %3213 = vmax.xlane.f32.xlu0 %v3127
        %v3214 = vpop.xlane.xlu0 %3213
        %3215 = vmax.xlane.f32.xlu0 %v3130
        %v3216 = vpop.xlane.xlu0 %3215
        %3217 = vmax.xlane.f32.xlu0 %v3133
        %v3218 = vpop.xlane.xlu0 %3217
        %3219 = vmax.xlane.f32.xlu0 %v3136
        %v3220 = vpop.xlane.xlu0 %3219
        %3221 = vmax.xlane.f32.xlu0 %v3139
        %v3222 = vpop.xlane.xlu0 %3221
        %3223 = vmax.xlane.f32.xlu0 %v3142
        %v3224 = vpop.xlane.xlu0 %3223
        %3225 = vmax.xlane.f32.xlu0 %v3145
        %v3226 = vpop.xlane.xlu0 %3225
        %3227 = vmax.xlane.f32.xlu0 %v3148
        %v3228 = vpop.xlane.xlu0 %3227
        %3229 = vmax.xlane.f32.xlu0 %v3151
        %v3230 = vpop.xlane.xlu0 %3229
        %3231 = vmax.xlane.f32.xlu0 %v3154
        %v3232 = vpop.xlane.xlu0 %3231
        %3233 = vmax.xlane.f32.xlu0 %v3157
        %v3234 = vpop.xlane.xlu0 %3233
        %3235 = vmax.xlane.f32.xlu0 %v3160
        %v3236 = vpop.xlane.xlu0 %3235
        %3237 = vmax.xlane.f32.xlu0 %v3163
        %v3238 = vpop.xlane.xlu0 %3237
        %3239 = vmax.xlane.f32.xlu0 %v3166
        %v3240 = vpop.xlane.xlu0 %3239
        %3241 = vmax.xlane.f32.xlu0 %v3169
        %v3242 = vpop.xlane.xlu0 %3241
        %3243 = vmax.xlane.f32.xlu0 %v3172
        %v3244 = vpop.xlane.xlu0 %3243
        %3245 = vmax.xlane.f32.xlu0 %v3175
        %v3246 = vpop.xlane.xlu0 %3245
        %3247 = vmax.xlane.f32.xlu0 %v3178
        %v3248 = vpop.xlane.xlu0 %3247
        %3249 = vmax.xlane.f32.xlu0 %v3181
        %v3250 = vpop.xlane.xlu0 %3249
        %3251 = vmax.xlane.f32.xlu0 %v3184
        %v3252 = vpop.xlane.xlu0 %3251
        %3253 = vmax.xlane.f32.xlu0 %v3187
        %v3254 = vpop.xlane.xlu0 %3253
        %3255 = vmax.xlane.f32.xlu0 %v3190
        %v3256 = vpop.xlane.xlu0 %3255
        %3257 = vmax.xlane.f32.xlu0 %v3193
        %v3258 = vpop.xlane.xlu0 %3257
        %v3259 = vsub.f32 %v3100, %v3196
        %v3260 = vsub.f32 %v3103, %v3198
        %v3261 = vsub.f32 %v3106, %v3200
        %v3262 = vsub.f32 %v3109, %v3202
        %v3263 = vsub.f32 %v3112, %v3204
        %v3264 = vsub.f32 %v3115, %v3206
        %v3265 = vsub.f32 %v3118, %v3208
        %v3266 = vsub.f32 %v3121, %v3210
        %v3267 = vsub.f32 %v3124, %v3212
        %v3268 = vsub.f32 %v3127, %v3214
        %v3269 = vsub.f32 %v3130, %v3216
        %v3270 = vsub.f32 %v3133, %v3218
        %v3271 = vsub.f32 %v3136, %v3220
        %v3272 = vsub.f32 %v3139, %v3222
        %v3273 = vsub.f32 %v3142, %v3224
        %v3274 = vsub.f32 %v3145, %v3226
        %v3275 = vsub.f32 %v3148, %v3228
        %v3276 = vsub.f32 %v3151, %v3230
        %v3277 = vsub.f32 %v3154, %v3232
        %v3278 = vsub.f32 %v3157, %v3234
        %v3279 = vsub.f32 %v3160, %v3236
        %v3280 = vsub.f32 %v3163, %v3238
        %v3281 = vsub.f32 %v3166, %v3240
        %v3282 = vsub.f32 %v3169, %v3242
        %v3283 = vsub.f32 %v3172, %v3244
        %v3284 = vsub.f32 %v3175, %v3246
        %v3285 = vsub.f32 %v3178, %v3248
        %v3286 = vsub.f32 %v3181, %v3250
        %v3287 = vsub.f32 %v3184, %v3252
        %v3288 = vsub.f32 %v3187, %v3254
        %v3289 = vsub.f32 %v3190, %v3256
        %v3290 = vsub.f32 %v3193, %v3258
        %v3291 = vmul.f32 %v3259, 1.442695
        %v3292 = vpow.pop %v3291
        %v3293 = vmul.f32 %v3260, 1.442695
        %v3294 = vpow.pop %v3293
        %v3295 = vmul.f32 %v3261, 1.442695
        %v3296 = vpow.pop %v3295
        %v3297 = vmul.f32 %v3262, 1.442695
        %v3298 = vpow.pop %v3297
        %v3299 = vmul.f32 %v3263, 1.442695
        %v3300 = vpow.pop %v3299
        %v3301 = vmul.f32 %v3264, 1.442695
        %v3302 = vpow.pop %v3301
        %v3303 = vmul.f32 %v3265, 1.442695
        %v3304 = vpow.pop %v3303
        %v3305 = vmul.f32 %v3266, 1.442695
        %v3306 = vpow.pop %v3305
        %v3307 = vmul.f32 %v3267, 1.442695
        %v3308 = vpow.pop %v3307
        %v3309 = vmul.f32 %v3268, 1.442695
        %v3310 = vpow.pop %v3309
        %v3311 = vmul.f32 %v3269, 1.442695
        %v3312 = vpow.pop %v3311
        %v3313 = vmul.f32 %v3270, 1.442695
        %v3314 = vpow.pop %v3313
        %v3315 = vmul.f32 %v3271, 1.442695
        %v3316 = vpow.pop %v3315
        %v3317 = vmul.f32 %v3272, 1.442695
        %v3318 = vpow.pop %v3317
        %v3319 = vmul.f32 %v3273, 1.442695
        %v3320 = vpow.pop %v3319
        %v3321 = vmul.f32 %v3274, 1.442695
        %v3322 = vpow.pop %v3321
        %v3323 = vmul.f32 %v3275, 1.442695
        %v3324 = vpow.pop %v3323
        %v3325 = vmul.f32 %v3276, 1.442695
        %v3326 = vpow.pop %v3325
        %v3327 = vmul.f32 %v3277, 1.442695
        %v3328 = vpow.pop %v3327
        %v3329 = vmul.f32 %v3278, 1.442695
        %v3330 = vpow.pop %v3329
        %v3331 = vmul.f32 %v3279, 1.442695
        %v3332 = vpow.pop %v3331
        %v3333 = vmul.f32 %v3280, 1.442695
        %v3334 = vpow.pop %v3333
        %v3335 = vmul.f32 %v3281, 1.442695
        %v3336 = vpow.pop %v3335
        %v3337 = vmul.f32 %v3282, 1.442695
        %v3338 = vpow.pop %v3337
        %v3339 = vmul.f32 %v3283, 1.442695
        %v3340 = vpow.pop %v3339
        %v3341 = vmul.f32 %v3284, 1.442695
        %v3342 = vpow.pop %v3341
        %v3343 = vmul.f32 %v3285, 1.442695
        %v3344 = vpow.pop %v3343
        %v3345 = vmul.f32 %v3286, 1.442695
        %v3346 = vpow.pop %v3345
        %v3347 = vmul.f32 %v3287, 1.442695
        %v3348 = vpow.pop %v3347
        %v3349 = vmul.f32 %v3288, 1.442695
        %v3350 = vpow.pop %v3349
        %v3351 = vmul.f32 %v3289, 1.442695
        %v3352 = vpow.pop %v3351
        %v3353 = vmul.f32 %v3290, 1.442695
        %v3354 = vpow.pop %v3353
        %3355 = vadd.xlane.f32.xlu0 %v3292
        %v3356 = vpop.xlane.xlu0 %3355
        %3357 = vadd.xlane.f32.xlu0 %v3294
        %v3358 = vpop.xlane.xlu0 %3357
        %3359 = vadd.xlane.f32.xlu0 %v3296
        %v3360 = vpop.xlane.xlu0 %3359
        %3361 = vadd.xlane.f32.xlu0 %v3298
        %v3362 = vpop.xlane.xlu0 %3361
        %3363 = vadd.xlane.f32.xlu0 %v3300
        %v3364 = vpop.xlane.xlu0 %3363
        %3365 = vadd.xlane.f32.xlu0 %v3302
        %v3366 = vpop.xlane.xlu0 %3365
        %3367 = vadd.xlane.f32.xlu0 %v3304
        %v3368 = vpop.xlane.xlu0 %3367
        %3369 = vadd.xlane.f32.xlu0 %v3306
        %v3370 = vpop.xlane.xlu0 %3369
        %3371 = vadd.xlane.f32.xlu0 %v3308
        %v3372 = vpop.xlane.xlu0 %3371
        %3373 = vadd.xlane.f32.xlu0 %v3310
        %v3374 = vpop.xlane.xlu0 %3373
        %3375 = vadd.xlane.f32.xlu0 %v3312
        %v3376 = vpop.xlane.xlu0 %3375
        %3377 = vadd.xlane.f32.xlu0 %v3314
        %v3378 = vpop.xlane.xlu0 %3377
        %3379 = vadd.xlane.f32.xlu0 %v3316
        %v3380 = vpop.xlane.xlu0 %3379
        %3381 = vadd.xlane.f32.xlu0 %v3318
        %v3382 = vpop.xlane.xlu0 %3381
        %3383 = vadd.xlane.f32.xlu0 %v3320
        %v3384 = vpop.xlane.xlu0 %3383
        %3385 = vadd.xlane.f32.xlu0 %v3322
        %v3386 = vpop.xlane.xlu0 %3385
        %3387 = vadd.xlane.f32.xlu0 %v3324
        %v3388 = vpop.xlane.xlu0 %3387
        %3389 = vadd.xlane.f32.xlu0 %v3326
        %v3390 = vpop.xlane.xlu0 %3389
        %3391 = vadd.xlane.f32.xlu0 %v3328
        %v3392 = vpop.xlane.xlu0 %3391
        %3393 = vadd.xlane.f32.xlu0 %v3330
        %v3394 = vpop.xlane.xlu0 %3393
        %3395 = vadd.xlane.f32.xlu0 %v3332
        %v3396 = vpop.xlane.xlu0 %3395
        %3397 = vadd.xlane.f32.xlu0 %v3334
        %v3398 = vpop.xlane.xlu0 %3397
        %3399 = vadd.xlane.f32.xlu0 %v3336
        %v3400 = vpop.xlane.xlu0 %3399
        %3401 = vadd.xlane.f32.xlu0 %v3338
        %v3402 = vpop.xlane.xlu0 %3401
        %3403 = vadd.xlane.f32.xlu0 %v3340
        %v3404 = vpop.xlane.xlu0 %3403
        %3405 = vadd.xlane.f32.xlu0 %v3342
        %v3406 = vpop.xlane.xlu0 %3405
        %3407 = vadd.xlane.f32.xlu0 %v3344
        %v3408 = vpop.xlane.xlu0 %3407
        %3409 = vadd.xlane.f32.xlu0 %v3346
        %v3410 = vpop.xlane.xlu0 %3409
        %3411 = vadd.xlane.f32.xlu0 %v3348
        %v3412 = vpop.xlane.xlu0 %3411
        %3413 = vadd.xlane.f32.xlu0 %v3350
        %v3414 = vpop.xlane.xlu0 %3413
        %3415 = vadd.xlane.f32.xlu0 %v3352
        %v3416 = vpop.xlane.xlu0 %3415
        %3417 = vadd.xlane.f32.xlu0 %v3354
        %v3418 = vpop.xlane.xlu0 %3417
        %v3419 = vlog2.pop %v3356
        %v3420 = vmul.f32 %v3419, 0.6931472
        %v3421 = vlog2.pop %v3358
        %v3422 = vmul.f32 %v3421, 0.6931472
        %v3423 = vlog2.pop %v3360
        %v3424 = vmul.f32 %v3423, 0.6931472
        %v3425 = vlog2.pop %v3362
        %v3426 = vmul.f32 %v3425, 0.6931472
        %v3427 = vlog2.pop %v3364
        %v3428 = vmul.f32 %v3427, 0.6931472
        %v3429 = vlog2.pop %v3366
        %v3430 = vmul.f32 %v3429, 0.6931472
        %v3431 = vlog2.pop %v3368
        %v3432 = vmul.f32 %v3431, 0.6931472
        %v3433 = vlog2.pop %v3370
        %v3434 = vmul.f32 %v3433, 0.6931472
        %v3435 = vlog2.pop %v3372
        %v3436 = vmul.f32 %v3435, 0.6931472
        %v3437 = vlog2.pop %v3374
        %v3438 = vmul.f32 %v3437, 0.6931472
        %v3439 = vlog2.pop %v3376
        %v3440 = vmul.f32 %v3439, 0.6931472
        %v3441 = vlog2.pop %v3378
        %v3442 = vmul.f32 %v3441, 0.6931472
        %v3443 = vlog2.pop %v3380
        %v3444 = vmul.f32 %v3443, 0.6931472
        %v3445 = vlog2.pop %v3382
        %v3446 = vmul.f32 %v3445, 0.6931472
        %v3447 = vlog2.pop %v3384
        %v3448 = vmul.f32 %v3447, 0.6931472
        %v3449 = vlog2.pop %v3386
        %v3450 = vmul.f32 %v3449, 0.6931472
        %v3451 = vlog2.pop %v3388
        %v3452 = vmul.f32 %v3451, 0.6931472
        %v3453 = vlog2.pop %v3390
        %v3454 = vmul.f32 %v3453, 0.6931472
        %v3455 = vlog2.pop %v3392
        %v3456 = vmul.f32 %v3455, 0.6931472
        %v3457 = vlog2.pop %v3394
        %v3458 = vmul.f32 %v3457, 0.6931472
        %v3459 = vlog2.pop %v3396
        %v3460 = vmul.f32 %v3459, 0.6931472
        %v3461 = vlog2.pop %v3398
        %v3462 = vmul.f32 %v3461, 0.6931472
        %v3463 = vlog2.pop %v3400
        %v3464 = vmul.f32 %v3463, 0.6931472
        %v3465 = vlog2.pop %v3402
        %v3466 = vmul.f32 %v3465, 0.6931472
        %v3467 = vlog2.pop %v3404
        %v3468 = vmul.f32 %v3467, 0.6931472
        %v3469 = vlog2.pop %v3406
        %v3470 = vmul.f32 %v3469, 0.6931472
        %v3471 = vlog2.pop %v3408
        %v3472 = vmul.f32 %v3471, 0.6931472
        %v3473 = vlog2.pop %v3410
        %v3474 = vmul.f32 %v3473, 0.6931472
        %v3475 = vlog2.pop %v3412
        %v3476 = vmul.f32 %v3475, 0.6931472
        %v3477 = vlog2.pop %v3414
        %v3478 = vmul.f32 %v3477, 0.6931472
        %v3479 = vlog2.pop %v3416
        %v3480 = vmul.f32 %v3479, 0.6931472
        %v3481 = vlog2.pop %v3418
        %v3482 = vmul.f32 %v3481, 0.6931472
        %v3483 = vsub.f32 %v3259, %v3420
        %v3484 = vsub.f32 %v3260, %v3422
        %v3485 = vsub.f32 %v3261, %v3424
        %v3486 = vsub.f32 %v3262, %v3426
        %v3487 = vsub.f32 %v3263, %v3428
        %v3488 = vsub.f32 %v3264, %v3430
        %v3489 = vsub.f32 %v3265, %v3432
        %v3490 = vsub.f32 %v3266, %v3434
        %v3491 = vsub.f32 %v3267, %v3436
        %v3492 = vsub.f32 %v3268, %v3438
        %v3493 = vsub.f32 %v3269, %v3440
        %v3494 = vsub.f32 %v3270, %v3442
        %v3495 = vsub.f32 %v3271, %v3444
        %v3496 = vsub.f32 %v3272, %v3446
        %v3497 = vsub.f32 %v3273, %v3448
        %v3498 = vsub.f32 %v3274, %v3450
        %v3499 = vsub.f32 %v3275, %v3452
        %v3500 = vsub.f32 %v3276, %v3454
        %v3501 = vsub.f32 %v3277, %v3456
        %v3502 = vsub.f32 %v3278, %v3458
        %v3503 = vsub.f32 %v3279, %v3460
        %v3504 = vsub.f32 %v3280, %v3462
        %v3505 = vsub.f32 %v3281, %v3464
        %v3506 = vsub.f32 %v3282, %v3466
        %v3507 = vsub.f32 %v3283, %v3468
        %v3508 = vsub.f32 %v3284, %v3470
        %v3509 = vsub.f32 %v3285, %v3472
        %v3510 = vsub.f32 %v3286, %v3474
        %v3511 = vsub.f32 %v3287, %v3476
        %v3512 = vsub.f32 %v3288, %v3478
        %v3513 = vsub.f32 %v3289, %v3480
        %v3514 = vsub.f32 %v3290, %v3482
        %3515 = vst [vmem:[%s380] sm:$0xff] %v3483
        %3516 = vst [vmem:[%s380 + $0x8] sm:$0xff] %v3484
        %3517 = vst [vmem:[%s380 + $0x10] sm:$0xff] %v3485
        %3518 = vst [vmem:[%s380 + $0x18] sm:$0xff] %v3486
        %3519 = vst [vmem:[%s380 + $0x20] sm:$0xff] %v3487
        %3520 = vst [vmem:[%s380 + $0x28] sm:$0xff] %v3488
        %3521 = vst [vmem:[%s380 + $0x30] sm:$0xff] %v3489
        %3522 = vst [vmem:[%s380 + $0x38] sm:$0xff] %v3490
        %3523 = vst [vmem:[%s380 + $0x40] sm:$0xff] %v3491
        %3524 = vst [vmem:[%s380 + $0x48] sm:$0xff] %v3492
        %3525 = vst [vmem:[%s380 + $0x50] sm:$0xff] %v3493
        %3526 = vst [vmem:[%s380 + $0x58] sm:$0xff] %v3494
        %3527 = vst [vmem:[%s380 + $0x60] sm:$0xff] %v3495
        %3528 = vst [vmem:[%s380 + $0x68] sm:$0xff] %v3496
        %3529 = vst [vmem:[%s380 + $0x70] sm:$0xff] %v3497
        %3530 = vst [vmem:[%s380 + $0x78] sm:$0xff] %v3498
        %3531 = vst [vmem:[%s380 + $0x80] sm:$0xff] %v3499
        %3532 = vst [vmem:[%s380 + $0x88] sm:$0xff] %v3500
        %3533 = vst [vmem:[%s380 + $0x90] sm:$0xff] %v3501
        %3534 = vst [vmem:[%s380 + $0x98] sm:$0xff] %v3502
        %3535 = vst [vmem:[%s380 + $0xa0] sm:$0xff] %v3503
        %3536 = vst [vmem:[%s380 + $0xa8] sm:$0xff] %v3504
        %3537 = vst [vmem:[%s380 + $0xb0] sm:$0xff] %v3505
        %3538 = vst [vmem:[%s380 + $0xb8] sm:$0xff] %v3506
        %3539 = vst [vmem:[%s380 + $0xc0] sm:$0xff] %v3507
        %3540 = vst [vmem:[%s380 + $0xc8] sm:$0xff] %v3508
        %3541 = vst [vmem:[%s380 + $0xd0] sm:$0xff] %v3509
        %3542 = vst [vmem:[%s380 + $0xd8] sm:$0xff] %v3510
        %3543 = vst [vmem:[%s380 + $0xe0] sm:$0xff] %v3511
        %3544 = vst [vmem:[%s380 + $0xe8] sm:$0xff] %v3512
        %3545 = vst [vmem:[%s380 + $0xf0] sm:$0xff] %v3513
        %3546 = vst [vmem:[%s380 + $0xf8] sm:$0xff] %v3514
        %v3547 = vmul.f32 %v2879, %v2879
        %v3548 = vmul.f32 %v2882, %v2882
        %v3549 = vmul.f32 %v2885, %v2885
        %v3550 = vmul.f32 %v2888, %v2888
        %v3551 = vmul.f32 %v2891, %v2891
        %v3552 = vmul.f32 %v2894, %v2894
        %v3553 = vmul.f32 %v2897, %v2897
        %v3554 = vmul.f32 %v2900, %v2900
        %v3555 = vmul.f32 %v2903, %v2903
        %v3556 = vmul.f32 %v2906, %v2906
        %v3557 = vmul.f32 %v2909, %v2909
        %v3558 = vmul.f32 %v2912, %v2912
        %v3559 = vmul.f32 %v2915, %v2915
        %v3560 = vmul.f32 %v2918, %v2918
        %v3561 = vmul.f32 %v2921, %v2921
        %v3562 = vmul.f32 %v2924, %v2924
        %v3563 = vmul.f32 %v2927, %v2927
        %v3564 = vmul.f32 %v2930, %v2930
        %v3565 = vmul.f32 %v2933, %v2933
        %v3566 = vmul.f32 %v2936, %v2936
        %v3567 = vmul.f32 %v2939, %v2939
        %v3568 = vmul.f32 %v2942, %v2942
        %v3569 = vmul.f32 %v2945, %v2945
        %v3570 = vmul.f32 %v2948, %v2948
        %v3571 = vmul.f32 %v2951, %v2951
        %v3572 = vmul.f32 %v2954, %v2954
        %v3573 = vmul.f32 %v2957, %v2957
        %v3574 = vmul.f32 %v2960, %v2960
        %v3575 = vmul.f32 %v2963, %v2963
        %v3576 = vmul.f32 %v2966, %v2966
        %v3577 = vmul.f32 %v2969, %v2969
        %v3578 = vmul.f32 %v2972, %v2972
        %v3579 = vsel %vm1969, %v3547, 0.0
        %3580 = vadd.xlane.f32.xlu0 %v3579
        %v3581 = vpop.xlane.xlu0 %3580
        %v3582 = vsel %vm1969, %v3548, 0.0
        %3583 = vadd.xlane.f32.xlu0 %v3582
        %v3584 = vpop.xlane.xlu0 %3583
        %v3585 = vsel %vm1969, %v3549, 0.0
        %3586 = vadd.xlane.f32.xlu0 %v3585
        %v3587 = vpop.xlane.xlu0 %3586
        %v3588 = vsel %vm1969, %v3550, 0.0
        %3589 = vadd.xlane.f32.xlu0 %v3588
        %v3590 = vpop.xlane.xlu0 %3589
        %v3591 = vsel %vm1969, %v3551, 0.0
        %3592 = vadd.xlane.f32.xlu0 %v3591
        %v3593 = vpop.xlane.xlu0 %3592
        %v3594 = vsel %vm1969, %v3552, 0.0
        %3595 = vadd.xlane.f32.xlu0 %v3594
        %v3596 = vpop.xlane.xlu0 %3595
        %v3597 = vsel %vm1969, %v3553, 0.0
        %3598 = vadd.xlane.f32.xlu0 %v3597
        %v3599 = vpop.xlane.xlu0 %3598
        %v3600 = vsel %vm1969, %v3554, 0.0
        %3601 = vadd.xlane.f32.xlu0 %v3600
        %v3602 = vpop.xlane.xlu0 %3601
        %v3603 = vsel %vm1969, %v3555, 0.0
        %3604 = vadd.xlane.f32.xlu0 %v3603
        %v3605 = vpop.xlane.xlu0 %3604
        %v3606 = vsel %vm1969, %v3556, 0.0
        %3607 = vadd.xlane.f32.xlu0 %v3606
        %v3608 = vpop.xlane.xlu0 %3607
        %v3609 = vsel %vm1969, %v3557, 0.0
        %3610 = vadd.xlane.f32.xlu0 %v3609
        %v3611 = vpop.xlane.xlu0 %3610
        %v3612 = vsel %vm1969, %v3558, 0.0
        %3613 = vadd.xlane.f32.xlu0 %v3612
        %v3614 = vpop.xlane.xlu0 %3613
        %v3615 = vsel %vm1969, %v3559, 0.0
        %3616 = vadd.xlane.f32.xlu0 %v3615
        %v3617 = vpop.xlane.xlu0 %3616
        %v3618 = vsel %vm1969, %v3560, 0.0
        %3619 = vadd.xlane.f32.xlu0 %v3618
        %v3620 = vpop.xlane.xlu0 %3619
        %v3621 = vsel %vm1969, %v3561, 0.0
        %3622 = vadd.xlane.f32.xlu0 %v3621
        %v3623 = vpop.xlane.xlu0 %3622
        %v3624 = vsel %vm1969, %v3562, 0.0
        %3625 = vadd.xlane.f32.xlu0 %v3624
        %v3626 = vpop.xlane.xlu0 %3625
        %v3627 = vsel %vm1969, %v3563, 0.0
        %3628 = vadd.xlane.f32.xlu0 %v3627
        %v3629 = vpop.xlane.xlu0 %3628
        %v3630 = vsel %vm1969, %v3564, 0.0
        %3631 = vadd.xlane.f32.xlu0 %v3630
        %v3632 = vpop.xlane.xlu0 %3631
        %v3633 = vsel %vm1969, %v3565, 0.0
        %3634 = vadd.xlane.f32.xlu0 %v3633
        %v3635 = vpop.xlane.xlu0 %3634
        %v3636 = vsel %vm1969, %v3566, 0.0
        %3637 = vadd.xlane.f32.xlu0 %v3636
        %v3638 = vpop.xlane.xlu0 %3637
        %v3639 = vsel %vm1969, %v3567, 0.0
        %3640 = vadd.xlane.f32.xlu0 %v3639
        %v3641 = vpop.xlane.xlu0 %3640
        %v3642 = vsel %vm1969, %v3568, 0.0
        %3643 = vadd.xlane.f32.xlu0 %v3642
        %v3644 = vpop.xlane.xlu0 %3643
        %v3645 = vsel %vm1969, %v3569, 0.0
        %3646 = vadd.xlane.f32.xlu0 %v3645
        %v3647 = vpop.xlane.xlu0 %3646
        %v3648 = vsel %vm1969, %v3570, 0.0
        %3649 = vadd.xlane.f32.xlu0 %v3648
        %v3650 = vpop.xlane.xlu0 %3649
        %v3651 = vsel %vm1969, %v3571, 0.0
        %3652 = vadd.xlane.f32.xlu0 %v3651
        %v3653 = vpop.xlane.xlu0 %3652
        %v3654 = vsel %vm1969, %v3572, 0.0
        %3655 = vadd.xlane.f32.xlu0 %v3654
        %v3656 = vpop.xlane.xlu0 %3655
        %v3657 = vsel %vm1969, %v3573, 0.0
        %3658 = vadd.xlane.f32.xlu0 %v3657
        %v3659 = vpop.xlane.xlu0 %3658
        %v3660 = vsel %vm1969, %v3574, 0.0
        %3661 = vadd.xlane.f32.xlu0 %v3660
        %v3662 = vpop.xlane.xlu0 %3661
        %v3663 = vsel %vm1969, %v3575, 0.0
        %3664 = vadd.xlane.f32.xlu0 %v3663
        %v3665 = vpop.xlane.xlu0 %3664
        %v3666 = vsel %vm1969, %v3576, 0.0
        %3667 = vadd.xlane.f32.xlu0 %v3666
        %v3668 = vpop.xlane.xlu0 %3667
        %v3669 = vsel %vm1969, %v3577, 0.0
        %3670 = vadd.xlane.f32.xlu0 %v3669
        %v3671 = vpop.xlane.xlu0 %3670
        %v3672 = vsel %vm1969, %v3578, 0.0
        %3673 = vadd.xlane.f32.xlu0 %v3672
        %v3674 = vpop.xlane.xlu0 %3673
        %v3675 = vrsqrt.pop %v3581
        %v3676 = vmul.f32 %v3675, %v3581
        %v3677 = vmul.f32 %v3676, %v3675
        %v3678 = vmul.f32 0.5, %v3677
        %v3679 = vsub.f32 1.5, %v3678
        %v3680 = vmul.f32 %v3675, %v3679
        %vm3681 = vweird.f32 %v3581
        %vm3682 = vweird.f32 %v3675
        %vm3683 = vmor %vm3681, %vm3682
        %v3684 = vsel %vm3683, %v3675, %v3680
        %v3685 = vrsqrt.pop %v3584
        %v3686 = vmul.f32 %v3685, %v3584
        %v3687 = vmul.f32 %v3686, %v3685
        %v3688 = vmul.f32 0.5, %v3687
        %v3689 = vsub.f32 1.5, %v3688
        %v3690 = vmul.f32 %v3685, %v3689
        %vm3691 = vweird.f32 %v3584
        %vm3692 = vweird.f32 %v3685
        %vm3693 = vmor %vm3691, %vm3692
        %v3694 = vsel %vm3693, %v3685, %v3690
        %v3695 = vrsqrt.pop %v3587
        %v3696 = vmul.f32 %v3695, %v3587
        %v3697 = vmul.f32 %v3696, %v3695
        %v3698 = vmul.f32 0.5, %v3697
        %v3699 = vsub.f32 1.5, %v3698
        %v3700 = vmul.f32 %v3695, %v3699
        %vm3701 = vweird.f32 %v3587
        %vm3702 = vweird.f32 %v3695
        %vm3703 = vmor %vm3701, %vm3702
        %v3704 = vsel %vm3703, %v3695, %v3700
        %v3705 = vrsqrt.pop %v3590
        %v3706 = vmul.f32 %v3705, %v3590
        %v3707 = vmul.f32 %v3706, %v3705
        %v3708 = vmul.f32 0.5, %v3707
        %v3709 = vsub.f32 1.5, %v3708
        %v3710 = vmul.f32 %v3705, %v3709
        %vm3711 = vweird.f32 %v3590
        %vm3712 = vweird.f32 %v3705
        %vm3713 = vmor %vm3711, %vm3712
        %v3714 = vsel %vm3713, %v3705, %v3710
        %v3715 = vrsqrt.pop %v3593
        %v3716 = vmul.f32 %v3715, %v3593
        %v3717 = vmul.f32 %v3716, %v3715
        %v3718 = vmul.f32 0.5, %v3717
        %v3719 = vsub.f32 1.5, %v3718
        %v3720 = vmul.f32 %v3715, %v3719
        %vm3721 = vweird.f32 %v3593
        %vm3722 = vweird.f32 %v3715
        %vm3723 = vmor %vm3721, %vm3722
        %v3724 = vsel %vm3723, %v3715, %v3720
        %v3725 = vrsqrt.pop %v3596
        %v3726 = vmul.f32 %v3725, %v3596
        %v3727 = vmul.f32 %v3726, %v3725
        %v3728 = vmul.f32 0.5, %v3727
        %v3729 = vsub.f32 1.5, %v3728
        %v3730 = vmul.f32 %v3725, %v3729
        %vm3731 = vweird.f32 %v3596
        %vm3732 = vweird.f32 %v3725
        %vm3733 = vmor %vm3731, %vm3732
        %v3734 = vsel %vm3733, %v3725, %v3730
        %v3735 = vrsqrt.pop %v3599
        %v3736 = vmul.f32 %v3735, %v3599
        %v3737 = vmul.f32 %v3736, %v3735
        %v3738 = vmul.f32 0.5, %v3737
        %v3739 = vsub.f32 1.5, %v3738
        %v3740 = vmul.f32 %v3735, %v3739
        %vm3741 = vweird.f32 %v3599
        %vm3742 = vweird.f32 %v3735
        %vm3743 = vmor %vm3741, %vm3742
        %v3744 = vsel %vm3743, %v3735, %v3740
        %v3745 = vrsqrt.pop %v3602
        %v3746 = vmul.f32 %v3745, %v3602
        %v3747 = vmul.f32 %v3746, %v3745
        %v3748 = vmul.f32 0.5, %v3747
        %v3749 = vsub.f32 1.5, %v3748
        %v3750 = vmul.f32 %v3745, %v3749
        %vm3751 = vweird.f32 %v3602
        %vm3752 = vweird.f32 %v3745
        %vm3753 = vmor %vm3751, %vm3752
        %v3754 = vsel %vm3753, %v3745, %v3750
        %v3755 = vrsqrt.pop %v3605
        %v3756 = vmul.f32 %v3755, %v3605
        %v3757 = vmul.f32 %v3756, %v3755
        %v3758 = vmul.f32 0.5, %v3757
        %v3759 = vsub.f32 1.5, %v3758
        %v3760 = vmul.f32 %v3755, %v3759
        %vm3761 = vweird.f32 %v3605
        %vm3762 = vweird.f32 %v3755
        %vm3763 = vmor %vm3761, %vm3762
        %v3764 = vsel %vm3763, %v3755, %v3760
        %v3765 = vrsqrt.pop %v3608
        %v3766 = vmul.f32 %v3765, %v3608
        %v3767 = vmul.f32 %v3766, %v3765
        %v3768 = vmul.f32 0.5, %v3767
        %v3769 = vsub.f32 1.5, %v3768
        %v3770 = vmul.f32 %v3765, %v3769
        %vm3771 = vweird.f32 %v3608
        %vm3772 = vweird.f32 %v3765
        %vm3773 = vmor %vm3771, %vm3772
        %v3774 = vsel %vm3773, %v3765, %v3770
        %v3775 = vrsqrt.pop %v3611
        %v3776 = vmul.f32 %v3775, %v3611
        %v3777 = vmul.f32 %v3776, %v3775
        %v3778 = vmul.f32 0.5, %v3777
        %v3779 = vsub.f32 1.5, %v3778
        %v3780 = vmul.f32 %v3775, %v3779
        %vm3781 = vweird.f32 %v3611
        %vm3782 = vweird.f32 %v3775
        %vm3783 = vmor %vm3781, %vm3782
        %v3784 = vsel %vm3783, %v3775, %v3780
        %v3785 = vrsqrt.pop %v3614
        %v3786 = vmul.f32 %v3785, %v3614
        %v3787 = vmul.f32 %v3786, %v3785
        %v3788 = vmul.f32 0.5, %v3787
        %v3789 = vsub.f32 1.5, %v3788
        %v3790 = vmul.f32 %v3785, %v3789
        %vm3791 = vweird.f32 %v3614
        %vm3792 = vweird.f32 %v3785
        %vm3793 = vmor %vm3791, %vm3792
        %v3794 = vsel %vm3793, %v3785, %v3790
        %v3795 = vrsqrt.pop %v3617
        %v3796 = vmul.f32 %v3795, %v3617
        %v3797 = vmul.f32 %v3796, %v3795
        %v3798 = vmul.f32 0.5, %v3797
        %v3799 = vsub.f32 1.5, %v3798
        %v3800 = vmul.f32 %v3795, %v3799
        %vm3801 = vweird.f32 %v3617
        %vm3802 = vweird.f32 %v3795
        %vm3803 = vmor %vm3801, %vm3802
        %v3804 = vsel %vm3803, %v3795, %v3800
        %v3805 = vrsqrt.pop %v3620
        %v3806 = vmul.f32 %v3805, %v3620
        %v3807 = vmul.f32 %v3806, %v3805
        %v3808 = vmul.f32 0.5, %v3807
        %v3809 = vsub.f32 1.5, %v3808
        %v3810 = vmul.f32 %v3805, %v3809
        %vm3811 = vweird.f32 %v3620
        %vm3812 = vweird.f32 %v3805
        %vm3813 = vmor %vm3811, %vm3812
        %v3814 = vsel %vm3813, %v3805, %v3810
        %v3815 = vrsqrt.pop %v3623
        %v3816 = vmul.f32 %v3815, %v3623
        %v3817 = vmul.f32 %v3816, %v3815
        %v3818 = vmul.f32 0.5, %v3817
        %v3819 = vsub.f32 1.5, %v3818
        %v3820 = vmul.f32 %v3815, %v3819
        %vm3821 = vweird.f32 %v3623
        %vm3822 = vweird.f32 %v3815
        %vm3823 = vmor %vm3821, %vm3822
        %v3824 = vsel %vm3823, %v3815, %v3820
        %v3825 = vrsqrt.pop %v3626
        %v3826 = vmul.f32 %v3825, %v3626
        %v3827 = vmul.f32 %v3826, %v3825
        %v3828 = vmul.f32 0.5, %v3827
        %v3829 = vsub.f32 1.5, %v3828
        %v3830 = vmul.f32 %v3825, %v3829
        %vm3831 = vweird.f32 %v3626
        %vm3832 = vweird.f32 %v3825
        %vm3833 = vmor %vm3831, %vm3832
        %v3834 = vsel %vm3833, %v3825, %v3830
        %v3835 = vrsqrt.pop %v3629
        %v3836 = vmul.f32 %v3835, %v3629
        %v3837 = vmul.f32 %v3836, %v3835
        %v3838 = vmul.f32 0.5, %v3837
        %v3839 = vsub.f32 1.5, %v3838
        %v3840 = vmul.f32 %v3835, %v3839
        %vm3841 = vweird.f32 %v3629
        %vm3842 = vweird.f32 %v3835
        %vm3843 = vmor %vm3841, %vm3842
        %v3844 = vsel %vm3843, %v3835, %v3840
        %v3845 = vrsqrt.pop %v3632
        %v3846 = vmul.f32 %v3845, %v3632
        %v3847 = vmul.f32 %v3846, %v3845
        %v3848 = vmul.f32 0.5, %v3847
        %v3849 = vsub.f32 1.5, %v3848
        %v3850 = vmul.f32 %v3845, %v3849
        %vm3851 = vweird.f32 %v3632
        %vm3852 = vweird.f32 %v3845
        %vm3853 = vmor %vm3851, %vm3852
        %v3854 = vsel %vm3853, %v3845, %v3850
        %v3855 = vrsqrt.pop %v3635
        %v3856 = vmul.f32 %v3855, %v3635
        %v3857 = vmul.f32 %v3856, %v3855
        %v3858 = vmul.f32 0.5, %v3857
        %v3859 = vsub.f32 1.5, %v3858
        %v3860 = vmul.f32 %v3855, %v3859
        %vm3861 = vweird.f32 %v3635
        %vm3862 = vweird.f32 %v3855
        %vm3863 = vmor %vm3861, %vm3862
        %v3864 = vsel %vm3863, %v3855, %v3860
        %v3865 = vrsqrt.pop %v3638
        %v3866 = vmul.f32 %v3865, %v3638
        %v3867 = vmul.f32 %v3866, %v3865
        %v3868 = vmul.f32 0.5, %v3867
        %v3869 = vsub.f32 1.5, %v3868
        %v3870 = vmul.f32 %v3865, %v3869
        %vm3871 = vweird.f32 %v3638
        %vm3872 = vweird.f32 %v3865
        %vm3873 = vmor %vm3871, %vm3872
        %v3874 = vsel %vm3873, %v3865, %v3870
        %v3875 = vrsqrt.pop %v3641
        %v3876 = vmul.f32 %v3875, %v3641
        %v3877 = vmul.f32 %v3876, %v3875
        %v3878 = vmul.f32 0.5, %v3877
        %v3879 = vsub.f32 1.5, %v3878
        %v3880 = vmul.f32 %v3875, %v3879
        %vm3881 = vweird.f32 %v3641
        %vm3882 = vweird.f32 %v3875
        %vm3883 = vmor %vm3881, %vm3882
        %v3884 = vsel %vm3883, %v3875, %v3880
        %v3885 = vrsqrt.pop %v3644
        %v3886 = vmul.f32 %v3885, %v3644
        %v3887 = vmul.f32 %v3886, %v3885
        %v3888 = vmul.f32 0.5, %v3887
        %v3889 = vsub.f32 1.5, %v3888
        %v3890 = vmul.f32 %v3885, %v3889
        %vm3891 = vweird.f32 %v3644
        %vm3892 = vweird.f32 %v3885
        %vm3893 = vmor %vm3891, %vm3892
        %v3894 = vsel %vm3893, %v3885, %v3890
        %v3895 = vrsqrt.pop %v3647
        %v3896 = vmul.f32 %v3895, %v3647
        %v3897 = vmul.f32 %v3896, %v3895
        %v3898 = vmul.f32 0.5, %v3897
        %v3899 = vsub.f32 1.5, %v3898
        %v3900 = vmul.f32 %v3895, %v3899
        %vm3901 = vweird.f32 %v3647
        %vm3902 = vweird.f32 %v3895
        %vm3903 = vmor %vm3901, %vm3902
        %v3904 = vsel %vm3903, %v3895, %v3900
        %v3905 = vrsqrt.pop %v3650
        %v3906 = vmul.f32 %v3905, %v3650
        %v3907 = vmul.f32 %v3906, %v3905
        %v3908 = vmul.f32 0.5, %v3907
        %v3909 = vsub.f32 1.5, %v3908
        %v3910 = vmul.f32 %v3905, %v3909
        %vm3911 = vweird.f32 %v3650
        %vm3912 = vweird.f32 %v3905
        %vm3913 = vmor %vm3911, %vm3912
        %v3914 = vsel %vm3913, %v3905, %v3910
        %v3915 = vrsqrt.pop %v3653
        %v3916 = vmul.f32 %v3915, %v3653
        %v3917 = vmul.f32 %v3916, %v3915
        %v3918 = vmul.f32 0.5, %v3917
        %v3919 = vsub.f32 1.5, %v3918
        %v3920 = vmul.f32 %v3915, %v3919
        %vm3921 = vweird.f32 %v3653
        %vm3922 = vweird.f32 %v3915
        %vm3923 = vmor %vm3921, %vm3922
        %v3924 = vsel %vm3923, %v3915, %v3920
        %v3925 = vrsqrt.pop %v3656
        %v3926 = vmul.f32 %v3925, %v3656
        %v3927 = vmul.f32 %v3926, %v3925
        %v3928 = vmul.f32 0.5, %v3927
        %v3929 = vsub.f32 1.5, %v3928
        %v3930 = vmul.f32 %v3925, %v3929
        %vm3931 = vweird.f32 %v3656
        %vm3932 = vweird.f32 %v3925
        %vm3933 = vmor %vm3931, %vm3932
        %v3934 = vsel %vm3933, %v3925, %v3930
        %v3935 = vrsqrt.pop %v3659
        %v3936 = vmul.f32 %v3935, %v3659
        %v3937 = vmul.f32 %v3936, %v3935
        %v3938 = vmul.f32 0.5, %v3937
        %v3939 = vsub.f32 1.5, %v3938
        %v3940 = vmul.f32 %v3935, %v3939
        %vm3941 = vweird.f32 %v3659
        %vm3942 = vweird.f32 %v3935
        %vm3943 = vmor %vm3941, %vm3942
        %v3944 = vsel %vm3943, %v3935, %v3940
        %v3945 = vrsqrt.pop %v3662
        %v3946 = vmul.f32 %v3945, %v3662
        %v3947 = vmul.f32 %v3946, %v3945
        %v3948 = vmul.f32 0.5, %v3947
        %v3949 = vsub.f32 1.5, %v3948
        %v3950 = vmul.f32 %v3945, %v3949
        %vm3951 = vweird.f32 %v3662
        %vm3952 = vweird.f32 %v3945
        %vm3953 = vmor %vm3951, %vm3952
        %v3954 = vsel %vm3953, %v3945, %v3950
        %v3955 = vrsqrt.pop %v3665
        %v3956 = vmul.f32 %v3955, %v3665
        %v3957 = vmul.f32 %v3956, %v3955
        %v3958 = vmul.f32 0.5, %v3957
        %v3959 = vsub.f32 1.5, %v3958
        %v3960 = vmul.f32 %v3955, %v3959
        %vm3961 = vweird.f32 %v3665
        %vm3962 = vweird.f32 %v3955
        %vm3963 = vmor %vm3961, %vm3962
        %v3964 = vsel %vm3963, %v3955, %v3960
        %v3965 = vrsqrt.pop %v3668
        %v3966 = vmul.f32 %v3965, %v3668
        %v3967 = vmul.f32 %v3966, %v3965
        %v3968 = vmul.f32 0.5, %v3967
        %v3969 = vsub.f32 1.5, %v3968
        %v3970 = vmul.f32 %v3965, %v3969
        %vm3971 = vweird.f32 %v3668
        %vm3972 = vweird.f32 %v3965
        %vm3973 = vmor %vm3971, %vm3972
        %v3974 = vsel %vm3973, %v3965, %v3970
        %v3975 = vrsqrt.pop %v3671
        %v3976 = vmul.f32 %v3975, %v3671
        %v3977 = vmul.f32 %v3976, %v3975
        %v3978 = vmul.f32 0.5, %v3977
        %v3979 = vsub.f32 1.5, %v3978
        %v3980 = vmul.f32 %v3975, %v3979
        %vm3981 = vweird.f32 %v3671
        %vm3982 = vweird.f32 %v3975
        %vm3983 = vmor %vm3981, %vm3982
        %v3984 = vsel %vm3983, %v3975, %v3980
        %v3985 = vrsqrt.pop %v3674
        %v3986 = vmul.f32 %v3985, %v3674
        %v3987 = vmul.f32 %v3986, %v3985
        %v3988 = vmul.f32 0.5, %v3987
        %v3989 = vsub.f32 1.5, %v3988
        %v3990 = vmul.f32 %v3985, %v3989
        %vm3991 = vweird.f32 %v3674
        %vm3992 = vweird.f32 %v3985
        %vm3993 = vmor %vm3991, %vm3992
        %v3994 = vsel %vm3993, %v3985, %v3990
        %v3995 = vmul.f32 %v2879, %v3684
        %v3996 = vmul.f32 %v2882, %v3694
        %v3997 = vmul.f32 %v2885, %v3704
        %v3998 = vmul.f32 %v2888, %v3714
        %v3999 = vmul.f32 %v2891, %v3724
        %v4000 = vmul.f32 %v2894, %v3734
        %v4001 = vmul.f32 %v2897, %v3744
        %v4002 = vmul.f32 %v2900, %v3754
        %v4003 = vmul.f32 %v2903, %v3764
        %v4004 = vmul.f32 %v2906, %v3774
        %v4005 = vmul.f32 %v2909, %v3784
        %v4006 = vmul.f32 %v2912, %v3794
        %v4007 = vmul.f32 %v2915, %v3804
        %v4008 = vmul.f32 %v2918, %v3814
        %v4009 = vmul.f32 %v2921, %v3824
        %v4010 = vmul.f32 %v2924, %v3834
        %v4011 = vmul.f32 %v2927, %v3844
        %v4012 = vmul.f32 %v2930, %v3854
        %v4013 = vmul.f32 %v2933, %v3864
        %v4014 = vmul.f32 %v2936, %v3874
        %v4015 = vmul.f32 %v2939, %v3884
        %v4016 = vmul.f32 %v2942, %v3894
        %v4017 = vmul.f32 %v2945, %v3904
        %v4018 = vmul.f32 %v2948, %v3914
        %v4019 = vmul.f32 %v2951, %v3924
        %v4020 = vmul.f32 %v2954, %v3934
        %v4021 = vmul.f32 %v2957, %v3944
        %v4022 = vmul.f32 %v2960, %v3954
        %v4023 = vmul.f32 %v2963, %v3964
        %v4024 = vmul.f32 %v2966, %v3974
        %v4025 = vmul.f32 %v2969, %v3984
        %v4026 = vmul.f32 %v2972, %v3994
        %v4027 = vpack.c.bf16 %v3995, %v3995
        %v4028 = vpack.c.bf16 %v3996, %v3996
        %v4029 = vpack.c.bf16 %v3997, %v3997
        %v4030 = vpack.c.bf16 %v3998, %v3998
        %v4031 = vpack.c.bf16 %v3999, %v3999
        %v4032 = vpack.c.bf16 %v4000, %v4000
        %v4033 = vpack.c.bf16 %v4001, %v4001
        %v4034 = vpack.c.bf16 %v4002, %v4002
        %v4035 = vpack.c.bf16 %v4003, %v4003
        %v4036 = vpack.c.bf16 %v4004, %v4004
        %v4037 = vpack.c.bf16 %v4005, %v4005
        %v4038 = vpack.c.bf16 %v4006, %v4006
        %v4039 = vpack.c.bf16 %v4007, %v4007
        %v4040 = vpack.c.bf16 %v4008, %v4008
        %v4041 = vpack.c.bf16 %v4009, %v4009
        %v4042 = vpack.c.bf16 %v4010, %v4010
        %v4043 = vpack.c.bf16 %v4011, %v4011
        %v4044 = vpack.c.bf16 %v4012, %v4012
        %v4045 = vpack.c.bf16 %v4013, %v4013
        %v4046 = vpack.c.bf16 %v4014, %v4014
        %v4047 = vpack.c.bf16 %v4015, %v4015
        %v4048 = vpack.c.bf16 %v4016, %v4016
        %v4049 = vpack.c.bf16 %v4017, %v4017
        %v4050 = vpack.c.bf16 %v4018, %v4018
        %v4051 = vpack.c.bf16 %v4019, %v4019
        %v4052 = vpack.c.bf16 %v4020, %v4020
        %v4053 = vpack.c.bf16 %v4021, %v4021
        %v4054 = vpack.c.bf16 %v4022, %v4022
        %v4055 = vpack.c.bf16 %v4023, %v4023
        %v4056 = vpack.c.bf16 %v4024, %v4024
        %v4057 = vpack.c.bf16 %v4025, %v4025
        %v4058 = vpack.c.bf16 %v4026, %v4026
        %vm4059 = vcmask 519168
        %4060 = vst.msk [vmem:[%s394] sm:$0xf] %vm4059, %v4027
        %4061 = vst.msk [vmem:[%s394 + $0x4] sm:$0xf] %vm4059, %v4028
        %4062 = vst.msk [vmem:[%s394 + $0x8] sm:$0xf] %vm4059, %v4029
        %4063 = vst.msk [vmem:[%s394 + $0xc] sm:$0xf] %vm4059, %v4030
        %4064 = vst.msk [vmem:[%s394 + $0x10] sm:$0xf] %vm4059, %v4031
        %4065 = vst.msk [vmem:[%s394 + $0x14] sm:$0xf] %vm4059, %v4032
        %4066 = vst.msk [vmem:[%s394 + $0x18] sm:$0xf] %vm4059, %v4033
        %4067 = vst.msk [vmem:[%s394 + $0x1c] sm:$0xf] %vm4059, %v4034
        %4068 = vst.msk [vmem:[%s394 + $0x20] sm:$0xf] %vm4059, %v4035
        %4069 = vst.msk [vmem:[%s394 + $0x24] sm:$0xf] %vm4059, %v4036
        %4070 = vst.msk [vmem:[%s394 + $0x28] sm:$0xf] %vm4059, %v4037
        %4071 = vst.msk [vmem:[%s394 + $0x2c] sm:$0xf] %vm4059, %v4038
        %4072 = vst.msk [vmem:[%s394 + $0x30] sm:$0xf] %vm4059, %v4039
        %4073 = vst.msk [vmem:[%s394 + $0x34] sm:$0xf] %vm4059, %v4040
        %4074 = vst.msk [vmem:[%s394 + $0x38] sm:$0xf] %vm4059, %v4041
        %4075 = vst.msk [vmem:[%s394 + $0x3c] sm:$0xf] %vm4059, %v4042
        %4076 = vst.msk [vmem:[%s394 + $0x40] sm:$0xf] %vm4059, %v4043
        %4077 = vst.msk [vmem:[%s394 + $0x44] sm:$0xf] %vm4059, %v4044
        %4078 = vst.msk [vmem:[%s394 + $0x48] sm:$0xf] %vm4059, %v4045
        %4079 = vst.msk [vmem:[%s394 + $0x4c] sm:$0xf] %vm4059, %v4046
        %4080 = vst.msk [vmem:[%s394 + $0x50] sm:$0xf] %vm4059, %v4047
        %4081 = vst.msk [vmem:[%s394 + $0x54] sm:$0xf] %vm4059, %v4048
        %4082 = vst.msk [vmem:[%s394 + $0x58] sm:$0xf] %vm4059, %v4049
        %4083 = vst.msk [vmem:[%s394 + $0x5c] sm:$0xf] %vm4059, %v4050
        %4084 = vst.msk [vmem:[%s394 + $0x60] sm:$0xf] %vm4059, %v4051
        %4085 = vst.msk [vmem:[%s394 + $0x64] sm:$0xf] %vm4059, %v4052
        %4086 = vst.msk [vmem:[%s394 + $0x68] sm:$0xf] %vm4059, %v4053
        %4087 = vst.msk [vmem:[%s394 + $0x6c] sm:$0xf] %vm4059, %v4054
        %4088 = vst.msk [vmem:[%s394 + $0x70] sm:$0xf] %vm4059, %v4055
        %4089 = vst.msk [vmem:[%s394 + $0x74] sm:$0xf] %vm4059, %v4056
        %4090 = vst.msk [vmem:[%s394 + $0x78] sm:$0xf] %vm4059, %v4057
        %4091 = vst.msk [vmem:[%s394 + $0x7c] sm:$0xf] %vm4059, %v4058
        %s4092 = sand.u32 %s230, 1
        %s4093 = scalar_lea.sflag [#allocation4], %s4092
        %s4094 = sand.u32 %s230, 1
        %s4095 = smul.addr %s4094, 256
        %s4096 = scalar_lea.vmem [#allocation5], %s4095
        %s4097 = smul.u32 32, %s28
        %p4098 = scmp.lt.s32.totalorder %s4097, 127
        %s4099 = scalar_select %p4098, %s4097, 127
        %s4100 = smul.addr %s4099, 4
        %s4101 = scalar_lea.vmem %s10, %s4100
        // Predicated region
        $region61: #{tpu_custom_call.1} parent=55 // pred_check
          %p4102 = pneg %p240
        $region62: #{tpu_custom_call.1} parent=55 // pred_check_branch
          %4104 = sbr.rel (%p4102) target = $region64
        $region63: #{tpu_custom_call.1} parent=55 // pred_region
          %s4105 = smul.u32 32, %s28
          %4107 = vsyncadd %s4093, 0
          %s4108 = smul.addr %s4105, 8
          %s4109 = scalar_lea.hbm %s9, %s4108
          %s4110 = sshll.u32 %s4096, 4
          %s4111 = int_to_ptr.vmem [resolvable:$true] %s4110
          %s4112 = sshll.u32 %s4109, 4
          %s4113 = int_to_ptr.hbm [resolvable:$true] %s4112
          %4118 = dma.vmem_to_hbm [thread:$0]  %s4111, 4096, %s4113, %s4093, 128, 128, 8
        $region64: #{tpu_custom_call.1} parent=55 // pred_fallthru
          _
        // Predicated region
        $region65: #{tpu_custom_call.1} parent=55 // pred_check
          %p4119 = pneg %p266
        $region66: #{tpu_custom_call.1} parent=55 // pred_check_branch
          %4121 = sbr.rel (%p4119) target = $region68
        $region67: #{tpu_custom_call.1} parent=55 // pred_region
          %s4122 = smul.u32 32, %s28
        $region68: #{tpu_custom_call.1} parent=55 // pred_fallthru
          _
      $region56: #{tpu_custom_call.1} parent=5 // pred_fallthru
        _
      %p4123 = scmp.le.s32.totalorder 2, %s23
      // Predicated region
      $region69: #{tpu_custom_call.1} parent=5 // pred_check
        %p4124 = pneg %p4123
      $region70: #{tpu_custom_call.1} parent=5 // pred_check_branch
        %4126 = sbr.rel (%p4124) target = $region72
      $region71: #{tpu_custom_call.1} parent=5 // pred_region
        %s4127 = ssub.s32 %s23, 2
        // Predicated region
        $region73: #{tpu_custom_call.1} parent=71 // pred_check
          %p4128 = pneg %p246
        $region74: #{tpu_custom_call.1} parent=71 // pred_check_branch
          %4130 = sbr.rel (%p4128) target = $region76
        $region75: #{tpu_custom_call.1} parent=71 // pred_region
          %s4131 = sand.u32 %s231, 1
          %s4132 = scalar_lea.sflag [#allocation4], %s4131
          %s4133 = sand.u32 %s231, 1
          %s4134 = smul.addr %s4133, 256
          %s4135 = scalar_lea.vmem [#allocation5], %s4134
          %4137 = dma.done %s4132, 4096
        $region76: #{tpu_custom_call.1} parent=71 // pred_fallthru
          _
        // Predicated region
        $region77: #{tpu_custom_call.1} parent=71 // pred_check
          %p4138 = pneg %p272
        $region78: #{tpu_custom_call.1} parent=71 // pred_check_branch
          %4140 = sbr.rel (%p4138) target = $region80
        $region79: #{tpu_custom_call.1} parent=71 // pred_region
          %s4141 = smul.u32 32, %s29
          %p4142 = scmp.lt.s32.totalorder %s4141, 127
          %s4143 = scalar_select %p4142, %s4141, 127
          %s4144 = smul.addr %s4143, 4
          %s4145 = scalar_lea.vmem %s10, %s4144
        $region80: #{tpu_custom_call.1} parent=71 // pred_fallthru
          _
      $region72: #{tpu_custom_call.1} parent=5 // pred_fallthru
        _
    $region6: #{tpu_custom_call.1} parent=1 // loop_footer
      %s27 = sadd.s32 1, %s23
    $region7: #{tpu_custom_call.1} parent=1 // loop_footer_branch
      %22 = sbr.rel target = $region3
    $region8: #{tpu_custom_call.1} parent=1 // loop_exit
      _
    %4146 = vsyncpa [#allocation3], 1
    %s4147 = scalar_lea.sflag [#allocation3], 1
    %4148 = vsyncpa %s4147, 1
    %4149 = vsyncpa [#allocation4], 1
    %s4150 = scalar_lea.sflag [#allocation4], 1
    %4151 = vsyncpa %s4150, 1

</llo_original>
